<compile_context>
chip_gen: v7x
topology: tpu7x:2x2x1
jax: 0.10.0
libtpu: 0.0.40
codegen_flags: <defaults>
</compile_context>

<pallas_src>
import functools

import jax
import jax.numpy as jnp
from jax.experimental import pallas as pl
from jax.experimental.pallas import tpu as pltpu

# ----------------- small config consistent with the module -----------------
IMG_SIZE = 16
PATCH_SIZE = 4
IN_CHANS = 3
EMBED_DIM = 32
DEPTH = 2
NUM_HEADS = 4
MLP_RATIO = 4.0
NUM_CLASSES = 10

NUM_PATCHES = (IMG_SIZE // PATCH_SIZE) ** 2        # 16
SEQ = NUM_PATCHES + 1                              # 17 (cls token)
SEQ_PAD = 24                                       # padded to a multiple of 8
PATCH_DIM = IN_CHANS * PATCH_SIZE * PATCH_SIZE     # 48
MLP_HIDDEN = int(EMBED_DIM * MLP_RATIO)            # 128
HEAD_DIM = EMBED_DIM // NUM_HEADS                  # 8

BLOCK_EPS = 1e-6   # LayerNorm(dim, eps=1e-06) inside Block
FINAL_EPS = 1e-5   # LayerNorm(embed_dim) default eps in the final norm

NEG_INF = -1e30


# ------------------------------ kernel helpers ------------------------------
def _layernorm(x, w, b, eps):
    mu = jnp.mean(x, axis=-1, keepdims=True)
    var = jnp.mean((x - mu) ** 2, axis=-1, keepdims=True)
    return (x - mu) * jax.lax.rsqrt(var + eps) * w + b


def _gelu_exact(x):
    # PyTorch nn.GELU default (erf-based, approximate='none')
    return 0.5 * x * (1.0 + jax.lax.erf(x * 0.7071067811865476))


def _block_fwd(x, ln1w, ln1b, qkvw, projw, projb, ln2w, ln2b,
               fc1w, fc1b, fc2w, fc2b, attn_bias, num_heads, eps):
    """One transformer block on the fused (bt*SEQ_PAD, D) activation slab.

    `attn_bias` is a (rows, rows) additive mask: 0 where the key is a valid
    token of the SAME batch element, -1e30 otherwise (pad columns and
    cross-batch columns), so the fused-row attention is numerically identical
    to per-batch-element attention.
    """
    rows, D = x.shape
    d = D // num_heads
    scale = d ** (-0.5)

    # ---- attention branch ----
    h = _layernorm(x, ln1w, ln1b, eps)
    # qkv_bias=False (module default) -> no bias on the qkv projection
    qkv = jnp.dot(h, qkvw, preferred_element_type=jnp.float32)       # (rows, 3D)

    acc = None
    for hi in range(num_heads):
        q = qkv[:, hi * d:(hi + 1) * d]                              # (rows, d)
        k = qkv[:, D + hi * d:D + (hi + 1) * d]                      # (rows, d)
        v = qkv[:, 2 * D + hi * d:2 * D + (hi + 1) * d]              # (rows, d)
        # scores = q @ k^T (contract on head dim, no explicit transpose)
        s = jax.lax.dot_general(
            q, k, (((1,), (1,)), ((), ())),
            preferred_element_type=jnp.float32) * scale              # (rows, rows)
        s = s + attn_bias                   # mask pad + cross-batch columns
        s = s - jnp.max(s, axis=-1, keepdims=True)
        e = jnp.exp(s)
        p = e * pl.reciprocal(jnp.sum(e, axis=-1, keepdims=True),
                              approx=True)                           # softmax
        ho = jnp.dot(p, v, preferred_element_type=jnp.float32)       # (rows, d)
        # fold the output projection into the head loop (no (h d) concat)
        contrib = jnp.dot(ho, projw[hi * d:(hi + 1) * d, :],
                          preferred_element_type=jnp.float32)        # (rows, D)
        acc = contrib if acc is None else acc + contrib

    x = x + acc + projb                                              # residual 1

    # ---- MLP branch ----
    h2 = _layernorm(x, ln2w, ln2b, eps)
    hid = jnp.dot(h2, fc1w, preferred_element_type=jnp.float32) + fc1b
    hid = _gelu_exact(hid)
    mlp = jnp.dot(hid, fc2w, preferred_element_type=jnp.float32) + fc2b
    return x + mlp                                                   # residual 2


# ------------------------------ fused kernel --------------------------------
def vit_fused_kernel(*refs, num_heads, depth, bt, n_pad,
                     block_eps, final_eps):
    # refs: patches_pad, base (pre-tiled), attn_bias, <all weights...>, o_ref
    o_ref = refs[-1]
    patches_ref, base_ref, bias_ref = refs[0], refs[1], refs[2]
    w = [r[...] for r in refs[3:-1]]          # all weights (tiny, VMEM-resident)

    patch_w, patch_b = w[0], w[1]
    attn_bias = bias_ref[...]                 # (rows, rows) block-diag mask

    rows = bt * n_pad

    # Patch embed + cls token + pos embed in one aligned matmul-and-add.
    # Row 0 of each batch block of `patches` is zero and base row 0 equals
    # cls + pos[0] - patch_b, so the conv bias cancels on the cls row; pad
    # rows hold garbage but every consumer masks them.
    pat = patches_ref[...].reshape(rows, -1)                          # (rows, Pd)
    x = (jnp.dot(pat, patch_w, preferred_element_type=jnp.float32)
         + patch_b + base_ref[...])                                   # (rows, D)

    idx = 2
    for _ in range(depth):
        (ln1w, ln1b, qkvw, projw, projb,
         ln2w, ln2b, fc1w, fc1b, fc2w, fc2b) = w[idx:idx + 11]
        idx += 11
        x = _block_fwd(x, ln1w, ln1b, qkvw, projw, projb, ln2w, ln2b,
                       fc1w, fc1b, fc2w, fc2b, attn_bias,
                       num_heads, block_eps)

    norm_w, norm_b, head_w, head_b = w[idx:idx + 4]

    # Final LN + head on the whole slab (one LN + one matmul), then emit only
    # the cls row of each batch element (pool -> IndexSelect(0) -> head).
    y = _layernorm(x, norm_w, norm_b, final_eps)
    logits = jnp.dot(y, head_w, preferred_element_type=jnp.float32) + head_b
    for b in range(bt):
        o_ref[b:b + 1, :] = logits[b * n_pad:b * n_pad + 1, :]


# ------------------------------- JAX glue ------------------------------------
def extract_patches(x_nchw, patch_size):
    """(B, C, H, W) -> (B, num_patches, C*ph*pw), matching Conv2d(k=s=patch)."""
    B, C, H, W = x_nchw.shape
    ph = pw = patch_size
    x = x_nchw.reshape(B, C, H // ph, ph, W // pw, pw)
    x = x.transpose(0, 2, 4, 1, 3, 5)          # B, H', W', C, ph, pw
    return x.reshape(B, (H // ph) * (W // pw), C * ph * pw)


def vit_forward(x_img, params, bt=None):
    """Full ViT forward in one fused pallas_call.

    bt = batch elements per grid step (default: whole batch -> grid of 1)."""
    B = x_img.shape[0]
    if bt is None:
        bt = B
    assert B % bt == 0
    rows = bt * SEQ_PAD

    patches = extract_patches(x_img, PATCH_SIZE)           # (B, P, patch_dim)
    # Padded patch tensor: row 0 reserved for cls, rows 1..P real patches,
    # rows P+1..SEQ_PAD-1 zero padding (sequence padded to a multiple of 8).
    patches_pad = jnp.zeros((B, SEQ_PAD, PATCH_DIM), jnp.float32)
    patches_pad = patches_pad.at[:, 1:1 + NUM_PATCHES, :].set(patches)

    # Additive base: cls_token + pos_embed on row 0 (conv bias cancelled),
    # pos_embed on patch rows, zeros on pad rows; tiled over the batch tile.
    base = jnp.zeros((SEQ_PAD, EMBED_DIM), jnp.float32)
    base = base.at[0].set(params["cls_token"][0, 0]
                          + params["pos_embed"][0, 0]
                          - params["patch_b"][0])
    base = base.at[1:SEQ].set(params["pos_embed"][0, 1:SEQ])
    base_tiled = jnp.tile(base, (bt, 1))                    # (rows, D)

    # Block-diagonal additive attention bias over the fused rows:
    # 0 for (same batch element AND valid key column), -1e30 otherwise.
    col = jnp.arange(rows)
    valid_col = (col % SEQ_PAD) < SEQ
    same_batch = (col[:, None] // SEQ_PAD) == (col[None, :] // SEQ_PAD)
    attn_bias = jnp.where(same_batch & valid_col[None, :],
                          0.0, NEG_INF).astype(jnp.float32)  # (rows, rows)

    weights = [params["patch_w"], params["patch_b"]]
    for blk in params["blocks"]:
        weights += [blk["ln1_w"], blk["ln1_b"], blk["qkv_w"],
                    blk["proj_w"], blk["proj_b"],
                    blk["ln2_w"], blk["ln2_b"],
                    blk["fc1_w"], blk["fc1_b"], blk["fc2_w"], blk["fc2_b"]]
    weights += [params["norm_w"], params["norm_b"],
                params["head_w"], params["head_b"]]

    in_specs = [
        pl.BlockSpec((bt, SEQ_PAD, PATCH_DIM), lambda g: (g, 0, 0)),
        pl.BlockSpec((rows, EMBED_DIM), lambda g: (0, 0)),
        pl.BlockSpec((rows, rows), lambda g: (0, 0)),
    ]
    # All weights are 2-D and use the same (constant) block -> fetched once
    # and kept resident in VMEM across the whole grid.
    in_specs += [pl.BlockSpec(w.shape, lambda g: (0, 0)) for w in weights]

    kernel = functools.partial(
        vit_fused_kernel,
        num_heads=NUM_HEADS, depth=DEPTH, bt=bt, n_pad=SEQ_PAD,
        block_eps=BLOCK_EPS, final_eps=FINAL_EPS)

    return pl.pallas_call(
        kernel,
        out_shape=jax.ShapeDtypeStruct((B, NUM_CLASSES), jnp.float32),
        grid=(B // bt,),
        in_specs=in_specs,
        out_specs=pl.BlockSpec((bt, NUM_CLASSES), lambda g: (g, 0)),
        compiler_params=pltpu.CompilerParams(
            dimension_semantics=("parallel",)),
    )(patches_pad, base_tiled, attn_bias, *weights)


# ------------------------------ param init -----------------------------------
def trunc_normal(key, shape, std=0.02):
    return jax.random.truncated_normal(key, -2.0, 2.0, shape, jnp.float32) * std


def init_params(key):
    keys = jax.random.split(key, 6 + DEPTH)
    params = {
        # patch embed (Conv2d weight flattened to (C*ph*pw, D)); bias zero
        "patch_w": trunc_normal(keys[0], (PATCH_DIM, EMBED_DIM)),
        "patch_b": jnp.zeros((1, EMBED_DIM), jnp.float32),
        "cls_token": trunc_normal(keys[1], (1, 1, EMBED_DIM)),
        "pos_embed": trunc_normal(keys[2], (1, SEQ, EMBED_DIM)),
        "norm_w": jnp.ones((1, EMBED_DIM), jnp.float32),
        "norm_b": jnp.zeros((1, EMBED_DIM), jnp.float32),
        "head_w": trunc_normal(keys[3], (EMBED_DIM, NUM_CLASSES)),
        "head_b": jnp.zeros((1, NUM_CLASSES), jnp.float32),
        "blocks": [],
    }
    for li in range(DEPTH):
        k = jax.random.split(keys[6 + li], 4)
        params["blocks"].append({
            "ln1_w": jnp.ones((1, EMBED_DIM), jnp.float32),
            "ln1_b": jnp.zeros((1, EMBED_DIM), jnp.float32),
            # qkv_bias=False (module default)
            "qkv_w": trunc_normal(k[0], (EMBED_DIM, 3 * EMBED_DIM)),
            "proj_w": trunc_normal(k[1], (EMBED_DIM, EMBED_DIM)),
            "proj_b": jnp.zeros((1, EMBED_DIM), jnp.float32),
            "ln2_w": jnp.ones((1, EMBED_DIM), jnp.float32),
            "ln2_b": jnp.zeros((1, EMBED_DIM), jnp.float32),
            "fc1_w": trunc_normal(k[2], (EMBED_DIM, MLP_HIDDEN)),
            "fc1_b": jnp.zeros((1, MLP_HIDDEN), jnp.float32),
            "fc2_w": trunc_normal(k[3], (MLP_HIDDEN, EMBED_DIM)),
            "fc2_b": jnp.zeros((1, EMBED_DIM), jnp.float32),
        })
    return params


# --------------------------------- main ---------------------------------------
if __name__ == "__main__":
    key = jax.random.PRNGKey(0)
    pkey, xkey = jax.random.split(key)
    params = init_params(pkey)
    x = jax.random.normal(xkey, (2, IN_CHANS, IMG_SIZE, IMG_SIZE), jnp.float32)

    # f32 kept end-to-end to match the PyTorch module's numerics.
    # TODO(synk): relprop / attention-gradient hooks / rollout attention are
    # explainability-only (not part of forward) and are not translated.
    logits = jax.jit(vit_forward)(x, params)
    logits = jax.block_until_ready(logits)

    assert logits.shape == (2, NUM_CLASSES), logits.shape
    assert bool(jnp.all(jnp.isfinite(logits)))
    print("KERNEL_OK")
</pallas_src>

<mosaic_0001>
module attributes {stable_mosaic.version = 11 : i64} {
  func.func @vit_fused_kernel(%arg0: i32, %arg1: memref<2x24x48xf32, #tpu.memory_space<vmem>>, %arg2: memref<48x32xf32, #tpu.memory_space<vmem>>, %arg3: memref<48x48xf32, #tpu.memory_space<vmem>>, %arg4: memref<48x32xf32, #tpu.memory_space<vmem>>, %arg5: memref<1x32xf32, #tpu.memory_space<vmem>>, %arg6: memref<1x32xf32, #tpu.memory_space<vmem>>, %arg7: memref<1x32xf32, #tpu.memory_space<vmem>>, %arg8: memref<32x96xf32, #tpu.memory_space<vmem>>, %arg9: memref<32x32xf32, #tpu.memory_space<vmem>>, %arg10: memref<1x32xf32, #tpu.memory_space<vmem>>, %arg11: memref<1x32xf32, #tpu.memory_space<vmem>>, %arg12: memref<1x32xf32, #tpu.memory_space<vmem>>, %arg13: memref<32x128xf32, #tpu.memory_space<vmem>>, %arg14: memref<1x128xf32, #tpu.memory_space<vmem>>, %arg15: memref<128x32xf32, #tpu.memory_space<vmem>>, %arg16: memref<1x32xf32, #tpu.memory_space<vmem>>, %arg17: memref<1x32xf32, #tpu.memory_space<vmem>>, %arg18: memref<1x32xf32, #tpu.memory_space<vmem>>, %arg19: memref<32x96xf32, #tpu.memory_space<vmem>>, %arg20: memref<32x32xf32, #tpu.memory_space<vmem>>, %arg21: memref<1x32xf32, #tpu.memory_space<vmem>>, %arg22: memref<1x32xf32, #tpu.memory_space<vmem>>, %arg23: memref<1x32xf32, #tpu.memory_space<vmem>>, %arg24: memref<32x128xf32, #tpu.memory_space<vmem>>, %arg25: memref<1x128xf32, #tpu.memory_space<vmem>>, %arg26: memref<128x32xf32, #tpu.memory_space<vmem>>, %arg27: memref<1x32xf32, #tpu.memory_space<vmem>>, %arg28: memref<1x32xf32, #tpu.memory_space<vmem>>, %arg29: memref<1x32xf32, #tpu.memory_space<vmem>>, %arg30: memref<32x10xf32, #tpu.memory_space<vmem>>, %arg31: memref<1x10xf32, #tpu.memory_space<vmem>>, %arg32: memref<2x10xf32, #tpu.memory_space<vmem>>) attributes {dimension_semantics = [#tpu.dimension_semantics<parallel>], iteration_bounds = array<i64: 1>, scalar_prefetch = 0 : i64, scratch_operands = 0 : i64, tpu.core_type = #tpu.core_type<tc>, window_params = [{transform_indices = @transform_0, window_bounds = array<i64: 2, 24, 48>}, {pipeline_mode = #tpu.pipeline_mode<synchronous>, transform_indices = @transform_1, window_bounds = array<i64: 48, 32>}, {pipeline_mode = #tpu.pipeline_mode<synchronous>, transform_indices = @transform_2, window_bounds = array<i64: 48, 48>}, {pipeline_mode = #tpu.pipeline_mode<synchronous>, transform_indices = @transform_3, window_bounds = array<i64: 48, 32>}, {pipeline_mode = #tpu.pipeline_mode<synchronous>, transform_indices = @transform_4, window_bounds = array<i64: 1, 32>}, {pipeline_mode = #tpu.pipeline_mode<synchronous>, transform_indices = @transform_5, window_bounds = array<i64: 1, 32>}, {pipeline_mode = #tpu.pipeline_mode<synchronous>, transform_indices = @transform_6, window_bounds = array<i64: 1, 32>}, {pipeline_mode = #tpu.pipeline_mode<synchronous>, transform_indices = @transform_7, window_bounds = array<i64: 32, 96>}, {pipeline_mode = #tpu.pipeline_mode<synchronous>, transform_indices = @transform_8, window_bounds = array<i64: 32, 32>}, {pipeline_mode = #tpu.pipeline_mode<synchronous>, transform_indices = @transform_9, window_bounds = array<i64: 1, 32>}, {pipeline_mode = #tpu.pipeline_mode<synchronous>, transform_indices = @transform_10, window_bounds = array<i64: 1, 32>}, {pipeline_mode = #tpu.pipeline_mode<synchronous>, transform_indices = @transform_11, window_bounds = array<i64: 1, 32>}, {pipeline_mode = #tpu.pipeline_mode<synchronous>, transform_indices = @transform_12, window_bounds = array<i64: 32, 128>}, {pipeline_mode = #tpu.pipeline_mode<synchronous>, transform_indices = @transform_13, window_bounds = array<i64: 1, 128>}, {pipeline_mode = #tpu.pipeline_mode<synchronous>, transform_indices = @transform_14, window_bounds = array<i64: 128, 32>}, {pipeline_mode = #tpu.pipeline_mode<synchronous>, transform_indices = @transform_15, window_bounds = array<i64: 1, 32>}, {pipeline_mode = #tpu.pipeline_mode<synchronous>, transform_indices = @transform_16, window_bounds = array<i64: 1, 32>}, {pipeline_mode = #tpu.pipeline_mode<synchronous>, transform_indices = @transform_17, window_bounds = array<i64: 1, 32>}, {pipeline_mode = #tpu.pipeline_mode<synchronous>, transform_indices = @transform_18, window_bounds = array<i64: 32, 96>}, {pipeline_mode = #tpu.pipeline_mode<synchronous>, transform_indices = @transform_19, window_bounds = array<i64: 32, 32>}, {pipeline_mode = #tpu.pipeline_mode<synchronous>, transform_indices = @transform_20, window_bounds = array<i64: 1, 32>}, {pipeline_mode = #tpu.pipeline_mode<synchronous>, transform_indices = @transform_21, window_bounds = array<i64: 1, 32>}, {pipeline_mode = #tpu.pipeline_mode<synchronous>, transform_indices = @transform_22, window_bounds = array<i64: 1, 32>}, {pipeline_mode = #tpu.pipeline_mode<synchronous>, transform_indices = @transform_23, window_bounds = array<i64: 32, 128>}, {pipeline_mode = #tpu.pipeline_mode<synchronous>, transform_indices = @transform_24, window_bounds = array<i64: 1, 128>}, {pipeline_mode = #tpu.pipeline_mode<synchronous>, transform_indices = @transform_25, window_bounds = array<i64: 128, 32>}, {pipeline_mode = #tpu.pipeline_mode<synchronous>, transform_indices = @transform_26, window_bounds = array<i64: 1, 32>}, {pipeline_mode = #tpu.pipeline_mode<synchronous>, transform_indices = @transform_27, window_bounds = array<i64: 1, 32>}, {pipeline_mode = #tpu.pipeline_mode<synchronous>, transform_indices = @transform_28, window_bounds = array<i64: 1, 32>}, {pipeline_mode = #tpu.pipeline_mode<synchronous>, transform_indices = @transform_29, window_bounds = array<i64: 32, 10>}, {pipeline_mode = #tpu.pipeline_mode<synchronous>, transform_indices = @transform_30, window_bounds = array<i64: 1, 10>}, {transform_indices = @transform_31, window_bounds = array<i64: 2, 10>}]} {
    %c0 = arith.constant 0 : index
    %c0_0 = arith.constant 0 : index
    %0 = vector.load %arg4[%c0, %c0_0] : memref<48x32xf32, #tpu.memory_space<vmem>>, vector<48x32xf32>
    %c0_1 = arith.constant 0 : index
    %c0_2 = arith.constant 0 : index
    %1 = vector.load %arg5[%c0_1, %c0_2] : memref<1x32xf32, #tpu.memory_space<vmem>>, vector<1x32xf32>
    %c0_3 = arith.constant 0 : index
    %c0_4 = arith.constant 0 : index
    %2 = vector.load %arg6[%c0_3, %c0_4] : memref<1x32xf32, #tpu.memory_space<vmem>>, vector<1x32xf32>
    %c0_5 = arith.constant 0 : index
    %c0_6 = arith.constant 0 : index
    %3 = vector.load %arg7[%c0_5, %c0_6] : memref<1x32xf32, #tpu.memory_space<vmem>>, vector<1x32xf32>
    %c0_7 = arith.constant 0 : index
    %c0_8 = arith.constant 0 : index
    %4 = vector.load %arg8[%c0_7, %c0_8] : memref<32x96xf32, #tpu.memory_space<vmem>>, vector<32x96xf32>
    %c0_9 = arith.constant 0 : index
    %c0_10 = arith.constant 0 : index
    %5 = vector.load %arg9[%c0_9, %c0_10] : memref<32x32xf32, #tpu.memory_space<vmem>>, vector<32x32xf32>
    %c0_11 = arith.constant 0 : index
    %c0_12 = arith.constant 0 : index
    %6 = vector.load %arg10[%c0_11, %c0_12] : memref<1x32xf32, #tpu.memory_space<vmem>>, vector<1x32xf32>
    %c0_13 = arith.constant 0 : index
    %c0_14 = arith.constant 0 : index
    %7 = vector.load %arg11[%c0_13, %c0_14] : memref<1x32xf32, #tpu.memory_space<vmem>>, vector<1x32xf32>
    %c0_15 = arith.constant 0 : index
    %c0_16 = arith.constant 0 : index
    %8 = vector.load %arg12[%c0_15, %c0_16] : memref<1x32xf32, #tpu.memory_space<vmem>>, vector<1x32xf32>
    %c0_17 = arith.constant 0 : index
    %c0_18 = arith.constant 0 : index
    %9 = vector.load %arg13[%c0_17, %c0_18] : memref<32x128xf32, #tpu.memory_space<vmem>>, vector<32x128xf32>
    %c0_19 = arith.constant 0 : index
    %c0_20 = arith.constant 0 : index
    %10 = vector.load %arg14[%c0_19, %c0_20] : memref<1x128xf32, #tpu.memory_space<vmem>>, vector<1x128xf32>
    %c0_21 = arith.constant 0 : index
    %c0_22 = arith.constant 0 : index
    %11 = vector.load %arg15[%c0_21, %c0_22] : memref<128x32xf32, #tpu.memory_space<vmem>>, vector<128x32xf32>
    %c0_23 = arith.constant 0 : index
    %c0_24 = arith.constant 0 : index
    %12 = vector.load %arg16[%c0_23, %c0_24] : memref<1x32xf32, #tpu.memory_space<vmem>>, vector<1x32xf32>
    %c0_25 = arith.constant 0 : index
    %c0_26 = arith.constant 0 : index
    %13 = vector.load %arg17[%c0_25, %c0_26] : memref<1x32xf32, #tpu.memory_space<vmem>>, vector<1x32xf32>
    %c0_27 = arith.constant 0 : index
    %c0_28 = arith.constant 0 : index
    %14 = vector.load %arg18[%c0_27, %c0_28] : memref<1x32xf32, #tpu.memory_space<vmem>>, vector<1x32xf32>
    %c0_29 = arith.constant 0 : index
    %c0_30 = arith.constant 0 : index
    %15 = vector.load %arg19[%c0_29, %c0_30] : memref<32x96xf32, #tpu.memory_space<vmem>>, vector<32x96xf32>
    %c0_31 = arith.constant 0 : index
    %c0_32 = arith.constant 0 : index
    %16 = vector.load %arg20[%c0_31, %c0_32] : memref<32x32xf32, #tpu.memory_space<vmem>>, vector<32x32xf32>
    %c0_33 = arith.constant 0 : index
    %c0_34 = arith.constant 0 : index
    %17 = vector.load %arg21[%c0_33, %c0_34] : memref<1x32xf32, #tpu.memory_space<vmem>>, vector<1x32xf32>
    %c0_35 = arith.constant 0 : index
    %c0_36 = arith.constant 0 : index
    %18 = vector.load %arg22[%c0_35, %c0_36] : memref<1x32xf32, #tpu.memory_space<vmem>>, vector<1x32xf32>
    %c0_37 = arith.constant 0 : index
    %c0_38 = arith.constant 0 : index
    %19 = vector.load %arg23[%c0_37, %c0_38] : memref<1x32xf32, #tpu.memory_space<vmem>>, vector<1x32xf32>
    %c0_39 = arith.constant 0 : index
    %c0_40 = arith.constant 0 : index
    %20 = vector.load %arg24[%c0_39, %c0_40] : memref<32x128xf32, #tpu.memory_space<vmem>>, vector<32x128xf32>
    %c0_41 = arith.constant 0 : index
    %c0_42 = arith.constant 0 : index
    %21 = vector.load %arg25[%c0_41, %c0_42] : memref<1x128xf32, #tpu.memory_space<vmem>>, vector<1x128xf32>
    %c0_43 = arith.constant 0 : index
    %c0_44 = arith.constant 0 : index
    %22 = vector.load %arg26[%c0_43, %c0_44] : memref<128x32xf32, #tpu.memory_space<vmem>>, vector<128x32xf32>
    %c0_45 = arith.constant 0 : index
    %c0_46 = arith.constant 0 : index
    %23 = vector.load %arg27[%c0_45, %c0_46] : memref<1x32xf32, #tpu.memory_space<vmem>>, vector<1x32xf32>
    %c0_47 = arith.constant 0 : index
    %c0_48 = arith.constant 0 : index
    %24 = vector.load %arg28[%c0_47, %c0_48] : memref<1x32xf32, #tpu.memory_space<vmem>>, vector<1x32xf32>
    %c0_49 = arith.constant 0 : index
    %c0_50 = arith.constant 0 : index
    %25 = vector.load %arg29[%c0_49, %c0_50] : memref<1x32xf32, #tpu.memory_space<vmem>>, vector<1x32xf32>
    %c0_51 = arith.constant 0 : index
    %c0_52 = arith.constant 0 : index
    %26 = vector.load %arg30[%c0_51, %c0_52] : memref<32x10xf32, #tpu.memory_space<vmem>>, vector<32x10xf32>
    %c0_53 = arith.constant 0 : index
    %c0_54 = arith.constant 0 : index
    %27 = vector.load %arg31[%c0_53, %c0_54] : memref<1x10xf32, #tpu.memory_space<vmem>>, vector<1x10xf32>
    %c0_55 = arith.constant 0 : index
    %c0_56 = arith.constant 0 : index
    %28 = vector.load %arg3[%c0_55, %c0_56] : memref<48x48xf32, #tpu.memory_space<vmem>>, vector<48x48xf32>
    %c0_57 = arith.constant 0 : index
    %c0_58 = arith.constant 0 : index
    %c0_59 = arith.constant 0 : index
    %29 = vector.load %arg1[%c0_57, %c0_58, %c0_59] : memref<2x24x48xf32, #tpu.memory_space<vmem>>, vector<2x24x48xf32>
    %30 = vector.shape_cast %29 : vector<2x24x48xf32> to vector<48x48xf32>
    %cst = arith.constant dense<0.000000e+00> : vector<48x32xf32>
    %31 = tpu.matmul %30, %0, %cst {dimension_numbers = #tpu.dot_dimension_numbers<[1], [0], [0], [1], [0, 0, 1, 1], [], []>} : vector<48x48xf32>, vector<48x32xf32>, vector<48x32xf32> -> vector<48x32xf32>
    %32 = vector.broadcast %1 : vector<1x32xf32> to vector<48x32xf32>
    %33 = arith.addf %31, %32 : vector<48x32xf32>
    %c0_60 = arith.constant 0 : index
    %c0_61 = arith.constant 0 : index
    %34 = vector.load %arg2[%c0_60, %c0_61] : memref<48x32xf32, #tpu.memory_space<vmem>>, vector<48x32xf32>
    %35 = arith.addf %33, %34 : vector<48x32xf32>
    %cst_62 = arith.constant dense<0.000000e+00> : vector<48xf32>
    %36 = vector.multi_reduction <add>, %35, %cst_62 [1] : vector<48x32xf32> to vector<48xf32>
    %37 = vector.shape_cast %36 : vector<48xf32> to vector<48x1xf32>
    %cst_63 = arith.constant 3.200000e+01 : f32
    %38 = vector.broadcast %cst_63 : f32 to vector<48x1xf32>
    %39 = arith.divf %37, %38 : vector<48x1xf32>
    %40 = vector.broadcast %39 : vector<48x1xf32> to vector<48x32xf32>
    %41 = arith.subf %35, %40 : vector<48x32xf32>
    %42 = arith.mulf %41, %41 : vector<48x32xf32>
    %cst_64 = arith.constant dense<0.000000e+00> : vector<48xf32>
    %43 = vector.multi_reduction <add>, %42, %cst_64 [1] : vector<48x32xf32> to vector<48xf32>
    %44 = vector.shape_cast %43 : vector<48xf32> to vector<48x1xf32>
    %cst_65 = arith.constant 3.200000e+01 : f32
    %45 = vector.broadcast %cst_65 : f32 to vector<48x1xf32>
    %46 = arith.divf %44, %45 : vector<48x1xf32>
    %47 = vector.broadcast %39 : vector<48x1xf32> to vector<48x32xf32>
    %48 = arith.subf %35, %47 : vector<48x32xf32>
    %cst_66 = arith.constant 9.99999997E-7 : f32
    %49 = vector.broadcast %cst_66 : f32 to vector<48x1xf32>
    %50 = arith.addf %46, %49 : vector<48x1xf32>
    %51 = math.rsqrt %50 : vector<48x1xf32>
    %52 = vector.broadcast %51 : vector<48x1xf32> to vector<48x32xf32>
    %53 = arith.mulf %48, %52 : vector<48x32xf32>
    %54 = vector.broadcast %2 : vector<1x32xf32> to vector<48x32xf32>
    %55 = arith.mulf %53, %54 : vector<48x32xf32>
    %56 = vector.broadcast %3 : vector<1x32xf32> to vector<48x32xf32>
    %57 = arith.addf %55, %56 : vector<48x32xf32>
    %cst_67 = arith.constant dense<0.000000e+00> : vector<48x96xf32>
    %58 = tpu.matmul %57, %4, %cst_67 {dimension_numbers = #tpu.dot_dimension_numbers<[1], [0], [0], [1], [0, 0, 1, 1], [], []>} : vector<48x32xf32>, vector<32x96xf32>, vector<48x96xf32> -> vector<48x96xf32>
    %59 = vector.extract_strided_slice %58 {offsets = [0, 0], sizes = [48, 8], strides = [1, 1]} : vector<48x96xf32> to vector<48x8xf32>
    %60 = vector.extract_strided_slice %58 {offsets = [0, 32], sizes = [48, 8], strides = [1, 1]} : vector<48x96xf32> to vector<48x8xf32>
    %61 = vector.extract_strided_slice %58 {offsets = [0, 64], sizes = [48, 8], strides = [1, 1]} : vector<48x96xf32> to vector<48x8xf32>
    %cst_68 = arith.constant dense<0.000000e+00> : vector<48x48xf32>
    %62 = tpu.matmul %59, %60, %cst_68 {dimension_numbers = #tpu.dot_dimension_numbers<[1], [1], [0], [0], [0, 0, 1, 0], [], []>} : vector<48x8xf32>, vector<48x8xf32>, vector<48x48xf32> -> vector<48x48xf32>
    %cst_69 = arith.constant 0.353553385 : f32
    %63 = vector.broadcast %cst_69 : f32 to vector<48x48xf32>
    %64 = arith.mulf %62, %63 : vector<48x48xf32>
    %65 = arith.addf %64, %28 : vector<48x48xf32>
    %cst_70 = arith.constant dense<0xFF800000> : vector<48xf32>
    %66 = vector.multi_reduction <maximumf>, %65, %cst_70 [1] : vector<48x48xf32> to vector<48xf32>
    %67 = vector.shape_cast %66 : vector<48xf32> to vector<48x1xf32>
    %68 = vector.broadcast %67 : vector<48x1xf32> to vector<48x48xf32>
    %69 = arith.subf %65, %68 : vector<48x48xf32>
    %70 = math.exp %69 : vector<48x48xf32>
    %cst_71 = arith.constant dense<0.000000e+00> : vector<48xf32>
    %71 = vector.multi_reduction <add>, %70, %cst_71 [1] : vector<48x48xf32> to vector<48xf32>
    %72 = vector.shape_cast %71 : vector<48xf32> to vector<48x1xf32>
    %73 = tpu.reciprocal %72 {approx = true} : vector<48x1xf32> -> vector<48x1xf32>
    %74 = vector.broadcast %73 : vector<48x1xf32> to vector<48x48xf32>
    %75 = arith.mulf %70, %74 : vector<48x48xf32>
    %cst_72 = arith.constant dense<0.000000e+00> : vector<48x8xf32>
    %76 = tpu.matmul %75, %61, %cst_72 {dimension_numbers = #tpu.dot_dimension_numbers<[1], [0], [0], [1], [0, 0, 1, 1], [], []>} : vector<48x48xf32>, vector<48x8xf32>, vector<48x8xf32> -> vector<48x8xf32>
    %77 = vector.extract_strided_slice %5 {offsets = [0, 0], sizes = [8, 32], strides = [1, 1]} : vector<32x32xf32> to vector<8x32xf32>
    %cst_73 = arith.constant dense<0.000000e+00> : vector<48x32xf32>
    %78 = tpu.matmul %76, %77, %cst_73 {dimension_numbers = #tpu.dot_dimension_numbers<[1], [0], [0], [1], [0, 0, 1, 1], [], []>} : vector<48x8xf32>, vector<8x32xf32>, vector<48x32xf32> -> vector<48x32xf32>
    %79 = vector.extract_strided_slice %58 {offsets = [0, 8], sizes = [48, 8], strides = [1, 1]} : vector<48x96xf32> to vector<48x8xf32>
    %80 = vector.extract_strided_slice %58 {offsets = [0, 40], sizes = [48, 8], strides = [1, 1]} : vector<48x96xf32> to vector<48x8xf32>
    %81 = vector.extract_strided_slice %58 {offsets = [0, 72], sizes = [48, 8], strides = [1, 1]} : vector<48x96xf32> to vector<48x8xf32>
    %cst_74 = arith.constant dense<0.000000e+00> : vector<48x48xf32>
    %82 = tpu.matmul %79, %80, %cst_74 {dimension_numbers = #tpu.dot_dimension_numbers<[1], [1], [0], [0], [0, 0, 1, 0], [], []>} : vector<48x8xf32>, vector<48x8xf32>, vector<48x48xf32> -> vector<48x48xf32>
    %cst_75 = arith.constant 0.353553385 : f32
    %83 = vector.broadcast %cst_75 : f32 to vector<48x48xf32>
    %84 = arith.mulf %82, %83 : vector<48x48xf32>
    %85 = arith.addf %84, %28 : vector<48x48xf32>
    %cst_76 = arith.constant dense<0xFF800000> : vector<48xf32>
    %86 = vector.multi_reduction <maximumf>, %85, %cst_76 [1] : vector<48x48xf32> to vector<48xf32>
    %87 = vector.shape_cast %86 : vector<48xf32> to vector<48x1xf32>
    %88 = vector.broadcast %87 : vector<48x1xf32> to vector<48x48xf32>
    %89 = arith.subf %85, %88 : vector<48x48xf32>
    %90 = math.exp %89 : vector<48x48xf32>
    %cst_77 = arith.constant dense<0.000000e+00> : vector<48xf32>
    %91 = vector.multi_reduction <add>, %90, %cst_77 [1] : vector<48x48xf32> to vector<48xf32>
    %92 = vector.shape_cast %91 : vector<48xf32> to vector<48x1xf32>
    %93 = tpu.reciprocal %92 {approx = true} : vector<48x1xf32> -> vector<48x1xf32>
    %94 = vector.broadcast %93 : vector<48x1xf32> to vector<48x48xf32>
    %95 = arith.mulf %90, %94 : vector<48x48xf32>
    %cst_78 = arith.constant dense<0.000000e+00> : vector<48x8xf32>
    %96 = tpu.matmul %95, %81, %cst_78 {dimension_numbers = #tpu.dot_dimension_numbers<[1], [0], [0], [1], [0, 0, 1, 1], [], []>} : vector<48x48xf32>, vector<48x8xf32>, vector<48x8xf32> -> vector<48x8xf32>
    %97 = vector.extract_strided_slice %5 {offsets = [8, 0], sizes = [8, 32], strides = [1, 1]} : vector<32x32xf32> to vector<8x32xf32>
    %cst_79 = arith.constant dense<0.000000e+00> : vector<48x32xf32>
    %98 = tpu.matmul %96, %97, %cst_79 {dimension_numbers = #tpu.dot_dimension_numbers<[1], [0], [0], [1], [0, 0, 1, 1], [], []>} : vector<48x8xf32>, vector<8x32xf32>, vector<48x32xf32> -> vector<48x32xf32>
    %99 = arith.addf %78, %98 : vector<48x32xf32>
    %100 = vector.extract_strided_slice %58 {offsets = [0, 16], sizes = [48, 8], strides = [1, 1]} : vector<48x96xf32> to vector<48x8xf32>
    %101 = vector.extract_strided_slice %58 {offsets = [0, 48], sizes = [48, 8], strides = [1, 1]} : vector<48x96xf32> to vector<48x8xf32>
    %102 = vector.extract_strided_slice %58 {offsets = [0, 80], sizes = [48, 8], strides = [1, 1]} : vector<48x96xf32> to vector<48x8xf32>
    %cst_80 = arith.constant dense<0.000000e+00> : vector<48x48xf32>
    %103 = tpu.matmul %100, %101, %cst_80 {dimension_numbers = #tpu.dot_dimension_numbers<[1], [1], [0], [0], [0, 0, 1, 0], [], []>} : vector<48x8xf32>, vector<48x8xf32>, vector<48x48xf32> -> vector<48x48xf32>
    %cst_81 = arith.constant 0.353553385 : f32
    %104 = vector.broadcast %cst_81 : f32 to vector<48x48xf32>
    %105 = arith.mulf %103, %104 : vector<48x48xf32>
    %106 = arith.addf %105, %28 : vector<48x48xf32>
    %cst_82 = arith.constant dense<0xFF800000> : vector<48xf32>
    %107 = vector.multi_reduction <maximumf>, %106, %cst_82 [1] : vector<48x48xf32> to vector<48xf32>
    %108 = vector.shape_cast %107 : vector<48xf32> to vector<48x1xf32>
    %109 = vector.broadcast %108 : vector<48x1xf32> to vector<48x48xf32>
    %110 = arith.subf %106, %109 : vector<48x48xf32>
    %111 = math.exp %110 : vector<48x48xf32>
    %cst_83 = arith.constant dense<0.000000e+00> : vector<48xf32>
    %112 = vector.multi_reduction <add>, %111, %cst_83 [1] : vector<48x48xf32> to vector<48xf32>
    %113 = vector.shape_cast %112 : vector<48xf32> to vector<48x1xf32>
    %114 = tpu.reciprocal %113 {approx = true} : vector<48x1xf32> -> vector<48x1xf32>
    %115 = vector.broadcast %114 : vector<48x1xf32> to vector<48x48xf32>
    %116 = arith.mulf %111, %115 : vector<48x48xf32>
    %cst_84 = arith.constant dense<0.000000e+00> : vector<48x8xf32>
    %117 = tpu.matmul %116, %102, %cst_84 {dimension_numbers = #tpu.dot_dimension_numbers<[1], [0], [0], [1], [0, 0, 1, 1], [], []>} : vector<48x48xf32>, vector<48x8xf32>, vector<48x8xf32> -> vector<48x8xf32>
    %118 = vector.extract_strided_slice %5 {offsets = [16, 0], sizes = [8, 32], strides = [1, 1]} : vector<32x32xf32> to vector<8x32xf32>
    %cst_85 = arith.constant dense<0.000000e+00> : vector<48x32xf32>
    %119 = tpu.matmul %117, %118, %cst_85 {dimension_numbers = #tpu.dot_dimension_numbers<[1], [0], [0], [1], [0, 0, 1, 1], [], []>} : vector<48x8xf32>, vector<8x32xf32>, vector<48x32xf32> -> vector<48x32xf32>
    %120 = arith.addf %99, %119 : vector<48x32xf32>
    %121 = vector.extract_strided_slice %58 {offsets = [0, 24], sizes = [48, 8], strides = [1, 1]} : vector<48x96xf32> to vector<48x8xf32>
    %122 = vector.extract_strided_slice %58 {offsets = [0, 56], sizes = [48, 8], strides = [1, 1]} : vector<48x96xf32> to vector<48x8xf32>
    %123 = vector.extract_strided_slice %58 {offsets = [0, 88], sizes = [48, 8], strides = [1, 1]} : vector<48x96xf32> to vector<48x8xf32>
    %cst_86 = arith.constant dense<0.000000e+00> : vector<48x48xf32>
    %124 = tpu.matmul %121, %122, %cst_86 {dimension_numbers = #tpu.dot_dimension_numbers<[1], [1], [0], [0], [0, 0, 1, 0], [], []>} : vector<48x8xf32>, vector<48x8xf32>, vector<48x48xf32> -> vector<48x48xf32>
    %cst_87 = arith.constant 0.353553385 : f32
    %125 = vector.broadcast %cst_87 : f32 to vector<48x48xf32>
    %126 = arith.mulf %124, %125 : vector<48x48xf32>
    %127 = arith.addf %126, %28 : vector<48x48xf32>
    %cst_88 = arith.constant dense<0xFF800000> : vector<48xf32>
    %128 = vector.multi_reduction <maximumf>, %127, %cst_88 [1] : vector<48x48xf32> to vector<48xf32>
    %129 = vector.shape_cast %128 : vector<48xf32> to vector<48x1xf32>
    %130 = vector.broadcast %129 : vector<48x1xf32> to vector<48x48xf32>
    %131 = arith.subf %127, %130 : vector<48x48xf32>
    %132 = math.exp %131 : vector<48x48xf32>
    %cst_89 = arith.constant dense<0.000000e+00> : vector<48xf32>
    %133 = vector.multi_reduction <add>, %132, %cst_89 [1] : vector<48x48xf32> to vector<48xf32>
    %134 = vector.shape_cast %133 : vector<48xf32> to vector<48x1xf32>
    %135 = tpu.reciprocal %134 {approx = true} : vector<48x1xf32> -> vector<48x1xf32>
    %136 = vector.broadcast %135 : vector<48x1xf32> to vector<48x48xf32>
    %137 = arith.mulf %132, %136 : vector<48x48xf32>
    %cst_90 = arith.constant dense<0.000000e+00> : vector<48x8xf32>
    %138 = tpu.matmul %137, %123, %cst_90 {dimension_numbers = #tpu.dot_dimension_numbers<[1], [0], [0], [1], [0, 0, 1, 1], [], []>} : vector<48x48xf32>, vector<48x8xf32>, vector<48x8xf32> -> vector<48x8xf32>
    %139 = vector.extract_strided_slice %5 {offsets = [24, 0], sizes = [8, 32], strides = [1, 1]} : vector<32x32xf32> to vector<8x32xf32>
    %cst_91 = arith.constant dense<0.000000e+00> : vector<48x32xf32>
    %140 = tpu.matmul %138, %139, %cst_91 {dimension_numbers = #tpu.dot_dimension_numbers<[1], [0], [0], [1], [0, 0, 1, 1], [], []>} : vector<48x8xf32>, vector<8x32xf32>, vector<48x32xf32> -> vector<48x32xf32>
    %141 = arith.addf %120, %140 : vector<48x32xf32>
    %142 = arith.addf %35, %141 : vector<48x32xf32>
    %143 = vector.broadcast %6 : vector<1x32xf32> to vector<48x32xf32>
    %144 = arith.addf %142, %143 : vector<48x32xf32>
    %cst_92 = arith.constant dense<0.000000e+00> : vector<48xf32>
    %145 = vector.multi_reduction <add>, %144, %cst_92 [1] : vector<48x32xf32> to vector<48xf32>
    %146 = vector.shape_cast %145 : vector<48xf32> to vector<48x1xf32>
    %cst_93 = arith.constant 3.200000e+01 : f32
    %147 = vector.broadcast %cst_93 : f32 to vector<48x1xf32>
    %148 = arith.divf %146, %147 : vector<48x1xf32>
    %149 = vector.broadcast %148 : vector<48x1xf32> to vector<48x32xf32>
    %150 = arith.subf %144, %149 : vector<48x32xf32>
    %151 = arith.mulf %150, %150 : vector<48x32xf32>
    %cst_94 = arith.constant dense<0.000000e+00> : vector<48xf32>
    %152 = vector.multi_reduction <add>, %151, %cst_94 [1] : vector<48x32xf32> to vector<48xf32>
    %153 = vector.shape_cast %152 : vector<48xf32> to vector<48x1xf32>
    %cst_95 = arith.constant 3.200000e+01 : f32
    %154 = vector.broadcast %cst_95 : f32 to vector<48x1xf32>
    %155 = arith.divf %153, %154 : vector<48x1xf32>
    %156 = vector.broadcast %148 : vector<48x1xf32> to vector<48x32xf32>
    %157 = arith.subf %144, %156 : vector<48x32xf32>
    %cst_96 = arith.constant 9.99999997E-7 : f32
    %158 = vector.broadcast %cst_96 : f32 to vector<48x1xf32>
    %159 = arith.addf %155, %158 : vector<48x1xf32>
    %160 = math.rsqrt %159 : vector<48x1xf32>
    %161 = vector.broadcast %160 : vector<48x1xf32> to vector<48x32xf32>
    %162 = arith.mulf %157, %161 : vector<48x32xf32>
    %163 = vector.broadcast %7 : vector<1x32xf32> to vector<48x32xf32>
    %164 = arith.mulf %162, %163 : vector<48x32xf32>
    %165 = vector.broadcast %8 : vector<1x32xf32> to vector<48x32xf32>
    %166 = arith.addf %164, %165 : vector<48x32xf32>
    %cst_97 = arith.constant dense<0.000000e+00> : vector<48x128xf32>
    %167 = tpu.matmul %166, %9, %cst_97 {dimension_numbers = #tpu.dot_dimension_numbers<[1], [0], [0], [1], [0, 0, 1, 1], [], []>} : vector<48x32xf32>, vector<32x128xf32>, vector<48x128xf32> -> vector<48x128xf32>
    %168 = vector.broadcast %10 : vector<1x128xf32> to vector<48x128xf32>
    %169 = arith.addf %167, %168 : vector<48x128xf32>
    %cst_98 = arith.constant 5.000000e-01 : f32
    %170 = vector.broadcast %cst_98 : f32 to vector<48x128xf32>
    %171 = arith.mulf %170, %169 : vector<48x128xf32>
    %cst_99 = arith.constant 0.707106769 : f32
    %172 = vector.broadcast %cst_99 : f32 to vector<48x128xf32>
    %173 = arith.mulf %169, %172 : vector<48x128xf32>
    %174 = math.erf %173 : vector<48x128xf32>
    %cst_100 = arith.constant 1.000000e+00 : f32
    %175 = vector.broadcast %cst_100 : f32 to vector<48x128xf32>
    %176 = arith.addf %175, %174 : vector<48x128xf32>
    %177 = arith.mulf %171, %176 : vector<48x128xf32>
    %cst_101 = arith.constant dense<0.000000e+00> : vector<48x32xf32>
    %178 = tpu.matmul %177, %11, %cst_101 {dimension_numbers = #tpu.dot_dimension_numbers<[1], [0], [0], [1], [0, 0, 1, 1], [], []>} : vector<48x128xf32>, vector<128x32xf32>, vector<48x32xf32> -> vector<48x32xf32>
    %179 = vector.broadcast %12 : vector<1x32xf32> to vector<48x32xf32>
    %180 = arith.addf %178, %179 : vector<48x32xf32>
    %181 = arith.addf %144, %180 : vector<48x32xf32>
    %cst_102 = arith.constant dense<0.000000e+00> : vector<48xf32>
    %182 = vector.multi_reduction <add>, %181, %cst_102 [1] : vector<48x32xf32> to vector<48xf32>
    %183 = vector.shape_cast %182 : vector<48xf32> to vector<48x1xf32>
    %cst_103 = arith.constant 3.200000e+01 : f32
    %184 = vector.broadcast %cst_103 : f32 to vector<48x1xf32>
    %185 = arith.divf %183, %184 : vector<48x1xf32>
    %186 = vector.broadcast %185 : vector<48x1xf32> to vector<48x32xf32>
    %187 = arith.subf %181, %186 : vector<48x32xf32>
    %188 = arith.mulf %187, %187 : vector<48x32xf32>
    %cst_104 = arith.constant dense<0.000000e+00> : vector<48xf32>
    %189 = vector.multi_reduction <add>, %188, %cst_104 [1] : vector<48x32xf32> to vector<48xf32>
    %190 = vector.shape_cast %189 : vector<48xf32> to vector<48x1xf32>
    %cst_105 = arith.constant 3.200000e+01 : f32
    %191 = vector.broadcast %cst_105 : f32 to vector<48x1xf32>
    %192 = arith.divf %190, %191 : vector<48x1xf32>
    %193 = vector.broadcast %185 : vector<48x1xf32> to vector<48x32xf32>
    %194 = arith.subf %181, %193 : vector<48x32xf32>
    %cst_106 = arith.constant 9.99999997E-7 : f32
    %195 = vector.broadcast %cst_106 : f32 to vector<48x1xf32>
    %196 = arith.addf %192, %195 : vector<48x1xf32>
    %197 = math.rsqrt %196 : vector<48x1xf32>
    %198 = vector.broadcast %197 : vector<48x1xf32> to vector<48x32xf32>
    %199 = arith.mulf %194, %198 : vector<48x32xf32>
    %200 = vector.broadcast %13 : vector<1x32xf32> to vector<48x32xf32>
    %201 = arith.mulf %199, %200 : vector<48x32xf32>
    %202 = vector.broadcast %14 : vector<1x32xf32> to vector<48x32xf32>
    %203 = arith.addf %201, %202 : vector<48x32xf32>
    %cst_107 = arith.constant dense<0.000000e+00> : vector<48x96xf32>
    %204 = tpu.matmul %203, %15, %cst_107 {dimension_numbers = #tpu.dot_dimension_numbers<[1], [0], [0], [1], [0, 0, 1, 1], [], []>} : vector<48x32xf32>, vector<32x96xf32>, vector<48x96xf32> -> vector<48x96xf32>
    %205 = vector.extract_strided_slice %204 {offsets = [0, 0], sizes = [48, 8], strides = [1, 1]} : vector<48x96xf32> to vector<48x8xf32>
    %206 = vector.extract_strided_slice %204 {offsets = [0, 32], sizes = [48, 8], strides = [1, 1]} : vector<48x96xf32> to vector<48x8xf32>
    %207 = vector.extract_strided_slice %204 {offsets = [0, 64], sizes = [48, 8], strides = [1, 1]} : vector<48x96xf32> to vector<48x8xf32>
    %cst_108 = arith.constant dense<0.000000e+00> : vector<48x48xf32>
    %208 = tpu.matmul %205, %206, %cst_108 {dimension_numbers = #tpu.dot_dimension_numbers<[1], [1], [0], [0], [0, 0, 1, 0], [], []>} : vector<48x8xf32>, vector<48x8xf32>, vector<48x48xf32> -> vector<48x48xf32>
    %cst_109 = arith.constant 0.353553385 : f32
    %209 = vector.broadcast %cst_109 : f32 to vector<48x48xf32>
    %210 = arith.mulf %208, %209 : vector<48x48xf32>
    %211 = arith.addf %210, %28 : vector<48x48xf32>
    %cst_110 = arith.constant dense<0xFF800000> : vector<48xf32>
    %212 = vector.multi_reduction <maximumf>, %211, %cst_110 [1] : vector<48x48xf32> to vector<48xf32>
    %213 = vector.shape_cast %212 : vector<48xf32> to vector<48x1xf32>
    %214 = vector.broadcast %213 : vector<48x1xf32> to vector<48x48xf32>
    %215 = arith.subf %211, %214 : vector<48x48xf32>
    %216 = math.exp %215 : vector<48x48xf32>
    %cst_111 = arith.constant dense<0.000000e+00> : vector<48xf32>
    %217 = vector.multi_reduction <add>, %216, %cst_111 [1] : vector<48x48xf32> to vector<48xf32>
    %218 = vector.shape_cast %217 : vector<48xf32> to vector<48x1xf32>
    %219 = tpu.reciprocal %218 {approx = true} : vector<48x1xf32> -> vector<48x1xf32>
    %220 = vector.broadcast %219 : vector<48x1xf32> to vector<48x48xf32>
    %221 = arith.mulf %216, %220 : vector<48x48xf32>
    %cst_112 = arith.constant dense<0.000000e+00> : vector<48x8xf32>
    %222 = tpu.matmul %221, %207, %cst_112 {dimension_numbers = #tpu.dot_dimension_numbers<[1], [0], [0], [1], [0, 0, 1, 1], [], []>} : vector<48x48xf32>, vector<48x8xf32>, vector<48x8xf32> -> vector<48x8xf32>
    %223 = vector.extract_strided_slice %16 {offsets = [0, 0], sizes = [8, 32], strides = [1, 1]} : vector<32x32xf32> to vector<8x32xf32>
    %cst_113 = arith.constant dense<0.000000e+00> : vector<48x32xf32>
    %224 = tpu.matmul %222, %223, %cst_113 {dimension_numbers = #tpu.dot_dimension_numbers<[1], [0], [0], [1], [0, 0, 1, 1], [], []>} : vector<48x8xf32>, vector<8x32xf32>, vector<48x32xf32> -> vector<48x32xf32>
    %225 = vector.extract_strided_slice %204 {offsets = [0, 8], sizes = [48, 8], strides = [1, 1]} : vector<48x96xf32> to vector<48x8xf32>
    %226 = vector.extract_strided_slice %204 {offsets = [0, 40], sizes = [48, 8], strides = [1, 1]} : vector<48x96xf32> to vector<48x8xf32>
    %227 = vector.extract_strided_slice %204 {offsets = [0, 72], sizes = [48, 8], strides = [1, 1]} : vector<48x96xf32> to vector<48x8xf32>
    %cst_114 = arith.constant dense<0.000000e+00> : vector<48x48xf32>
    %228 = tpu.matmul %225, %226, %cst_114 {dimension_numbers = #tpu.dot_dimension_numbers<[1], [1], [0], [0], [0, 0, 1, 0], [], []>} : vector<48x8xf32>, vector<48x8xf32>, vector<48x48xf32> -> vector<48x48xf32>
    %cst_115 = arith.constant 0.353553385 : f32
    %229 = vector.broadcast %cst_115 : f32 to vector<48x48xf32>
    %230 = arith.mulf %228, %229 : vector<48x48xf32>
    %231 = arith.addf %230, %28 : vector<48x48xf32>
    %cst_116 = arith.constant dense<0xFF800000> : vector<48xf32>
    %232 = vector.multi_reduction <maximumf>, %231, %cst_116 [1] : vector<48x48xf32> to vector<48xf32>
    %233 = vector.shape_cast %232 : vector<48xf32> to vector<48x1xf32>
    %234 = vector.broadcast %233 : vector<48x1xf32> to vector<48x48xf32>
    %235 = arith.subf %231, %234 : vector<48x48xf32>
    %236 = math.exp %235 : vector<48x48xf32>
    %cst_117 = arith.constant dense<0.000000e+00> : vector<48xf32>
    %237 = vector.multi_reduction <add>, %236, %cst_117 [1] : vector<48x48xf32> to vector<48xf32>
    %238 = vector.shape_cast %237 : vector<48xf32> to vector<48x1xf32>
    %239 = tpu.reciprocal %238 {approx = true} : vector<48x1xf32> -> vector<48x1xf32>
    %240 = vector.broadcast %239 : vector<48x1xf32> to vector<48x48xf32>
    %241 = arith.mulf %236, %240 : vector<48x48xf32>
    %cst_118 = arith.constant dense<0.000000e+00> : vector<48x8xf32>
    %242 = tpu.matmul %241, %227, %cst_118 {dimension_numbers = #tpu.dot_dimension_numbers<[1], [0], [0], [1], [0, 0, 1, 1], [], []>} : vector<48x48xf32>, vector<48x8xf32>, vector<48x8xf32> -> vector<48x8xf32>
    %243 = vector.extract_strided_slice %16 {offsets = [8, 0], sizes = [8, 32], strides = [1, 1]} : vector<32x32xf32> to vector<8x32xf32>
    %cst_119 = arith.constant dense<0.000000e+00> : vector<48x32xf32>
    %244 = tpu.matmul %242, %243, %cst_119 {dimension_numbers = #tpu.dot_dimension_numbers<[1], [0], [0], [1], [0, 0, 1, 1], [], []>} : vector<48x8xf32>, vector<8x32xf32>, vector<48x32xf32> -> vector<48x32xf32>
    %245 = arith.addf %224, %244 : vector<48x32xf32>
    %246 = vector.extract_strided_slice %204 {offsets = [0, 16], sizes = [48, 8], strides = [1, 1]} : vector<48x96xf32> to vector<48x8xf32>
    %247 = vector.extract_strided_slice %204 {offsets = [0, 48], sizes = [48, 8], strides = [1, 1]} : vector<48x96xf32> to vector<48x8xf32>
    %248 = vector.extract_strided_slice %204 {offsets = [0, 80], sizes = [48, 8], strides = [1, 1]} : vector<48x96xf32> to vector<48x8xf32>
    %cst_120 = arith.constant dense<0.000000e+00> : vector<48x48xf32>
    %249 = tpu.matmul %246, %247, %cst_120 {dimension_numbers = #tpu.dot_dimension_numbers<[1], [1], [0], [0], [0, 0, 1, 0], [], []>} : vector<48x8xf32>, vector<48x8xf32>, vector<48x48xf32> -> vector<48x48xf32>
    %cst_121 = arith.constant 0.353553385 : f32
    %250 = vector.broadcast %cst_121 : f32 to vector<48x48xf32>
    %251 = arith.mulf %249, %250 : vector<48x48xf32>
    %252 = arith.addf %251, %28 : vector<48x48xf32>
    %cst_122 = arith.constant dense<0xFF800000> : vector<48xf32>
    %253 = vector.multi_reduction <maximumf>, %252, %cst_122 [1] : vector<48x48xf32> to vector<48xf32>
    %254 = vector.shape_cast %253 : vector<48xf32> to vector<48x1xf32>
    %255 = vector.broadcast %254 : vector<48x1xf32> to vector<48x48xf32>
    %256 = arith.subf %252, %255 : vector<48x48xf32>
    %257 = math.exp %256 : vector<48x48xf32>
    %cst_123 = arith.constant dense<0.000000e+00> : vector<48xf32>
    %258 = vector.multi_reduction <add>, %257, %cst_123 [1] : vector<48x48xf32> to vector<48xf32>
    %259 = vector.shape_cast %258 : vector<48xf32> to vector<48x1xf32>
    %260 = tpu.reciprocal %259 {approx = true} : vector<48x1xf32> -> vector<48x1xf32>
    %261 = vector.broadcast %260 : vector<48x1xf32> to vector<48x48xf32>
    %262 = arith.mulf %257, %261 : vector<48x48xf32>
    %cst_124 = arith.constant dense<0.000000e+00> : vector<48x8xf32>
    %263 = tpu.matmul %262, %248, %cst_124 {dimension_numbers = #tpu.dot_dimension_numbers<[1], [0], [0], [1], [0, 0, 1, 1], [], []>} : vector<48x48xf32>, vector<48x8xf32>, vector<48x8xf32> -> vector<48x8xf32>
    %264 = vector.extract_strided_slice %16 {offsets = [16, 0], sizes = [8, 32], strides = [1, 1]} : vector<32x32xf32> to vector<8x32xf32>
    %cst_125 = arith.constant dense<0.000000e+00> : vector<48x32xf32>
    %265 = tpu.matmul %263, %264, %cst_125 {dimension_numbers = #tpu.dot_dimension_numbers<[1], [0], [0], [1], [0, 0, 1, 1], [], []>} : vector<48x8xf32>, vector<8x32xf32>, vector<48x32xf32> -> vector<48x32xf32>
    %266 = arith.addf %245, %265 : vector<48x32xf32>
    %267 = vector.extract_strided_slice %204 {offsets = [0, 24], sizes = [48, 8], strides = [1, 1]} : vector<48x96xf32> to vector<48x8xf32>
    %268 = vector.extract_strided_slice %204 {offsets = [0, 56], sizes = [48, 8], strides = [1, 1]} : vector<48x96xf32> to vector<48x8xf32>
    %269 = vector.extract_strided_slice %204 {offsets = [0, 88], sizes = [48, 8], strides = [1, 1]} : vector<48x96xf32> to vector<48x8xf32>
    %cst_126 = arith.constant dense<0.000000e+00> : vector<48x48xf32>
    %270 = tpu.matmul %267, %268, %cst_126 {dimension_numbers = #tpu.dot_dimension_numbers<[1], [1], [0], [0], [0, 0, 1, 0], [], []>} : vector<48x8xf32>, vector<48x8xf32>, vector<48x48xf32> -> vector<48x48xf32>
    %cst_127 = arith.constant 0.353553385 : f32
    %271 = vector.broadcast %cst_127 : f32 to vector<48x48xf32>
    %272 = arith.mulf %270, %271 : vector<48x48xf32>
    %273 = arith.addf %272, %28 : vector<48x48xf32>
    %cst_128 = arith.constant dense<0xFF800000> : vector<48xf32>
    %274 = vector.multi_reduction <maximumf>, %273, %cst_128 [1] : vector<48x48xf32> to vector<48xf32>
    %275 = vector.shape_cast %274 : vector<48xf32> to vector<48x1xf32>
    %276 = vector.broadcast %275 : vector<48x1xf32> to vector<48x48xf32>
    %277 = arith.subf %273, %276 : vector<48x48xf32>
    %278 = math.exp %277 : vector<48x48xf32>
    %cst_129 = arith.constant dense<0.000000e+00> : vector<48xf32>
    %279 = vector.multi_reduction <add>, %278, %cst_129 [1] : vector<48x48xf32> to vector<48xf32>
    %280 = vector.shape_cast %279 : vector<48xf32> to vector<48x1xf32>
    %281 = tpu.reciprocal %280 {approx = true} : vector<48x1xf32> -> vector<48x1xf32>
    %282 = vector.broadcast %281 : vector<48x1xf32> to vector<48x48xf32>
    %283 = arith.mulf %278, %282 : vector<48x48xf32>
    %cst_130 = arith.constant dense<0.000000e+00> : vector<48x8xf32>
    %284 = tpu.matmul %283, %269, %cst_130 {dimension_numbers = #tpu.dot_dimension_numbers<[1], [0], [0], [1], [0, 0, 1, 1], [], []>} : vector<48x48xf32>, vector<48x8xf32>, vector<48x8xf32> -> vector<48x8xf32>
    %285 = vector.extract_strided_slice %16 {offsets = [24, 0], sizes = [8, 32], strides = [1, 1]} : vector<32x32xf32> to vector<8x32xf32>
    %cst_131 = arith.constant dense<0.000000e+00> : vector<48x32xf32>
    %286 = tpu.matmul %284, %285, %cst_131 {dimension_numbers = #tpu.dot_dimension_numbers<[1], [0], [0], [1], [0, 0, 1, 1], [], []>} : vector<48x8xf32>, vector<8x32xf32>, vector<48x32xf32> -> vector<48x32xf32>
    %287 = arith.addf %266, %286 : vector<48x32xf32>
    %288 = arith.addf %181, %287 : vector<48x32xf32>
    %289 = vector.broadcast %17 : vector<1x32xf32> to vector<48x32xf32>
    %290 = arith.addf %288, %289 : vector<48x32xf32>
    %cst_132 = arith.constant dense<0.000000e+00> : vector<48xf32>
    %291 = vector.multi_reduction <add>, %290, %cst_132 [1] : vector<48x32xf32> to vector<48xf32>
    %292 = vector.shape_cast %291 : vector<48xf32> to vector<48x1xf32>
    %cst_133 = arith.constant 3.200000e+01 : f32
    %293 = vector.broadcast %cst_133 : f32 to vector<48x1xf32>
    %294 = arith.divf %292, %293 : vector<48x1xf32>
    %295 = vector.broadcast %294 : vector<48x1xf32> to vector<48x32xf32>
    %296 = arith.subf %290, %295 : vector<48x32xf32>
    %297 = arith.mulf %296, %296 : vector<48x32xf32>
    %cst_134 = arith.constant dense<0.000000e+00> : vector<48xf32>
    %298 = vector.multi_reduction <add>, %297, %cst_134 [1] : vector<48x32xf32> to vector<48xf32>
    %299 = vector.shape_cast %298 : vector<48xf32> to vector<48x1xf32>
    %cst_135 = arith.constant 3.200000e+01 : f32
    %300 = vector.broadcast %cst_135 : f32 to vector<48x1xf32>
    %301 = arith.divf %299, %300 : vector<48x1xf32>
    %302 = vector.broadcast %294 : vector<48x1xf32> to vector<48x32xf32>
    %303 = arith.subf %290, %302 : vector<48x32xf32>
    %cst_136 = arith.constant 9.99999997E-7 : f32
    %304 = vector.broadcast %cst_136 : f32 to vector<48x1xf32>
    %305 = arith.addf %301, %304 : vector<48x1xf32>
    %306 = math.rsqrt %305 : vector<48x1xf32>
    %307 = vector.broadcast %306 : vector<48x1xf32> to vector<48x32xf32>
    %308 = arith.mulf %303, %307 : vector<48x32xf32>
    %309 = vector.broadcast %18 : vector<1x32xf32> to vector<48x32xf32>
    %310 = arith.mulf %308, %309 : vector<48x32xf32>
    %311 = vector.broadcast %19 : vector<1x32xf32> to vector<48x32xf32>
    %312 = arith.addf %310, %311 : vector<48x32xf32>
    %cst_137 = arith.constant dense<0.000000e+00> : vector<48x128xf32>
    %313 = tpu.matmul %312, %20, %cst_137 {dimension_numbers = #tpu.dot_dimension_numbers<[1], [0], [0], [1], [0, 0, 1, 1], [], []>} : vector<48x32xf32>, vector<32x128xf32>, vector<48x128xf32> -> vector<48x128xf32>
    %314 = vector.broadcast %21 : vector<1x128xf32> to vector<48x128xf32>
    %315 = arith.addf %313, %314 : vector<48x128xf32>
    %cst_138 = arith.constant 5.000000e-01 : f32
    %316 = vector.broadcast %cst_138 : f32 to vector<48x128xf32>
    %317 = arith.mulf %316, %315 : vector<48x128xf32>
    %cst_139 = arith.constant 0.707106769 : f32
    %318 = vector.broadcast %cst_139 : f32 to vector<48x128xf32>
    %319 = arith.mulf %315, %318 : vector<48x128xf32>
    %320 = math.erf %319 : vector<48x128xf32>
    %cst_140 = arith.constant 1.000000e+00 : f32
    %321 = vector.broadcast %cst_140 : f32 to vector<48x128xf32>
    %322 = arith.addf %321, %320 : vector<48x128xf32>
    %323 = arith.mulf %317, %322 : vector<48x128xf32>
    %cst_141 = arith.constant dense<0.000000e+00> : vector<48x32xf32>
    %324 = tpu.matmul %323, %22, %cst_141 {dimension_numbers = #tpu.dot_dimension_numbers<[1], [0], [0], [1], [0, 0, 1, 1], [], []>} : vector<48x128xf32>, vector<128x32xf32>, vector<48x32xf32> -> vector<48x32xf32>
    %325 = vector.broadcast %23 : vector<1x32xf32> to vector<48x32xf32>
    %326 = arith.addf %324, %325 : vector<48x32xf32>
    %327 = arith.addf %290, %326 : vector<48x32xf32>
    %cst_142 = arith.constant dense<0.000000e+00> : vector<48xf32>
    %328 = vector.multi_reduction <add>, %327, %cst_142 [1] : vector<48x32xf32> to vector<48xf32>
    %329 = vector.shape_cast %328 : vector<48xf32> to vector<48x1xf32>
    %cst_143 = arith.constant 3.200000e+01 : f32
    %330 = vector.broadcast %cst_143 : f32 to vector<48x1xf32>
    %331 = arith.divf %329, %330 : vector<48x1xf32>
    %332 = vector.broadcast %331 : vector<48x1xf32> to vector<48x32xf32>
    %333 = arith.subf %327, %332 : vector<48x32xf32>
    %334 = arith.mulf %333, %333 : vector<48x32xf32>
    %cst_144 = arith.constant dense<0.000000e+00> : vector<48xf32>
    %335 = vector.multi_reduction <add>, %334, %cst_144 [1] : vector<48x32xf32> to vector<48xf32>
    %336 = vector.shape_cast %335 : vector<48xf32> to vector<48x1xf32>
    %cst_145 = arith.constant 3.200000e+01 : f32
    %337 = vector.broadcast %cst_145 : f32 to vector<48x1xf32>
    %338 = arith.divf %336, %337 : vector<48x1xf32>
    %339 = vector.broadcast %331 : vector<48x1xf32> to vector<48x32xf32>
    %340 = arith.subf %327, %339 : vector<48x32xf32>
    %cst_146 = arith.constant 9.99999974E-6 : f32
    %341 = vector.broadcast %cst_146 : f32 to vector<48x1xf32>
    %342 = arith.addf %338, %341 : vector<48x1xf32>
    %343 = math.rsqrt %342 : vector<48x1xf32>
    %344 = vector.broadcast %343 : vector<48x1xf32> to vector<48x32xf32>
    %345 = arith.mulf %340, %344 : vector<48x32xf32>
    %346 = vector.broadcast %24 : vector<1x32xf32> to vector<48x32xf32>
    %347 = arith.mulf %345, %346 : vector<48x32xf32>
    %348 = vector.broadcast %25 : vector<1x32xf32> to vector<48x32xf32>
    %349 = arith.addf %347, %348 : vector<48x32xf32>
    %cst_147 = arith.constant dense<0.000000e+00> : vector<48x10xf32>
    %350 = tpu.matmul %349, %26, %cst_147 {dimension_numbers = #tpu.dot_dimension_numbers<[1], [0], [0], [1], [0, 0, 1, 1], [], []>} : vector<48x32xf32>, vector<32x10xf32>, vector<48x10xf32> -> vector<48x10xf32>
    %351 = vector.broadcast %27 : vector<1x10xf32> to vector<48x10xf32>
    %352 = arith.addf %350, %351 : vector<48x10xf32>
    %353 = vector.extract_strided_slice %352 {offsets = [0, 0], sizes = [1, 10], strides = [1, 1]} : vector<48x10xf32> to vector<1x10xf32>
    %c0_148 = arith.constant 0 : index
    %c0_149 = arith.constant 0 : index
    %354 = vector.load %arg32[%c0_148, %c0_149] : memref<2x10xf32, #tpu.memory_space<vmem>>, vector<1x10xf32>
    tpu.vector_store %arg32[%c0_148, %c0_149], %353 {strides = array<i32>} : memref<2x10xf32, #tpu.memory_space<vmem>>, vector<1x10xf32>,
    %355 = vector.extract_strided_slice %352 {offsets = [24, 0], sizes = [1, 10], strides = [1, 1]} : vector<48x10xf32> to vector<1x10xf32>
    %c1 = arith.constant 1 : index
    %c0_150 = arith.constant 0 : index
    %356 = vector.load %arg32[%c1, %c0_150] : memref<2x10xf32, #tpu.memory_space<vmem>>, vector<1x10xf32>
    tpu.vector_store %arg32[%c1, %c0_150], %355 {strides = array<i32>} : memref<2x10xf32, #tpu.memory_space<vmem>>, vector<1x10xf32>,
    return
  }
  func.func @transform_0(%arg0: i32) -> (i32, i32, i32) {
    %c0_i32 = arith.constant 0 : i32
    %c0_i32_0 = arith.constant 0 : i32
    %c0_i32_1 = arith.constant 0 : i32
    return %arg0, %c0_i32, %c0_i32_0 : i32, i32, i32
  }
  func.func @transform_1(%arg0: i32) -> (i32, i32) {
    %c0_i32 = arith.constant 0 : i32
    %c0_i32_0 = arith.constant 0 : i32
    %c0_i32_1 = arith.constant 0 : i32
    return %c0_i32, %c0_i32_0 : i32, i32
  }
  func.func @transform_2(%arg0: i32) -> (i32, i32) {
    %c0_i32 = arith.constant 0 : i32
    %c0_i32_0 = arith.constant 0 : i32
    %c0_i32_1 = arith.constant 0 : i32
    return %c0_i32, %c0_i32_0 : i32, i32
  }
  func.func @transform_3(%arg0: i32) -> (i32, i32) {
    %c0_i32 = arith.constant 0 : i32
    %c0_i32_0 = arith.constant 0 : i32
    %c0_i32_1 = arith.constant 0 : i32
    return %c0_i32, %c0_i32_0 : i32, i32
  }
  func.func @transform_4(%arg0: i32) -> (i32, i32) {
    %c0_i32 = arith.constant 0 : i32
    %c0_i32_0 = arith.constant 0 : i32
    %c0_i32_1 = arith.constant 0 : i32
    return %c0_i32, %c0_i32_0 : i32, i32
  }
  func.func @transform_5(%arg0: i32) -> (i32, i32) {
    %c0_i32 = arith.constant 0 : i32
    %c0_i32_0 = arith.constant 0 : i32
    %c0_i32_1 = arith.constant 0 : i32
    return %c0_i32, %c0_i32_0 : i32, i32
  }
  func.func @transform_6(%arg0: i32) -> (i32, i32) {
    %c0_i32 = arith.constant 0 : i32
    %c0_i32_0 = arith.constant 0 : i32
    %c0_i32_1 = arith.constant 0 : i32
    return %c0_i32, %c0_i32_0 : i32, i32
  }
  func.func @transform_7(%arg0: i32) -> (i32, i32) {
    %c0_i32 = arith.constant 0 : i32
    %c0_i32_0 = arith.constant 0 : i32
    %c0_i32_1 = arith.constant 0 : i32
    return %c0_i32, %c0_i32_0 : i32, i32
  }
  func.func @transform_8(%arg0: i32) -> (i32, i32) {
    %c0_i32 = arith.constant 0 : i32
    %c0_i32_0 = arith.constant 0 : i32
    %c0_i32_1 = arith.constant 0 : i32
    return %c0_i32, %c0_i32_0 : i32, i32
  }
  func.func @transform_9(%arg0: i32) -> (i32, i32) {
    %c0_i32 = arith.constant 0 : i32
    %c0_i32_0 = arith.constant 0 : i32
    %c0_i32_1 = arith.constant 0 : i32
    return %c0_i32, %c0_i32_0 : i32, i32
  }
  func.func @transform_10(%arg0: i32) -> (i32, i32) {
    %c0_i32 = arith.constant 0 : i32
    %c0_i32_0 = arith.constant 0 : i32
    %c0_i32_1 = arith.constant 0 : i32
    return %c0_i32, %c0_i32_0 : i32, i32
  }
  func.func @transform_11(%arg0: i32) -> (i32, i32) {
    %c0_i32 = arith.constant 0 : i32
    %c0_i32_0 = arith.constant 0 : i32
    %c0_i32_1 = arith.constant 0 : i32
    return %c0_i32, %c0_i32_0 : i32, i32
  }
  func.func @transform_12(%arg0: i32) -> (i32, i32) {
    %c0_i32 = arith.constant 0 : i32
    %c0_i32_0 = arith.constant 0 : i32
    %c0_i32_1 = arith.constant 0 : i32
    return %c0_i32, %c0_i32_0 : i32, i32
  }
  func.func @transform_13(%arg0: i32) -> (i32, i32) {
    %c0_i32 = arith.constant 0 : i32
    %c0_i32_0 = arith.constant 0 : i32
    %c0_i32_1 = arith.constant 0 : i32
    return %c0_i32, %c0_i32_0 : i32, i32
  }
  func.func @transform_14(%arg0: i32) -> (i32, i32) {
    %c0_i32 = arith.constant 0 : i32
    %c0_i32_0 = arith.constant 0 : i32
    %c0_i32_1 = arith.constant 0 : i32
    return %c0_i32, %c0_i32_0 : i32, i32
  }
  func.func @transform_15(%arg0: i32) -> (i32, i32) {
    %c0_i32 = arith.constant 0 : i32
    %c0_i32_0 = arith.constant 0 : i32
    %c0_i32_1 = arith.constant 0 : i32
    return %c0_i32, %c0_i32_0 : i32, i32
  }
  func.func @transform_16(%arg0: i32) -> (i32, i32) {
    %c0_i32 = arith.constant 0 : i32
    %c0_i32_0 = arith.constant 0 : i32
    %c0_i32_1 = arith.constant 0 : i32
    return %c0_i32, %c0_i32_0 : i32, i32
  }
  func.func @transform_17(%arg0: i32) -> (i32, i32) {
    %c0_i32 = arith.constant 0 : i32
    %c0_i32_0 = arith.constant 0 : i32
    %c0_i32_1 = arith.constant 0 : i32
    return %c0_i32, %c0_i32_0 : i32, i32
  }
  func.func @transform_18(%arg0: i32) -> (i32, i32) {
    %c0_i32 = arith.constant 0 : i32
    %c0_i32_0 = arith.constant 0 : i32
    %c0_i32_1 = arith.constant 0 : i32
    return %c0_i32, %c0_i32_0 : i32, i32
  }
  func.func @transform_19(%arg0: i32) -> (i32, i32) {
    %c0_i32 = arith.constant 0 : i32
    %c0_i32_0 = arith.constant 0 : i32
    %c0_i32_1 = arith.constant 0 : i32
    return %c0_i32, %c0_i32_0 : i32, i32
  }
  func.func @transform_20(%arg0: i32) -> (i32, i32) {
    %c0_i32 = arith.constant 0 : i32
    %c0_i32_0 = arith.constant 0 : i32
    %c0_i32_1 = arith.constant 0 : i32
    return %c0_i32, %c0_i32_0 : i32, i32
  }
  func.func @transform_21(%arg0: i32) -> (i32, i32) {
    %c0_i32 = arith.constant 0 : i32
    %c0_i32_0 = arith.constant 0 : i32
    %c0_i32_1 = arith.constant 0 : i32
    return %c0_i32, %c0_i32_0 : i32, i32
  }
  func.func @transform_22(%arg0: i32) -> (i32, i32) {
    %c0_i32 = arith.constant 0 : i32
    %c0_i32_0 = arith.constant 0 : i32
    %c0_i32_1 = arith.constant 0 : i32
    return %c0_i32, %c0_i32_0 : i32, i32
  }
  func.func @transform_23(%arg0: i32) -> (i32, i32) {
    %c0_i32 = arith.constant 0 : i32
    %c0_i32_0 = arith.constant 0 : i32
    %c0_i32_1 = arith.constant 0 : i32
    return %c0_i32, %c0_i32_0 : i32, i32
  }
  func.func @transform_24(%arg0: i32) -> (i32, i32) {
    %c0_i32 = arith.constant 0 : i32
    %c0_i32_0 = arith.constant 0 : i32
    %c0_i32_1 = arith.constant 0 : i32
    return %c0_i32, %c0_i32_0 : i32, i32
  }
  func.func @transform_25(%arg0: i32) -> (i32, i32) {
    %c0_i32 = arith.constant 0 : i32
    %c0_i32_0 = arith.constant 0 : i32
    %c0_i32_1 = arith.constant 0 : i32
    return %c0_i32, %c0_i32_0 : i32, i32
  }
  func.func @transform_26(%arg0: i32) -> (i32, i32) {
    %c0_i32 = arith.constant 0 : i32
    %c0_i32_0 = arith.constant 0 : i32
    %c0_i32_1 = arith.constant 0 : i32
    return %c0_i32, %c0_i32_0 : i32, i32
  }
  func.func @transform_27(%arg0: i32) -> (i32, i32) {
    %c0_i32 = arith.constant 0 : i32
    %c0_i32_0 = arith.constant 0 : i32
    %c0_i32_1 = arith.constant 0 : i32
    return %c0_i32, %c0_i32_0 : i32, i32
  }
  func.func @transform_28(%arg0: i32) -> (i32, i32) {
    %c0_i32 = arith.constant 0 : i32
    %c0_i32_0 = arith.constant 0 : i32
    %c0_i32_1 = arith.constant 0 : i32
    return %c0_i32, %c0_i32_0 : i32, i32
  }
  func.func @transform_29(%arg0: i32) -> (i32, i32) {
    %c0_i32 = arith.constant 0 : i32
    %c0_i32_0 = arith.constant 0 : i32
    %c0_i32_1 = arith.constant 0 : i32
    return %c0_i32, %c0_i32_0 : i32, i32
  }
  func.func @transform_30(%arg0: i32) -> (i32, i32) {
    %c0_i32 = arith.constant 0 : i32
    %c0_i32_0 = arith.constant 0 : i32
    %c0_i32_1 = arith.constant 0 : i32
    return %c0_i32, %c0_i32_0 : i32, i32
  }
  func.func @transform_31(%arg0: i32) -> (i32, i32) {
    %c0_i32 = arith.constant 0 : i32
    %c0_i32_0 = arith.constant 0 : i32
    return %arg0, %c0_i32 : i32, i32
  }
}

</mosaic_0001>

<llo_original>
// kernel: vit_forward.1
$region0: #{vit_forward.1}
  #allocation0 [shape = 'u32[]', space=smem, size = 0x4, offset = 0x4, fixed_abs, tag = 'smem constant byte address 0x4 - core index']
  #allocation1 [shape = 'u32[144,128]{1,0:T(1,128)}', space=vmem, size = 0x12000, scoped, tag = 'internal scratch']
  %s0 = inlined_call_operand.smem [shape: u32[32], index: -1, kind: input, shape index: {}]
  %s1 = sld [smem:[%s0]]
  %s2 = scalar_lea.smem %s0, 1
  %s3 = sld [smem:[%s2]]
  %s4 = scalar_lea.smem %s0, 2
  %s5 = sld [smem:[%s4]]
  %s6 = scalar_lea.smem %s0, 3
  %s7 = sld [smem:[%s6]]
  %s8 = scalar_lea.smem %s0, 4
  %s9 = sld [smem:[%s8]]
  %s10 = scalar_lea.smem %s0, 5
  %s11 = sld [smem:[%s10]]
  %s12 = scalar_lea.smem %s0, 6
  %s13 = sld [smem:[%s12]]
  %s14 = scalar_lea.smem %s0, 7
  %s15 = sld [smem:[%s14]]
  %s16 = scalar_lea.smem %s0, 8
  %s17 = sld [smem:[%s16]]
  %s18 = scalar_lea.smem %s0, 9
  %s19 = sld [smem:[%s18]]
  %s20 = scalar_lea.smem %s0, 10
  %s21 = sld [smem:[%s20]]
  %s22 = scalar_lea.smem %s0, 11
  %s23 = sld [smem:[%s22]]
  %s24 = scalar_lea.smem %s0, 12
  %s25 = sld [smem:[%s24]]
  %s26 = scalar_lea.smem %s0, 13
  %s27 = sld [smem:[%s26]]
  %s28 = scalar_lea.smem %s0, 14
  %s29 = sld [smem:[%s28]]
  %s30 = scalar_lea.smem %s0, 15
  %s31 = sld [smem:[%s30]]
  %s32 = scalar_lea.smem %s0, 16
  %s33 = sld [smem:[%s32]]
  %s34 = scalar_lea.smem %s0, 17
  %s35 = sld [smem:[%s34]]
  %s36 = scalar_lea.smem %s0, 18
  %s37 = sld [smem:[%s36]]
  %s38 = scalar_lea.smem %s0, 19
  %s39 = sld [smem:[%s38]]
  %s40 = scalar_lea.smem %s0, 20
  %s41 = sld [smem:[%s40]]
  %s42 = scalar_lea.smem %s0, 21
  %s43 = sld [smem:[%s42]]
  %s44 = scalar_lea.smem %s0, 22
  %s45 = sld [smem:[%s44]]
  %s46 = scalar_lea.smem %s0, 23
  %s47 = sld [smem:[%s46]]
  %s48 = scalar_lea.smem %s0, 24
  %s49 = sld [smem:[%s48]]
  %s50 = scalar_lea.smem %s0, 25
  %s51 = sld [smem:[%s50]]
  %s52 = scalar_lea.smem %s0, 26
  %s53 = sld [smem:[%s52]]
  %s54 = scalar_lea.smem %s0, 27
  %s55 = sld [smem:[%s54]]
  %s56 = scalar_lea.smem %s0, 28
  %s57 = sld [smem:[%s56]]
  %s58 = scalar_lea.smem %s0, 29
  %s59 = sld [smem:[%s58]]
  %s60 = scalar_lea.smem %s0, 30
  %s61 = sld [smem:[%s60]]
  %s62 = scalar_lea.smem %s0, 31
  %s63 = sld [smem:[%s62]]
  %s64 = sld [smem:[#allocation0]]
  $region134: #{vit_forward.1} parent=0
    _
  %s66 = ssub.s32 1, %s64
  %s67 = scalar_select 0, %s66, %s64
  $region1: #{vit_forward.1} parent=0
    #allocation2 [shape = 'u8[1024]{0}', space=vmem, size = 0x400, scoped, tag = 'output window, operand 0, single buffered']
    #allocation3 [shape = 's32[1]{0}', space=sflag, size = 0x4, scoped, tag = 'scoped memory for vit_forward.1']
    %68 = vsyncpa [#allocation3], 0
    // Predicated region
    $region2: #{vit_forward.1} parent=1 // pred_check
      _
    $region3: #{vit_forward.1} parent=1 // pred_check_branch
      %70 = sbr.rel (0) target = $region5
    $region4: #{vit_forward.1} parent=1 // pred_region
      _
    $region5: #{vit_forward.1} parent=1 // pred_fallthru
      _
    // Predicated region
    $region6: #{vit_forward.1} parent=1 // pred_check
      _
    $region7: #{vit_forward.1} parent=1 // pred_check_branch
      %72 = sbr.rel (0) target = $region9
    $region8: #{vit_forward.1} parent=1 // pred_region
      _
    $region9: #{vit_forward.1} parent=1 // pred_fallthru
      _
    // Predicated region
    $region10: #{vit_forward.1} parent=1 // pred_check
      _
    $region11: #{vit_forward.1} parent=1 // pred_check_branch
      %74 = sbr.rel (0) target = $region13
    $region12: #{vit_forward.1} parent=1 // pred_region
      _
    $region13: #{vit_forward.1} parent=1 // pred_fallthru
      _
    // Predicated region
    $region14: #{vit_forward.1} parent=1 // pred_check
      _
    $region15: #{vit_forward.1} parent=1 // pred_check_branch
      %76 = sbr.rel (0) target = $region17
    $region16: #{vit_forward.1} parent=1 // pred_region
      _
    $region17: #{vit_forward.1} parent=1 // pred_fallthru
      _
    // Predicated region
    $region18: #{vit_forward.1} parent=1 // pred_check
      _
    $region19: #{vit_forward.1} parent=1 // pred_check_branch
      %78 = sbr.rel (0) target = $region21
    $region20: #{vit_forward.1} parent=1 // pred_region
      _
    $region21: #{vit_forward.1} parent=1 // pred_fallthru
      _
    // Predicated region
    $region22: #{vit_forward.1} parent=1 // pred_check
      _
    $region23: #{vit_forward.1} parent=1 // pred_check_branch
      %80 = sbr.rel (0) target = $region25
    $region24: #{vit_forward.1} parent=1 // pred_region
      _
    $region25: #{vit_forward.1} parent=1 // pred_fallthru
      _
    // Predicated region
    $region26: #{vit_forward.1} parent=1 // pred_check
      _
    $region27: #{vit_forward.1} parent=1 // pred_check_branch
      %82 = sbr.rel (0) target = $region29
    $region28: #{vit_forward.1} parent=1 // pred_region
      _
    $region29: #{vit_forward.1} parent=1 // pred_fallthru
      _
    // Predicated region
    $region30: #{vit_forward.1} parent=1 // pred_check
      _
    $region31: #{vit_forward.1} parent=1 // pred_check_branch
      %84 = sbr.rel (0) target = $region33
    $region32: #{vit_forward.1} parent=1 // pred_region
      _
    $region33: #{vit_forward.1} parent=1 // pred_fallthru
      _
    // Predicated region
    $region34: #{vit_forward.1} parent=1 // pred_check
      _
    $region35: #{vit_forward.1} parent=1 // pred_check_branch
      %86 = sbr.rel (0) target = $region37
    $region36: #{vit_forward.1} parent=1 // pred_region
      _
    $region37: #{vit_forward.1} parent=1 // pred_fallthru
      _
    // Predicated region
    $region38: #{vit_forward.1} parent=1 // pred_check
      _
    $region39: #{vit_forward.1} parent=1 // pred_check_branch
      %88 = sbr.rel (0) target = $region41
    $region40: #{vit_forward.1} parent=1 // pred_region
      _
    $region41: #{vit_forward.1} parent=1 // pred_fallthru
      _
    // Predicated region
    $region42: #{vit_forward.1} parent=1 // pred_check
      _
    $region43: #{vit_forward.1} parent=1 // pred_check_branch
      %90 = sbr.rel (0) target = $region45
    $region44: #{vit_forward.1} parent=1 // pred_region
      _
    $region45: #{vit_forward.1} parent=1 // pred_fallthru
      _
    // Predicated region
    $region46: #{vit_forward.1} parent=1 // pred_check
      _
    $region47: #{vit_forward.1} parent=1 // pred_check_branch
      %92 = sbr.rel (0) target = $region49
    $region48: #{vit_forward.1} parent=1 // pred_region
      _
    $region49: #{vit_forward.1} parent=1 // pred_fallthru
      _
    // Predicated region
    $region50: #{vit_forward.1} parent=1 // pred_check
      _
    $region51: #{vit_forward.1} parent=1 // pred_check_branch
      %94 = sbr.rel (0) target = $region53
    $region52: #{vit_forward.1} parent=1 // pred_region
      _
    $region53: #{vit_forward.1} parent=1 // pred_fallthru
      _
    // Predicated region
    $region54: #{vit_forward.1} parent=1 // pred_check
      _
    $region55: #{vit_forward.1} parent=1 // pred_check_branch
      %96 = sbr.rel (0) target = $region57
    $region56: #{vit_forward.1} parent=1 // pred_region
      _
    $region57: #{vit_forward.1} parent=1 // pred_fallthru
      _
    // Predicated region
    $region58: #{vit_forward.1} parent=1 // pred_check
      _
    $region59: #{vit_forward.1} parent=1 // pred_check_branch
      %98 = sbr.rel (0) target = $region61
    $region60: #{vit_forward.1} parent=1 // pred_region
      _
    $region61: #{vit_forward.1} parent=1 // pred_fallthru
      _
    // Predicated region
    $region62: #{vit_forward.1} parent=1 // pred_check
      _
    $region63: #{vit_forward.1} parent=1 // pred_check_branch
      %100 = sbr.rel (0) target = $region65
    $region64: #{vit_forward.1} parent=1 // pred_region
      _
    $region65: #{vit_forward.1} parent=1 // pred_fallthru
      _
    // Predicated region
    $region66: #{vit_forward.1} parent=1 // pred_check
      _
    $region67: #{vit_forward.1} parent=1 // pred_check_branch
      %102 = sbr.rel (0) target = $region69
    $region68: #{vit_forward.1} parent=1 // pred_region
      _
    $region69: #{vit_forward.1} parent=1 // pred_fallthru
      _
    // Predicated region
    $region70: #{vit_forward.1} parent=1 // pred_check
      _
    $region71: #{vit_forward.1} parent=1 // pred_check_branch
      %104 = sbr.rel (0) target = $region73
    $region72: #{vit_forward.1} parent=1 // pred_region
      _
    $region73: #{vit_forward.1} parent=1 // pred_fallthru
      _
    // Predicated region
    $region74: #{vit_forward.1} parent=1 // pred_check
      _
    $region75: #{vit_forward.1} parent=1 // pred_check_branch
      %106 = sbr.rel (0) target = $region77
    $region76: #{vit_forward.1} parent=1 // pred_region
      _
    $region77: #{vit_forward.1} parent=1 // pred_fallthru
      _
    // Predicated region
    $region78: #{vit_forward.1} parent=1 // pred_check
      _
    $region79: #{vit_forward.1} parent=1 // pred_check_branch
      %108 = sbr.rel (0) target = $region81
    $region80: #{vit_forward.1} parent=1 // pred_region
      _
    $region81: #{vit_forward.1} parent=1 // pred_fallthru
      _
    // Predicated region
    $region82: #{vit_forward.1} parent=1 // pred_check
      _
    $region83: #{vit_forward.1} parent=1 // pred_check_branch
      %110 = sbr.rel (0) target = $region85
    $region84: #{vit_forward.1} parent=1 // pred_region
      _
    $region85: #{vit_forward.1} parent=1 // pred_fallthru
      _
    // Predicated region
    $region86: #{vit_forward.1} parent=1 // pred_check
      _
    $region87: #{vit_forward.1} parent=1 // pred_check_branch
      %112 = sbr.rel (0) target = $region89
    $region88: #{vit_forward.1} parent=1 // pred_region
      _
    $region89: #{vit_forward.1} parent=1 // pred_fallthru
      _
    // Predicated region
    $region90: #{vit_forward.1} parent=1 // pred_check
      _
    $region91: #{vit_forward.1} parent=1 // pred_check_branch
      %114 = sbr.rel (0) target = $region93
    $region92: #{vit_forward.1} parent=1 // pred_region
      _
    $region93: #{vit_forward.1} parent=1 // pred_fallthru
      _
    // Predicated region
    $region94: #{vit_forward.1} parent=1 // pred_check
      _
    $region95: #{vit_forward.1} parent=1 // pred_check_branch
      %116 = sbr.rel (0) target = $region97
    $region96: #{vit_forward.1} parent=1 // pred_region
      _
    $region97: #{vit_forward.1} parent=1 // pred_fallthru
      _
    // Predicated region
    $region98: #{vit_forward.1} parent=1 // pred_check
      _
    $region99: #{vit_forward.1} parent=1 // pred_check_branch
      %118 = sbr.rel (0) target = $region101
    $region100: #{vit_forward.1} parent=1 // pred_region
      _
    $region101: #{vit_forward.1} parent=1 // pred_fallthru
      _
    // Predicated region
    $region102: #{vit_forward.1} parent=1 // pred_check
      _
    $region103: #{vit_forward.1} parent=1 // pred_check_branch
      %120 = sbr.rel (0) target = $region105
    $region104: #{vit_forward.1} parent=1 // pred_region
      _
    $region105: #{vit_forward.1} parent=1 // pred_fallthru
      _
    // Predicated region
    $region106: #{vit_forward.1} parent=1 // pred_check
      _
    $region107: #{vit_forward.1} parent=1 // pred_check_branch
      %122 = sbr.rel (0) target = $region109
    $region108: #{vit_forward.1} parent=1 // pred_region
      _
    $region109: #{vit_forward.1} parent=1 // pred_fallthru
      _
    // Predicated region
    $region110: #{vit_forward.1} parent=1 // pred_check
      _
    $region111: #{vit_forward.1} parent=1 // pred_check_branch
      %124 = sbr.rel (0) target = $region113
    $region112: #{vit_forward.1} parent=1 // pred_region
      _
    $region113: #{vit_forward.1} parent=1 // pred_fallthru
      _
    // Predicated region
    $region114: #{vit_forward.1} parent=1 // pred_check
      _
    $region115: #{vit_forward.1} parent=1 // pred_check_branch
      %126 = sbr.rel (0) target = $region117
    $region116: #{vit_forward.1} parent=1 // pred_region
      _
    $region117: #{vit_forward.1} parent=1 // pred_fallthru
      _
    // Predicated region
    $region118: #{vit_forward.1} parent=1 // pred_check
      _
    $region119: #{vit_forward.1} parent=1 // pred_check_branch
      %128 = sbr.rel (0) target = $region121
    $region120: #{vit_forward.1} parent=1 // pred_region
      _
    $region121: #{vit_forward.1} parent=1 // pred_fallthru
      _
    // Predicated region
    $region122: #{vit_forward.1} parent=1 // pred_check
      _
    $region123: #{vit_forward.1} parent=1 // pred_check_branch
      %130 = sbr.rel (0) target = $region125
    $region124: #{vit_forward.1} parent=1 // pred_region
      _
    $region125: #{vit_forward.1} parent=1 // pred_fallthru
      _
    %v131 = vld [vmem:[%s7] sm:$0xff]
    %v132 = vld [vmem:[%s7 + $0x8] sm:$0xff]
    %v133 = vld [vmem:[%s7 + $0x10] sm:$0xff]
    %v134 = vld [vmem:[%s7 + $0x18] sm:$0xff]
    %v135 = vld [vmem:[%s7 + $0x20] sm:$0xff]
    %v136 = vld [vmem:[%s7 + $0x28] sm:$0xff]
    %v137 = vld [vmem:[%s9] sm:$0x1]
    %v138 = vld [vmem:[%s11] sm:$0x1]
    %v139 = vld [vmem:[%s13] sm:$0x1]
    %v140 = vld [vmem:[%s15] sm:$0xff]
    %v141 = vld [vmem:[%s15 + $0x8] sm:$0xff]
    %v142 = vld [vmem:[%s15 + $0x10] sm:$0xff]
    %v143 = vld [vmem:[%s15 + $0x18] sm:$0xff]
    %v144 = vld [vmem:[%s17] sm:$0xff]
    %v145 = vld [vmem:[%s17 + $0x8] sm:$0xff]
    %v146 = vld [vmem:[%s17 + $0x10] sm:$0xff]
    %v147 = vld [vmem:[%s17 + $0x18] sm:$0xff]
    %v148 = vld [vmem:[%s19] sm:$0x1]
    %v149 = vld [vmem:[%s21] sm:$0x1]
    %v150 = vld [vmem:[%s23] sm:$0x1]
    %v151 = vld [vmem:[%s25] sm:$0xff]
    %v152 = vld [vmem:[%s25 + $0x8] sm:$0xff]
    %v153 = vld [vmem:[%s25 + $0x10] sm:$0xff]
    %v154 = vld [vmem:[%s25 + $0x18] sm:$0xff]
    %v155 = vld [vmem:[%s27] sm:$0x1]
    %v156 = vld [vmem:[%s29] sm:$0xff]
    %v157 = vld [vmem:[%s29 + $0x8] sm:$0xff]
    %v158 = vld [vmem:[%s29 + $0x10] sm:$0xff]
    %v159 = vld [vmem:[%s29 + $0x18] sm:$0xff]
    %v160 = vld [vmem:[%s29 + $0x20] sm:$0xff]
    %v161 = vld [vmem:[%s29 + $0x28] sm:$0xff]
    %v162 = vld [vmem:[%s29 + $0x30] sm:$0xff]
    %v163 = vld [vmem:[%s29 + $0x38] sm:$0xff]
    %v164 = vld [vmem:[%s29 + $0x40] sm:$0xff]
    %v165 = vld [vmem:[%s29 + $0x48] sm:$0xff]
    %v166 = vld [vmem:[%s29 + $0x50] sm:$0xff]
    %v167 = vld [vmem:[%s29 + $0x58] sm:$0xff]
    %v168 = vld [vmem:[%s29 + $0x60] sm:$0xff]
    %v169 = vld [vmem:[%s29 + $0x68] sm:$0xff]
    %v170 = vld [vmem:[%s29 + $0x70] sm:$0xff]
    %v171 = vld [vmem:[%s29 + $0x78] sm:$0xff]
    %v172 = vld [vmem:[%s31] sm:$0x1]
    %v173 = vld [vmem:[%s33] sm:$0x1]
    %v174 = vld [vmem:[%s35] sm:$0x1]
    %v175 = vld [vmem:[%s37] sm:$0xff]
    %v176 = vld [vmem:[%s37 + $0x8] sm:$0xff]
    %v177 = vld [vmem:[%s37 + $0x10] sm:$0xff]
    %v178 = vld [vmem:[%s37 + $0x18] sm:$0xff]
    %v179 = vld [vmem:[%s39] sm:$0xff]
    %v180 = vld [vmem:[%s39 + $0x8] sm:$0xff]
    %v181 = vld [vmem:[%s39 + $0x10] sm:$0xff]
    %v182 = vld [vmem:[%s39 + $0x18] sm:$0xff]
    %v183 = vld [vmem:[%s41] sm:$0x1]
    %v184 = vld [vmem:[%s43] sm:$0x1]
    %v185 = vld [vmem:[%s45] sm:$0x1]
    %v186 = vld [vmem:[%s47] sm:$0xff]
    %v187 = vld [vmem:[%s47 + $0x8] sm:$0xff]
    %v188 = vld [vmem:[%s47 + $0x10] sm:$0xff]
    %v189 = vld [vmem:[%s47 + $0x18] sm:$0xff]
    %v190 = vld [vmem:[%s49] sm:$0x1]
    %v191 = vld [vmem:[%s51] sm:$0xff]
    %v192 = vld [vmem:[%s51 + $0x8] sm:$0xff]
    %v193 = vld [vmem:[%s51 + $0x10] sm:$0xff]
    %v194 = vld [vmem:[%s51 + $0x18] sm:$0xff]
    %v195 = vld [vmem:[%s51 + $0x20] sm:$0xff]
    %v196 = vld [vmem:[%s51 + $0x28] sm:$0xff]
    %v197 = vld [vmem:[%s51 + $0x30] sm:$0xff]
    %v198 = vld [vmem:[%s51 + $0x38] sm:$0xff]
    %v199 = vld [vmem:[%s51 + $0x40] sm:$0xff]
    %v200 = vld [vmem:[%s51 + $0x48] sm:$0xff]
    %v201 = vld [vmem:[%s51 + $0x50] sm:$0xff]
    %v202 = vld [vmem:[%s51 + $0x58] sm:$0xff]
    %v203 = vld [vmem:[%s51 + $0x60] sm:$0xff]
    %v204 = vld [vmem:[%s51 + $0x68] sm:$0xff]
    %v205 = vld [vmem:[%s51 + $0x70] sm:$0xff]
    %v206 = vld [vmem:[%s51 + $0x78] sm:$0xff]
    %v207 = vld [vmem:[%s53] sm:$0x1]
    %v208 = vld [vmem:[%s55] sm:$0x1]
    %v209 = vld [vmem:[%s57] sm:$0x1]
    %v210 = vld [vmem:[%s59] sm:$0xff]
    %v211 = vld [vmem:[%s59 + $0x8] sm:$0xff]
    %v212 = vld [vmem:[%s59 + $0x10] sm:$0xff]
    %v213 = vld [vmem:[%s59 + $0x18] sm:$0xff]
    %v214 = vld [vmem:[%s61] sm:$0x1]
    %v215 = vld [vmem:[%s5] sm:$0xff]
    %v216 = vld [vmem:[%s5 + $0x8] sm:$0xff]
    %v217 = vld [vmem:[%s5 + $0x10] sm:$0xff]
    %v218 = vld [vmem:[%s5 + $0x18] sm:$0xff]
    %v219 = vld [vmem:[%s5 + $0x20] sm:$0xff]
    %v220 = vld [vmem:[%s5 + $0x28] sm:$0xff]
    %v221 = vld [vmem:[%s1] sm:$0xff]
    %v222 = vld [vmem:[%s1 + $0x8] sm:$0xff]
    %v223 = vld [vmem:[%s1 + $0x10] sm:$0xff]
    %v224 = vld [vmem:[%s1 + $0x18] sm:$0xff]
    %v225 = vld [vmem:[%s1 + $0x20] sm:$0xff]
    %v226 = vld [vmem:[%s1 + $0x28] sm:$0xff]
    %v228 = vlaneseq
    %v229 = vshrl.u32 %v228, 7
    %v230 = vsub.s32 0, %v229
    %v231 = vrot.slane %v137, %v230
    %vm233 = vcmask 392192
    %v235 = vsel %vm233, %v221, 0
    %v238 = vsel %vm233, %v222, 0
    %v241 = vsel %vm233, %v223, 0
    %v244 = vsel %vm233, %v224, 0
    %v247 = vsel %vm233, %v225, 0
    %v250 = vsel %vm233, %v226, 0
    %252 = vmatprep.subr.mxu0 0.0
    %253 = vmatpush1.msra.mxu0 %v131
    %254 = vmatprep.subr.mxu0 0.0
    %255 = vmatpush1.msra.mxu0 %v132
    %256 = vmatprep.subr.mxu0 0.0
    %257 = vmatpush1.msra.mxu0 %v133
    %258 = vmatprep.subr.mxu0 0.0
    %259 = vmatpush1.msra.mxu0 %v134
    %260 = vmatprep.subr.mxu0 0.0
    %261 = vmatpush1.msra.mxu0 %v135
    %262 = vmatprep.subr.mxu0 0.0
    %263 = vmatpush1.msra.mxu0 %v136
    %264 = vmatprep.subr.mxu0 0.0
    %265 = vmatpush1.msra.mxu0 0.0
    %266 = vmatprep.subr.mxu0 0.0
    %267 = vmatpush1.msra.mxu0 0.0
    %268 = vmatprep.subr.mxu0 0.0
    %269 = vmatpush1.msra.mxu0 0.0
    %270 = vmatprep.subr.mxu0 0.0
    %271 = vmatpush1.msra.mxu0 0.0
    %272 = vmatprep.subr.mxu0 0.0
    %273 = vmatpush1.msra.mxu0 0.0
    %274 = vmatprep.subr.mxu0 0.0
    %275 = vmatpush1.msra.mxu0 0.0
    %276 = vmatprep.subr.mxu0 0.0
    %277 = vmatpush1.msra.mxu0 0.0
    %278 = vmatprep.subr.mxu0 0.0
    %279 = vmatpush1.msra.mxu0 0.0
    %280 = vmatprep.subr.mxu0 0.0
    %281 = vmatpush1.msra.mxu0 0.0
    %282 = vmatprep.subr.mxu0 0.0
    %283 = vmatpush1.msra.mxu0 0.0
    %284 = vmatprep.subr.mxu0 0.0
    %285 = vmatpush1.msra.mxu0 0.0
    %286 = vmatprep.subr.mxu0 0.0
    %287 = vmatpush1.msra.mxu0 0.0
    %288 = vmatprep.subr.mxu0 0.0
    %289 = vmatpush1.msra.mxu0 0.0
    %290 = vmatprep.subr.mxu0 0.0
    %291 = vmatpush1.msra.mxu0 0.0
    %292 = vmatprep.subr.mxu0 0.0
    %293 = vmatpush1.msra.mxu0 0.0
    %294 = vmatprep.subr.mxu0 0.0
    %295 = vmatpush1.msra.mxu0 0.0
    %296 = vmatprep.subr.mxu0 0.0
    %297 = vmatpush1.msra.mxu0 0.0
    %298 = vmatprep.subr.mxu0 0.0
    %299 = vmatpush1.msra.mxu0 0.0
    %300 = vmatprep.subr.mxu0 0.0
    %301 = vmatpush1.msra.mxu0 0.0
    %302 = vmatprep.subr.mxu0 0.0
    %303 = vmatpush1.msra.mxu0 0.0
    %304 = vmatprep.subr.mxu0 0.0
    %305 = vmatpush1.msra.mxu0 0.0
    %306 = vmatprep.subr.mxu0 0.0
    %307 = vmatpush1.msra.mxu0 0.0
    %308 = vmatprep.subr.mxu0 0.0
    %309 = vmatpush1.msra.mxu0 0.0
    %310 = vmatprep.subr.mxu0 0.0
    %311 = vmatpush1.msra.mxu0 0.0
    %312 = vmatprep.subr.mxu0 0.0
    %313 = vmatpush1.msra.mxu0 0.0
    %314 = vmatprep.subr.mxu0 0.0
    %315 = vmatpush1.msra.mxu0 0.0
    %316 = vmatprep.mubr.f32.mxu0 0.0
    %317 = vmatmul.mubr.f32.gmra.mrb[0].mxu0 %v235
    %v318 = vpop.f32.mrb[0].mxu0
    %v319 = vadd.f32 %v231, %v318
    %v320 = vpop.f32.mrb[0].mxu0
    %321 = vmatprep.mubr.f32.mxu0 0.0
    %322 = vmatmul.mubr.f32.gmra.mrb[0].mxu0 %v238
    %v323 = vpop.f32.mrb[0].mxu0
    %v324 = vadd.f32 %v231, %v323
    %v325 = vpop.f32.mrb[0].mxu0
    %326 = vmatprep.mubr.f32.mxu0 0.0
    %327 = vmatmul.mubr.f32.gmra.mrb[0].mxu0 %v241
    %v328 = vpop.f32.mrb[0].mxu0
    %v329 = vadd.f32 %v231, %v328
    %v330 = vpop.f32.mrb[0].mxu0
    %331 = vmatprep.mubr.f32.mxu0 0.0
    %332 = vmatmul.mubr.f32.gmra.mrb[0].mxu0 %v244
    %v333 = vpop.f32.mrb[0].mxu0
    %v334 = vadd.f32 %v231, %v333
    %v335 = vpop.f32.mrb[0].mxu0
    %336 = vmatprep.mubr.f32.mxu0 0.0
    %337 = vmatmul.mubr.f32.gmra.mrb[0].mxu0 %v247
    %v338 = vpop.f32.mrb[0].mxu0
    %v339 = vadd.f32 %v231, %v338
    %v340 = vpop.f32.mrb[0].mxu0
    %341 = vmatprep.mubr.f32.mxu0 0.0
    %342 = vmatmul.mubr.f32.gmra.mrb[0].mxu0 %v250
    %v343 = vpop.f32.mrb[0].mxu0
    %v344 = vadd.f32 %v231, %v343
    %v345 = vpop.f32.mrb[0].mxu0
    %346 = vdwg.mxu0
    %v347 = vld [vmem:[%s3] sm:$0xff]
    %v348 = vld [vmem:[%s3 + $0x8] sm:$0xff]
    %v349 = vld [vmem:[%s3 + $0x10] sm:$0xff]
    %v350 = vld [vmem:[%s3 + $0x18] sm:$0xff]
    %v351 = vld [vmem:[%s3 + $0x20] sm:$0xff]
    %v352 = vld [vmem:[%s3 + $0x28] sm:$0xff]
    %v353 = vadd.f32 %v319, %v347
    %v354 = vadd.f32 %v324, %v348
    %v355 = vadd.f32 %v329, %v349
    %v356 = vadd.f32 %v334, %v350
    %v357 = vadd.f32 %v339, %v351
    %v358 = vadd.f32 %v344, %v352
    %vm359 = vcmask 261120
    %v360 = vsel %vm359, %v353, 0.0
    %361 = vadd.xlane.f32.xlu0 %v360
    %v362 = vpop.xlane.xlu0 %361
    %v363 = vsel %vm359, %v354, 0.0
    %364 = vadd.xlane.f32.xlu0 %v363
    %v365 = vpop.xlane.xlu0 %364
    %v366 = vsel %vm359, %v355, 0.0
    %367 = vadd.xlane.f32.xlu0 %v366
    %v368 = vpop.xlane.xlu0 %367
    %v369 = vsel %vm359, %v356, 0.0
    %370 = vadd.xlane.f32.xlu0 %v369
    %v371 = vpop.xlane.xlu0 %370
    %v372 = vsel %vm359, %v357, 0.0
    %373 = vadd.xlane.f32.xlu0 %v372
    %v374 = vpop.xlane.xlu0 %373
    %v375 = vsel %vm359, %v358, 0.0
    %376 = vadd.xlane.f32.xlu0 %v375
    %v377 = vpop.xlane.xlu0 %376
    %v378 = vrcp.pop 32.0
    %v379 = vmul.f32 %v362, %v378
    %v380 = vmul.f32 %v365, %v378
    %v381 = vmul.f32 %v368, %v378
    %v382 = vmul.f32 %v371, %v378
    %v383 = vmul.f32 %v374, %v378
    %v384 = vmul.f32 %v377, %v378
    %v385 = vsub.f32 %v353, %v379
    %v386 = vsub.f32 %v354, %v380
    %v387 = vsub.f32 %v355, %v381
    %v388 = vsub.f32 %v356, %v382
    %v389 = vsub.f32 %v357, %v383
    %v390 = vsub.f32 %v358, %v384
    %v391 = vmul.f32 %v385, %v385
    %v392 = vmul.f32 %v386, %v386
    %v393 = vmul.f32 %v387, %v387
    %v394 = vmul.f32 %v388, %v388
    %v395 = vmul.f32 %v389, %v389
    %v396 = vmul.f32 %v390, %v390
    %v397 = vsel %vm359, %v391, 0.0
    %398 = vadd.xlane.f32.xlu0 %v397
    %v399 = vpop.xlane.xlu0 %398
    %v400 = vsel %vm359, %v392, 0.0
    %401 = vadd.xlane.f32.xlu0 %v400
    %v402 = vpop.xlane.xlu0 %401
    %v403 = vsel %vm359, %v393, 0.0
    %404 = vadd.xlane.f32.xlu0 %v403
    %v405 = vpop.xlane.xlu0 %404
    %v406 = vsel %vm359, %v394, 0.0
    %407 = vadd.xlane.f32.xlu0 %v406
    %v408 = vpop.xlane.xlu0 %407
    %v409 = vsel %vm359, %v395, 0.0
    %410 = vadd.xlane.f32.xlu0 %v409
    %v411 = vpop.xlane.xlu0 %410
    %v412 = vsel %vm359, %v396, 0.0
    %413 = vadd.xlane.f32.xlu0 %v412
    %v414 = vpop.xlane.xlu0 %413
    %v415 = vmul.f32 %v399, %v378
    %v416 = vmul.f32 %v402, %v378
    %v417 = vmul.f32 %v405, %v378
    %v418 = vmul.f32 %v408, %v378
    %v419 = vmul.f32 %v411, %v378
    %v420 = vmul.f32 %v414, %v378
    %v421 = vadd.f32 %v415, 1e-06
    %v422 = vadd.f32 %v416, 1e-06
    %v423 = vadd.f32 %v417, 1e-06
    %v424 = vadd.f32 %v418, 1e-06
    %v425 = vadd.f32 %v419, 1e-06
    %v426 = vadd.f32 %v420, 1e-06
    %v427 = vrsqrt.pop %v421
    %v428 = vrsqrt.pop %v422
    %v429 = vrsqrt.pop %v423
    %v430 = vrsqrt.pop %v424
    %v431 = vrsqrt.pop %v425
    %v432 = vrsqrt.pop %v426
    %v433 = vmul.f32 %v385, %v427
    %v434 = vmul.f32 %v386, %v428
    %v435 = vmul.f32 %v387, %v429
    %v436 = vmul.f32 %v388, %v430
    %v437 = vmul.f32 %v389, %v431
    %v438 = vmul.f32 %v390, %v432
    %v440 = vlaneseq
    %v441 = vshrl.u32 %v440, 7
    %v442 = vsub.s32 0, %v441
    %v443 = vrot.slane %v138, %v442
    %v445 = vmul.f32 %v433, %v443
    %v446 = vmul.f32 %v434, %v443
    %v447 = vmul.f32 %v435, %v443
    %v448 = vmul.f32 %v436, %v443
    %v449 = vmul.f32 %v437, %v443
    %v450 = vmul.f32 %v438, %v443
    %v452 = vlaneseq
    %v453 = vshrl.u32 %v452, 7
    %v454 = vsub.s32 0, %v453
    %v455 = vrot.slane %v139, %v454
    %v457 = vadd.f32 %v445, %v455
    %v458 = vadd.f32 %v446, %v455
    %v459 = vadd.f32 %v447, %v455
    %v460 = vadd.f32 %v448, %v455
    %v461 = vadd.f32 %v449, %v455
    %v462 = vadd.f32 %v450, %v455
    %v464 = vsel %vm359, %v457, 0
    %v467 = vsel %vm359, %v458, 0
    %v470 = vsel %vm359, %v459, 0
    %v473 = vsel %vm359, %v460, 0
    %v476 = vsel %vm359, %v461, 0
    %v479 = vsel %vm359, %v462, 0
    %481 = vmatprep.subr.mxu0 0.0
    %482 = vmatpush1.msra.mxu0 %v140
    %483 = vmatprep.subr.mxu0 0.0
    %484 = vmatpush1.msra.mxu0 %v141
    %485 = vmatprep.subr.mxu0 0.0
    %486 = vmatpush1.msra.mxu0 %v142
    %487 = vmatprep.subr.mxu0 0.0
    %488 = vmatpush1.msra.mxu0 %v143
    %489 = vmatprep.subr.mxu0 0.0
    %490 = vmatpush1.msra.mxu0 0.0
    %491 = vmatprep.subr.mxu0 0.0
    %492 = vmatpush1.msra.mxu0 0.0
    %493 = vmatprep.subr.mxu0 0.0
    %494 = vmatpush1.msra.mxu0 0.0
    %495 = vmatprep.subr.mxu0 0.0
    %496 = vmatpush1.msra.mxu0 0.0
    %497 = vmatprep.subr.mxu0 0.0
    %498 = vmatpush1.msra.mxu0 0.0
    %499 = vmatprep.subr.mxu0 0.0
    %500 = vmatpush1.msra.mxu0 0.0
    %501 = vmatprep.subr.mxu0 0.0
    %502 = vmatpush1.msra.mxu0 0.0
    %503 = vmatprep.subr.mxu0 0.0
    %504 = vmatpush1.msra.mxu0 0.0
    %505 = vmatprep.subr.mxu0 0.0
    %506 = vmatpush1.msra.mxu0 0.0
    %507 = vmatprep.subr.mxu0 0.0
    %508 = vmatpush1.msra.mxu0 0.0
    %509 = vmatprep.subr.mxu0 0.0
    %510 = vmatpush1.msra.mxu0 0.0
    %511 = vmatprep.subr.mxu0 0.0
    %512 = vmatpush1.msra.mxu0 0.0
    %513 = vmatprep.subr.mxu0 0.0
    %514 = vmatpush1.msra.mxu0 0.0
    %515 = vmatprep.subr.mxu0 0.0
    %516 = vmatpush1.msra.mxu0 0.0
    %517 = vmatprep.subr.mxu0 0.0
    %518 = vmatpush1.msra.mxu0 0.0
    %519 = vmatprep.subr.mxu0 0.0
    %520 = vmatpush1.msra.mxu0 0.0
    %521 = vmatprep.subr.mxu0 0.0
    %522 = vmatpush1.msra.mxu0 0.0
    %523 = vmatprep.subr.mxu0 0.0
    %524 = vmatpush1.msra.mxu0 0.0
    %525 = vmatprep.subr.mxu0 0.0
    %526 = vmatpush1.msra.mxu0 0.0
    %527 = vmatprep.subr.mxu0 0.0
    %528 = vmatpush1.msra.mxu0 0.0
    %529 = vmatprep.subr.mxu0 0.0
    %530 = vmatpush1.msra.mxu0 0.0
    %531 = vmatprep.subr.mxu0 0.0
    %532 = vmatpush1.msra.mxu0 0.0
    %533 = vmatprep.subr.mxu0 0.0
    %534 = vmatpush1.msra.mxu0 0.0
    %535 = vmatprep.subr.mxu0 0.0
    %536 = vmatpush1.msra.mxu0 0.0
    %537 = vmatprep.subr.mxu0 0.0
    %538 = vmatpush1.msra.mxu0 0.0
    %539 = vmatprep.subr.mxu0 0.0
    %540 = vmatpush1.msra.mxu0 0.0
    %541 = vmatprep.subr.mxu0 0.0
    %542 = vmatpush1.msra.mxu0 0.0
    %543 = vmatprep.subr.mxu0 0.0
    %544 = vmatpush1.msra.mxu0 0.0
    %545 = vmatprep.mubr.f32.mxu0 0.0
    %546 = vmatmul.mubr.f32.gmra.mrb[0].mxu0 %v464
    %v547 = vpop.f32.mrb[0].mxu0
    %v548 = vadd.f32 0.0, %v547
    %v549 = vpop.f32.mrb[0].mxu0
    %550 = vmatprep.mubr.f32.mxu0 0.0
    %551 = vmatmul.mubr.f32.gmra.mrb[0].mxu0 %v467
    %v552 = vpop.f32.mrb[0].mxu0
    %v553 = vadd.f32 0.0, %v552
    %v554 = vpop.f32.mrb[0].mxu0
    %555 = vmatprep.mubr.f32.mxu0 0.0
    %556 = vmatmul.mubr.f32.gmra.mrb[0].mxu0 %v470
    %v557 = vpop.f32.mrb[0].mxu0
    %v558 = vadd.f32 0.0, %v557
    %v559 = vpop.f32.mrb[0].mxu0
    %560 = vmatprep.mubr.f32.mxu0 0.0
    %561 = vmatmul.mubr.f32.gmra.mrb[0].mxu0 %v473
    %v562 = vpop.f32.mrb[0].mxu0
    %v563 = vadd.f32 0.0, %v562
    %v564 = vpop.f32.mrb[0].mxu0
    %565 = vmatprep.mubr.f32.mxu0 0.0
    %566 = vmatmul.mubr.f32.gmra.mrb[0].mxu0 %v476
    %v567 = vpop.f32.mrb[0].mxu0
    %v568 = vadd.f32 0.0, %v567
    %v569 = vpop.f32.mrb[0].mxu0
    %570 = vmatprep.mubr.f32.mxu0 0.0
    %571 = vmatmul.mubr.f32.gmra.mrb[0].mxu0 %v479
    %v572 = vpop.f32.mrb[0].mxu0
    %v573 = vadd.f32 0.0, %v572
    %v574 = vpop.f32.mrb[0].mxu0
    %575 = vdwg.mxu0
    %582 = vrot.lane.b32.xlu0 %v548, 96
    %v583 = vpop.permute.xlu0 %582
    %584 = vrot.lane.b32.xlu0 %v553, 96
    %v585 = vpop.permute.xlu0 %584
    %586 = vrot.lane.b32.xlu0 %v558, 96
    %v587 = vpop.permute.xlu0 %586
    %588 = vrot.lane.b32.xlu0 %v563, 96
    %v589 = vpop.permute.xlu0 %588
    %590 = vrot.lane.b32.xlu0 %v568, 96
    %v591 = vpop.permute.xlu0 %590
    %592 = vrot.lane.b32.xlu0 %v573, 96
    %v593 = vpop.permute.xlu0 %592
    %vm594 = vcmask 64512
    %v595 = vsel %vm594, %v548, 0
    %v597 = vsel %vm594, %v553, 0
    %v599 = vsel %vm594, %v558, 0
    %v601 = vsel %vm594, %v563, 0
    %v603 = vsel %vm594, %v568, 0
    %v605 = vsel %vm594, %v573, 0
    %v607 = vsel %vm594, %v583, 0
    %v609 = vsel %vm594, %v585, 0
    %v611 = vsel %vm594, %v587, 0
    %v613 = vsel %vm594, %v589, 0
    %v615 = vsel %vm594, %v591, 0
    %v617 = vsel %vm594, %v593, 0
    %619 = vmatprep.subr.mxu0 0.0
    %620 = vmatpush1.xpose.msra.mxu0 %v607
    %621 = vmatprep.subr.mxu0 0.0
    %622 = vmatpush1.xpose.msra.mxu0 %v609
    %623 = vmatprep.subr.mxu0 0.0
    %624 = vmatpush1.xpose.msra.mxu0 %v611
    %625 = vmatprep.subr.mxu0 0.0
    %626 = vmatpush1.xpose.msra.mxu0 %v613
    %627 = vmatprep.subr.mxu0 0.0
    %628 = vmatpush1.xpose.msra.mxu0 %v615
    %629 = vmatprep.subr.mxu0 0.0
    %630 = vmatpush1.xpose.msra.mxu0 %v617
    %631 = vmatprep.subr.mxu0 0.0
    %632 = vmatpush1.xpose.msra.mxu0 0.0
    %633 = vmatprep.subr.mxu0 0.0
    %634 = vmatpush1.xpose.msra.mxu0 0.0
    %635 = vmatprep.subr.mxu0 0.0
    %636 = vmatpush1.xpose.msra.mxu0 0.0
    %637 = vmatprep.subr.mxu0 0.0
    %638 = vmatpush1.xpose.msra.mxu0 0.0
    %639 = vmatprep.subr.mxu0 0.0
    %640 = vmatpush1.xpose.msra.mxu0 0.0
    %641 = vmatprep.subr.mxu0 0.0
    %642 = vmatpush1.xpose.msra.mxu0 0.0
    %643 = vmatprep.subr.mxu0 0.0
    %644 = vmatpush1.xpose.msra.mxu0 0.0
    %645 = vmatprep.subr.mxu0 0.0
    %646 = vmatpush1.xpose.msra.mxu0 0.0
    %647 = vmatprep.subr.mxu0 0.0
    %648 = vmatpush1.xpose.msra.mxu0 0.0
    %649 = vmatprep.subr.mxu0 0.0
    %650 = vmatpush1.xpose.msra.mxu0 0.0
    %651 = vmatprep.subr.mxu0 0.0
    %652 = vmatpush1.xpose.msra.mxu0 0.0
    %653 = vmatprep.subr.mxu0 0.0
    %654 = vmatpush1.xpose.msra.mxu0 0.0
    %655 = vmatprep.subr.mxu0 0.0
    %656 = vmatpush1.xpose.msra.mxu0 0.0
    %657 = vmatprep.subr.mxu0 0.0
    %658 = vmatpush1.xpose.msra.mxu0 0.0
    %659 = vmatprep.subr.mxu0 0.0
    %660 = vmatpush1.xpose.msra.mxu0 0.0
    %661 = vmatprep.subr.mxu0 0.0
    %662 = vmatpush1.xpose.msra.mxu0 0.0
    %663 = vmatprep.subr.mxu0 0.0
    %664 = vmatpush1.xpose.msra.mxu0 0.0
    %665 = vmatprep.subr.mxu0 0.0
    %666 = vmatpush1.xpose.msra.mxu0 0.0
    %667 = vmatprep.subr.mxu0 0.0
    %668 = vmatpush1.xpose.msra.mxu0 0.0
    %669 = vmatprep.subr.mxu0 0.0
    %670 = vmatpush1.xpose.msra.mxu0 0.0
    %671 = vmatprep.subr.mxu0 0.0
    %672 = vmatpush1.xpose.msra.mxu0 0.0
    %673 = vmatprep.subr.mxu0 0.0
    %674 = vmatpush1.xpose.msra.mxu0 0.0
    %675 = vmatprep.subr.mxu0 0.0
    %676 = vmatpush1.xpose.msra.mxu0 0.0
    %677 = vmatprep.subr.mxu0 0.0
    %678 = vmatpush1.xpose.msra.mxu0 0.0
    %679 = vmatprep.subr.mxu0 0.0
    %680 = vmatpush1.xpose.msra.mxu0 0.0
    %681 = vmatprep.subr.mxu0 0.0
    %682 = vmatpush1.xpose.msra.mxu0 0.0
    %683 = vmatprep.mubr.f32.mxu0 0.0
    %684 = vmatmul.mubr.f32.gmra.mrb[0].mxu0 %v595
    %v685 = vpop.f32.mrb[0].mxu0
    %v686 = vadd.f32 0.0, %v685
    %v687 = vpop.f32.mrb[0].mxu0
    %688 = vmatprep.mubr.f32.mxu0 0.0
    %689 = vmatmul.mubr.f32.gmra.mrb[0].mxu0 %v597
    %v690 = vpop.f32.mrb[0].mxu0
    %v691 = vadd.f32 0.0, %v690
    %v692 = vpop.f32.mrb[0].mxu0
    %693 = vmatprep.mubr.f32.mxu0 0.0
    %694 = vmatmul.mubr.f32.gmra.mrb[0].mxu0 %v599
    %v695 = vpop.f32.mrb[0].mxu0
    %v696 = vadd.f32 0.0, %v695
    %v697 = vpop.f32.mrb[0].mxu0
    %698 = vmatprep.mubr.f32.mxu0 0.0
    %699 = vmatmul.mubr.f32.gmra.mrb[0].mxu0 %v601
    %v700 = vpop.f32.mrb[0].mxu0
    %v701 = vadd.f32 0.0, %v700
    %v702 = vpop.f32.mrb[0].mxu0
    %703 = vmatprep.mubr.f32.mxu0 0.0
    %704 = vmatmul.mubr.f32.gmra.mrb[0].mxu0 %v603
    %v705 = vpop.f32.mrb[0].mxu0
    %v706 = vadd.f32 0.0, %v705
    %v707 = vpop.f32.mrb[0].mxu0
    %708 = vmatprep.mubr.f32.mxu0 0.0
    %709 = vmatmul.mubr.f32.gmra.mrb[0].mxu0 %v605
    %v710 = vpop.f32.mrb[0].mxu0
    %v711 = vadd.f32 0.0, %v710
    %v712 = vpop.f32.mrb[0].mxu0
    %713 = vdwg.mxu0
    %v714 = vmul.f32 %v686, 0.35355338
    %v715 = vmul.f32 %v691, 0.35355338
    %v716 = vmul.f32 %v696, 0.35355338
    %v717 = vmul.f32 %v701, 0.35355338
    %v718 = vmul.f32 %v706, 0.35355338
    %v719 = vmul.f32 %v711, 0.35355338
    %v720 = vadd.f32 %v714, %v215
    %v721 = vadd.f32 %v715, %v216
    %v722 = vadd.f32 %v716, %v217
    %v723 = vadd.f32 %v717, %v218
    %v724 = vadd.f32 %v718, %v219
    %v725 = vadd.f32 %v719, %v220
    %v726 = vsel %vm233, %v720, -inf
    %727 = vmax.xlane.f32.xlu0 %v726
    %v728 = vpop.xlane.xlu0 %727
    %v729 = vsel %vm233, %v721, -inf
    %730 = vmax.xlane.f32.xlu0 %v729
    %v731 = vpop.xlane.xlu0 %730
    %v732 = vsel %vm233, %v722, -inf
    %733 = vmax.xlane.f32.xlu0 %v732
    %v734 = vpop.xlane.xlu0 %733
    %v735 = vsel %vm233, %v723, -inf
    %736 = vmax.xlane.f32.xlu0 %v735
    %v737 = vpop.xlane.xlu0 %736
    %v738 = vsel %vm233, %v724, -inf
    %739 = vmax.xlane.f32.xlu0 %v738
    %v740 = vpop.xlane.xlu0 %739
    %v741 = vsel %vm233, %v725, -inf
    %742 = vmax.xlane.f32.xlu0 %v741
    %v743 = vpop.xlane.xlu0 %742
    %v744 = vsub.f32 %v720, %v728
    %v745 = vsub.f32 %v721, %v731
    %v746 = vsub.f32 %v722, %v734
    %v747 = vsub.f32 %v723, %v737
    %v748 = vsub.f32 %v724, %v740
    %v749 = vsub.f32 %v725, %v743
    %v750 = vmul.f32 %v744, 1.442695
    %v751 = vpow.pop %v750
    %v752 = vmul.f32 %v745, 1.442695
    %v753 = vpow.pop %v752
    %v754 = vmul.f32 %v746, 1.442695
    %v755 = vpow.pop %v754
    %v756 = vmul.f32 %v747, 1.442695
    %v757 = vpow.pop %v756
    %v758 = vmul.f32 %v748, 1.442695
    %v759 = vpow.pop %v758
    %v760 = vmul.f32 %v749, 1.442695
    %v761 = vpow.pop %v760
    %v762 = vsel %vm233, %v751, 0.0
    %763 = vadd.xlane.f32.xlu0 %v762
    %v764 = vpop.xlane.xlu0 %763
    %v765 = vsel %vm233, %v753, 0.0
    %766 = vadd.xlane.f32.xlu0 %v765
    %v767 = vpop.xlane.xlu0 %766
    %v768 = vsel %vm233, %v755, 0.0
    %769 = vadd.xlane.f32.xlu0 %v768
    %v770 = vpop.xlane.xlu0 %769
    %v771 = vsel %vm233, %v757, 0.0
    %772 = vadd.xlane.f32.xlu0 %v771
    %v773 = vpop.xlane.xlu0 %772
    %v774 = vsel %vm233, %v759, 0.0
    %775 = vadd.xlane.f32.xlu0 %v774
    %v776 = vpop.xlane.xlu0 %775
    %v777 = vsel %vm233, %v761, 0.0
    %778 = vadd.xlane.f32.xlu0 %v777
    %v779 = vpop.xlane.xlu0 %778
    %v780 = vrcp.pop %v764
    %v781 = vrcp.pop %v767
    %v782 = vrcp.pop %v770
    %v783 = vrcp.pop %v773
    %v784 = vrcp.pop %v776
    %v785 = vrcp.pop %v779
    %v786 = vmul.f32 %v751, %v780
    %v787 = vmul.f32 %v753, %v781
    %v788 = vmul.f32 %v755, %v782
    %v789 = vmul.f32 %v757, %v783
    %v790 = vmul.f32 %v759, %v784
    %v791 = vmul.f32 %v761, %v785
    %792 = vrot.lane.b32.xlu0 %v548, 64
    %v793 = vpop.permute.xlu0 %792
    %794 = vrot.lane.b32.xlu0 %v553, 64
    %v795 = vpop.permute.xlu0 %794
    %796 = vrot.lane.b32.xlu0 %v558, 64
    %v797 = vpop.permute.xlu0 %796
    %798 = vrot.lane.b32.xlu0 %v563, 64
    %v799 = vpop.permute.xlu0 %798
    %800 = vrot.lane.b32.xlu0 %v568, 64
    %v801 = vpop.permute.xlu0 %800
    %802 = vrot.lane.b32.xlu0 %v573, 64
    %v803 = vpop.permute.xlu0 %802
    %v811 = vsel %vm233, %v786, 0
    %v814 = vsel %vm233, %v787, 0
    %v817 = vsel %vm233, %v788, 0
    %v820 = vsel %vm233, %v789, 0
    %v823 = vsel %vm233, %v790, 0
    %v826 = vsel %vm233, %v791, 0
    %828 = vmatprep.subr.mxu0 0.0
    %829 = vmatpush1.msra.mxu0 %v793
    %830 = vmatprep.subr.mxu0 0.0
    %831 = vmatpush1.msra.mxu0 %v795
    %832 = vmatprep.subr.mxu0 0.0
    %833 = vmatpush1.msra.mxu0 %v797
    %834 = vmatprep.subr.mxu0 0.0
    %835 = vmatpush1.msra.mxu0 %v799
    %836 = vmatprep.subr.mxu0 0.0
    %837 = vmatpush1.msra.mxu0 %v801
    %838 = vmatprep.subr.mxu0 0.0
    %839 = vmatpush1.msra.mxu0 %v803
    %840 = vmatprep.subr.mxu0 0.0
    %841 = vmatpush1.msra.mxu0 0.0
    %842 = vmatprep.subr.mxu0 0.0
    %843 = vmatpush1.msra.mxu0 0.0
    %844 = vmatprep.subr.mxu0 0.0
    %845 = vmatpush1.msra.mxu0 0.0
    %846 = vmatprep.subr.mxu0 0.0
    %847 = vmatpush1.msra.mxu0 0.0
    %848 = vmatprep.subr.mxu0 0.0
    %849 = vmatpush1.msra.mxu0 0.0
    %850 = vmatprep.subr.mxu0 0.0
    %851 = vmatpush1.msra.mxu0 0.0
    %852 = vmatprep.subr.mxu0 0.0
    %853 = vmatpush1.msra.mxu0 0.0
    %854 = vmatprep.subr.mxu0 0.0
    %855 = vmatpush1.msra.mxu0 0.0
    %856 = vmatprep.subr.mxu0 0.0
    %857 = vmatpush1.msra.mxu0 0.0
    %858 = vmatprep.subr.mxu0 0.0
    %859 = vmatpush1.msra.mxu0 0.0
    %860 = vmatprep.subr.mxu0 0.0
    %861 = vmatpush1.msra.mxu0 0.0
    %862 = vmatprep.subr.mxu0 0.0
    %863 = vmatpush1.msra.mxu0 0.0
    %864 = vmatprep.subr.mxu0 0.0
    %865 = vmatpush1.msra.mxu0 0.0
    %866 = vmatprep.subr.mxu0 0.0
    %867 = vmatpush1.msra.mxu0 0.0
    %868 = vmatprep.subr.mxu0 0.0
    %869 = vmatpush1.msra.mxu0 0.0
    %870 = vmatprep.subr.mxu0 0.0
    %871 = vmatpush1.msra.mxu0 0.0
    %872 = vmatprep.subr.mxu0 0.0
    %873 = vmatpush1.msra.mxu0 0.0
    %874 = vmatprep.subr.mxu0 0.0
    %875 = vmatpush1.msra.mxu0 0.0
    %876 = vmatprep.subr.mxu0 0.0
    %877 = vmatpush1.msra.mxu0 0.0
    %878 = vmatprep.subr.mxu0 0.0
    %879 = vmatpush1.msra.mxu0 0.0
    %880 = vmatprep.subr.mxu0 0.0
    %881 = vmatpush1.msra.mxu0 0.0
    %882 = vmatprep.subr.mxu0 0.0
    %883 = vmatpush1.msra.mxu0 0.0
    %884 = vmatprep.subr.mxu0 0.0
    %885 = vmatpush1.msra.mxu0 0.0
    %886 = vmatprep.subr.mxu0 0.0
    %887 = vmatpush1.msra.mxu0 0.0
    %888 = vmatprep.subr.mxu0 0.0
    %889 = vmatpush1.msra.mxu0 0.0
    %890 = vmatprep.subr.mxu0 0.0
    %891 = vmatpush1.msra.mxu0 0.0
    %892 = vmatprep.mubr.f32.mxu0 0.0
    %893 = vmatmul.mubr.f32.gmra.mrb[0].mxu0 %v811
    %v894 = vpop.f32.mrb[0].mxu0
    %v895 = vadd.f32 0.0, %v894
    %v896 = vpop.f32.mrb[0].mxu0
    %897 = vmatprep.mubr.f32.mxu0 0.0
    %898 = vmatmul.mubr.f32.gmra.mrb[0].mxu0 %v814
    %v899 = vpop.f32.mrb[0].mxu0
    %v900 = vadd.f32 0.0, %v899
    %v901 = vpop.f32.mrb[0].mxu0
    %902 = vmatprep.mubr.f32.mxu0 0.0
    %903 = vmatmul.mubr.f32.gmra.mrb[0].mxu0 %v817
    %v904 = vpop.f32.mrb[0].mxu0
    %v905 = vadd.f32 0.0, %v904
    %v906 = vpop.f32.mrb[0].mxu0
    %907 = vmatprep.mubr.f32.mxu0 0.0
    %908 = vmatmul.mubr.f32.gmra.mrb[0].mxu0 %v820
    %v909 = vpop.f32.mrb[0].mxu0
    %v910 = vadd.f32 0.0, %v909
    %v911 = vpop.f32.mrb[0].mxu0
    %912 = vmatprep.mubr.f32.mxu0 0.0
    %913 = vmatmul.mubr.f32.gmra.mrb[0].mxu0 %v823
    %v914 = vpop.f32.mrb[0].mxu0
    %v915 = vadd.f32 0.0, %v914
    %v916 = vpop.f32.mrb[0].mxu0
    %917 = vmatprep.mubr.f32.mxu0 0.0
    %918 = vmatmul.mubr.f32.gmra.mrb[0].mxu0 %v826
    %v919 = vpop.f32.mrb[0].mxu0
    %v920 = vadd.f32 0.0, %v919
    %v921 = vpop.f32.mrb[0].mxu0
    %922 = vdwg.mxu0
    %923 = vrot.lane.b32.xlu0 %v548, 120
    %v924 = vpop.permute.xlu0 %923
    %925 = vrot.lane.b32.xlu0 %v553, 120
    %v926 = vpop.permute.xlu0 %925
    %927 = vrot.lane.b32.xlu0 %v558, 120
    %v928 = vpop.permute.xlu0 %927
    %929 = vrot.lane.b32.xlu0 %v563, 120
    %v930 = vpop.permute.xlu0 %929
    %931 = vrot.lane.b32.xlu0 %v568, 120
    %v932 = vpop.permute.xlu0 %931
    %933 = vrot.lane.b32.xlu0 %v573, 120
    %v934 = vpop.permute.xlu0 %933
    %935 = vrot.lane.b32.xlu0 %v548, 88
    %v936 = vpop.permute.xlu0 %935
    %937 = vrot.lane.b32.xlu0 %v553, 88
    %v938 = vpop.permute.xlu0 %937
    %939 = vrot.lane.b32.xlu0 %v558, 88
    %v940 = vpop.permute.xlu0 %939
    %941 = vrot.lane.b32.xlu0 %v563, 88
    %v942 = vpop.permute.xlu0 %941
    %943 = vrot.lane.b32.xlu0 %v568, 88
    %v944 = vpop.permute.xlu0 %943
    %945 = vrot.lane.b32.xlu0 %v573, 88
    %v946 = vpop.permute.xlu0 %945
    %v947 = vsel %vm594, %v924, 0
    %v949 = vsel %vm594, %v926, 0
    %v951 = vsel %vm594, %v928, 0
    %v953 = vsel %vm594, %v930, 0
    %v955 = vsel %vm594, %v932, 0
    %v957 = vsel %vm594, %v934, 0
    %v959 = vsel %vm594, %v936, 0
    %v961 = vsel %vm594, %v938, 0
    %v963 = vsel %vm594, %v940, 0
    %v965 = vsel %vm594, %v942, 0
    %v967 = vsel %vm594, %v944, 0
    %v969 = vsel %vm594, %v946, 0
    %971 = vmatprep.subr.mxu0 0.0
    %972 = vmatpush1.xpose.msra.mxu0 %v959
    %973 = vmatprep.subr.mxu0 0.0
    %974 = vmatpush1.xpose.msra.mxu0 %v961
    %975 = vmatprep.subr.mxu0 0.0
    %976 = vmatpush1.xpose.msra.mxu0 %v963
    %977 = vmatprep.subr.mxu0 0.0
    %978 = vmatpush1.xpose.msra.mxu0 %v965
    %979 = vmatprep.subr.mxu0 0.0
    %980 = vmatpush1.xpose.msra.mxu0 %v967
    %981 = vmatprep.subr.mxu0 0.0
    %982 = vmatpush1.xpose.msra.mxu0 %v969
    %983 = vmatprep.subr.mxu0 0.0
    %984 = vmatpush1.xpose.msra.mxu0 0.0
    %985 = vmatprep.subr.mxu0 0.0
    %986 = vmatpush1.xpose.msra.mxu0 0.0
    %987 = vmatprep.subr.mxu0 0.0
    %988 = vmatpush1.xpose.msra.mxu0 0.0
    %989 = vmatprep.subr.mxu0 0.0
    %990 = vmatpush1.xpose.msra.mxu0 0.0
    %991 = vmatprep.subr.mxu0 0.0
    %992 = vmatpush1.xpose.msra.mxu0 0.0
    %993 = vmatprep.subr.mxu0 0.0
    %994 = vmatpush1.xpose.msra.mxu0 0.0
    %995 = vmatprep.subr.mxu0 0.0
    %996 = vmatpush1.xpose.msra.mxu0 0.0
    %997 = vmatprep.subr.mxu0 0.0
    %998 = vmatpush1.xpose.msra.mxu0 0.0
    %999 = vmatprep.subr.mxu0 0.0
    %1000 = vmatpush1.xpose.msra.mxu0 0.0
    %1001 = vmatprep.subr.mxu0 0.0
    %1002 = vmatpush1.xpose.msra.mxu0 0.0
    %1003 = vmatprep.subr.mxu0 0.0
    %1004 = vmatpush1.xpose.msra.mxu0 0.0
    %1005 = vmatprep.subr.mxu0 0.0
    %1006 = vmatpush1.xpose.msra.mxu0 0.0
    %1007 = vmatprep.subr.mxu0 0.0
    %1008 = vmatpush1.xpose.msra.mxu0 0.0
    %1009 = vmatprep.subr.mxu0 0.0
    %1010 = vmatpush1.xpose.msra.mxu0 0.0
    %1011 = vmatprep.subr.mxu0 0.0
    %1012 = vmatpush1.xpose.msra.mxu0 0.0
    %1013 = vmatprep.subr.mxu0 0.0
    %1014 = vmatpush1.xpose.msra.mxu0 0.0
    %1015 = vmatprep.subr.mxu0 0.0
    %1016 = vmatpush1.xpose.msra.mxu0 0.0
    %1017 = vmatprep.subr.mxu0 0.0
    %1018 = vmatpush1.xpose.msra.mxu0 0.0
    %1019 = vmatprep.subr.mxu0 0.0
    %1020 = vmatpush1.xpose.msra.mxu0 0.0
    %1021 = vmatprep.subr.mxu0 0.0
    %1022 = vmatpush1.xpose.msra.mxu0 0.0
    %1023 = vmatprep.subr.mxu0 0.0
    %1024 = vmatpush1.xpose.msra.mxu0 0.0
    %1025 = vmatprep.subr.mxu0 0.0
    %1026 = vmatpush1.xpose.msra.mxu0 0.0
    %1027 = vmatprep.subr.mxu0 0.0
    %1028 = vmatpush1.xpose.msra.mxu0 0.0
    %1029 = vmatprep.subr.mxu0 0.0
    %1030 = vmatpush1.xpose.msra.mxu0 0.0
    %1031 = vmatprep.subr.mxu0 0.0
    %1032 = vmatpush1.xpose.msra.mxu0 0.0
    %1033 = vmatprep.subr.mxu0 0.0
    %1034 = vmatpush1.xpose.msra.mxu0 0.0
    %1035 = vmatprep.mubr.f32.mxu0 0.0
    %1036 = vmatmul.mubr.f32.gmra.mrb[0].mxu0 %v947
    %v1037 = vpop.f32.mrb[0].mxu0
    %v1038 = vadd.f32 0.0, %v1037
    %v1039 = vpop.f32.mrb[0].mxu0
    %1040 = vmatprep.mubr.f32.mxu0 0.0
    %1041 = vmatmul.mubr.f32.gmra.mrb[0].mxu0 %v949
    %v1042 = vpop.f32.mrb[0].mxu0
    %v1043 = vadd.f32 0.0, %v1042
    %v1044 = vpop.f32.mrb[0].mxu0
    %1045 = vmatprep.mubr.f32.mxu0 0.0
    %1046 = vmatmul.mubr.f32.gmra.mrb[0].mxu0 %v951
    %v1047 = vpop.f32.mrb[0].mxu0
    %v1048 = vadd.f32 0.0, %v1047
    %v1049 = vpop.f32.mrb[0].mxu0
    %1050 = vmatprep.mubr.f32.mxu0 0.0
    %1051 = vmatmul.mubr.f32.gmra.mrb[0].mxu0 %v953
    %v1052 = vpop.f32.mrb[0].mxu0
    %v1053 = vadd.f32 0.0, %v1052
    %v1054 = vpop.f32.mrb[0].mxu0
    %1055 = vmatprep.mubr.f32.mxu0 0.0
    %1056 = vmatmul.mubr.f32.gmra.mrb[0].mxu0 %v955
    %v1057 = vpop.f32.mrb[0].mxu0
    %v1058 = vadd.f32 0.0, %v1057
    %v1059 = vpop.f32.mrb[0].mxu0
    %1060 = vmatprep.mubr.f32.mxu0 0.0
    %1061 = vmatmul.mubr.f32.gmra.mrb[0].mxu0 %v957
    %v1062 = vpop.f32.mrb[0].mxu0
    %v1063 = vadd.f32 0.0, %v1062
    %v1064 = vpop.f32.mrb[0].mxu0
    %1065 = vdwg.mxu0
    %v1066 = vmul.f32 %v1038, 0.35355338
    %v1067 = vmul.f32 %v1043, 0.35355338
    %v1068 = vmul.f32 %v1048, 0.35355338
    %v1069 = vmul.f32 %v1053, 0.35355338
    %v1070 = vmul.f32 %v1058, 0.35355338
    %v1071 = vmul.f32 %v1063, 0.35355338
    %v1072 = vadd.f32 %v1066, %v215
    %v1073 = vadd.f32 %v1067, %v216
    %v1074 = vadd.f32 %v1068, %v217
    %v1075 = vadd.f32 %v1069, %v218
    %v1076 = vadd.f32 %v1070, %v219
    %v1077 = vadd.f32 %v1071, %v220
    %v1078 = vsel %vm233, %v1072, -inf
    %1079 = vmax.xlane.f32.xlu0 %v1078
    %v1080 = vpop.xlane.xlu0 %1079
    %v1081 = vsel %vm233, %v1073, -inf
    %1082 = vmax.xlane.f32.xlu0 %v1081
    %v1083 = vpop.xlane.xlu0 %1082
    %v1084 = vsel %vm233, %v1074, -inf
    %1085 = vmax.xlane.f32.xlu0 %v1084
    %v1086 = vpop.xlane.xlu0 %1085
    %v1087 = vsel %vm233, %v1075, -inf
    %1088 = vmax.xlane.f32.xlu0 %v1087
    %v1089 = vpop.xlane.xlu0 %1088
    %v1090 = vsel %vm233, %v1076, -inf
    %1091 = vmax.xlane.f32.xlu0 %v1090
    %v1092 = vpop.xlane.xlu0 %1091
    %v1093 = vsel %vm233, %v1077, -inf
    %1094 = vmax.xlane.f32.xlu0 %v1093
    %v1095 = vpop.xlane.xlu0 %1094
    %v1096 = vsub.f32 %v1072, %v1080
    %v1097 = vsub.f32 %v1073, %v1083
    %v1098 = vsub.f32 %v1074, %v1086
    %v1099 = vsub.f32 %v1075, %v1089
    %v1100 = vsub.f32 %v1076, %v1092
    %v1101 = vsub.f32 %v1077, %v1095
    %v1102 = vmul.f32 %v1096, 1.442695
    %v1103 = vpow.pop %v1102
    %v1104 = vmul.f32 %v1097, 1.442695
    %v1105 = vpow.pop %v1104
    %v1106 = vmul.f32 %v1098, 1.442695
    %v1107 = vpow.pop %v1106
    %v1108 = vmul.f32 %v1099, 1.442695
    %v1109 = vpow.pop %v1108
    %v1110 = vmul.f32 %v1100, 1.442695
    %v1111 = vpow.pop %v1110
    %v1112 = vmul.f32 %v1101, 1.442695
    %v1113 = vpow.pop %v1112
    %v1114 = vsel %vm233, %v1103, 0.0
    %1115 = vadd.xlane.f32.xlu0 %v1114
    %v1116 = vpop.xlane.xlu0 %1115
    %v1117 = vsel %vm233, %v1105, 0.0
    %1118 = vadd.xlane.f32.xlu0 %v1117
    %v1119 = vpop.xlane.xlu0 %1118
    %v1120 = vsel %vm233, %v1107, 0.0
    %1121 = vadd.xlane.f32.xlu0 %v1120
    %v1122 = vpop.xlane.xlu0 %1121
    %v1123 = vsel %vm233, %v1109, 0.0
    %1124 = vadd.xlane.f32.xlu0 %v1123
    %v1125 = vpop.xlane.xlu0 %1124
    %v1126 = vsel %vm233, %v1111, 0.0
    %1127 = vadd.xlane.f32.xlu0 %v1126
    %v1128 = vpop.xlane.xlu0 %1127
    %v1129 = vsel %vm233, %v1113, 0.0
    %1130 = vadd.xlane.f32.xlu0 %v1129
    %v1131 = vpop.xlane.xlu0 %1130
    %v1132 = vrcp.pop %v1116
    %v1133 = vrcp.pop %v1119
    %v1134 = vrcp.pop %v1122
    %v1135 = vrcp.pop %v1125
    %v1136 = vrcp.pop %v1128
    %v1137 = vrcp.pop %v1131
    %v1138 = vmul.f32 %v1103, %v1132
    %v1139 = vmul.f32 %v1105, %v1133
    %v1140 = vmul.f32 %v1107, %v1134
    %v1141 = vmul.f32 %v1109, %v1135
    %v1142 = vmul.f32 %v1111, %v1136
    %v1143 = vmul.f32 %v1113, %v1137
    %1144 = vrot.lane.b32.xlu0 %v548, 56
    %v1145 = vpop.permute.xlu0 %1144
    %1146 = vrot.lane.b32.xlu0 %v553, 56
    %v1147 = vpop.permute.xlu0 %1146
    %1148 = vrot.lane.b32.xlu0 %v558, 56
    %v1149 = vpop.permute.xlu0 %1148
    %1150 = vrot.lane.b32.xlu0 %v563, 56
    %v1151 = vpop.permute.xlu0 %1150
    %1152 = vrot.lane.b32.xlu0 %v568, 56
    %v1153 = vpop.permute.xlu0 %1152
    %1154 = vrot.lane.b32.xlu0 %v573, 56
    %v1155 = vpop.permute.xlu0 %1154
    %v1163 = vsel %vm233, %v1138, 0
    %v1166 = vsel %vm233, %v1139, 0
    %v1169 = vsel %vm233, %v1140, 0
    %v1172 = vsel %vm233, %v1141, 0
    %v1175 = vsel %vm233, %v1142, 0
    %v1178 = vsel %vm233, %v1143, 0
    %1180 = vmatprep.subr.mxu0 0.0
    %1181 = vmatpush1.msra.mxu0 %v1145
    %1182 = vmatprep.subr.mxu0 0.0
    %1183 = vmatpush1.msra.mxu0 %v1147
    %1184 = vmatprep.subr.mxu0 0.0
    %1185 = vmatpush1.msra.mxu0 %v1149
    %1186 = vmatprep.subr.mxu0 0.0
    %1187 = vmatpush1.msra.mxu0 %v1151
    %1188 = vmatprep.subr.mxu0 0.0
    %1189 = vmatpush1.msra.mxu0 %v1153
    %1190 = vmatprep.subr.mxu0 0.0
    %1191 = vmatpush1.msra.mxu0 %v1155
    %1192 = vmatprep.subr.mxu0 0.0
    %1193 = vmatpush1.msra.mxu0 0.0
    %1194 = vmatprep.subr.mxu0 0.0
    %1195 = vmatpush1.msra.mxu0 0.0
    %1196 = vmatprep.subr.mxu0 0.0
    %1197 = vmatpush1.msra.mxu0 0.0
    %1198 = vmatprep.subr.mxu0 0.0
    %1199 = vmatpush1.msra.mxu0 0.0
    %1200 = vmatprep.subr.mxu0 0.0
    %1201 = vmatpush1.msra.mxu0 0.0
    %1202 = vmatprep.subr.mxu0 0.0
    %1203 = vmatpush1.msra.mxu0 0.0
    %1204 = vmatprep.subr.mxu0 0.0
    %1205 = vmatpush1.msra.mxu0 0.0
    %1206 = vmatprep.subr.mxu0 0.0
    %1207 = vmatpush1.msra.mxu0 0.0
    %1208 = vmatprep.subr.mxu0 0.0
    %1209 = vmatpush1.msra.mxu0 0.0
    %1210 = vmatprep.subr.mxu0 0.0
    %1211 = vmatpush1.msra.mxu0 0.0
    %1212 = vmatprep.subr.mxu0 0.0
    %1213 = vmatpush1.msra.mxu0 0.0
    %1214 = vmatprep.subr.mxu0 0.0
    %1215 = vmatpush1.msra.mxu0 0.0
    %1216 = vmatprep.subr.mxu0 0.0
    %1217 = vmatpush1.msra.mxu0 0.0
    %1218 = vmatprep.subr.mxu0 0.0
    %1219 = vmatpush1.msra.mxu0 0.0
    %1220 = vmatprep.subr.mxu0 0.0
    %1221 = vmatpush1.msra.mxu0 0.0
    %1222 = vmatprep.subr.mxu0 0.0
    %1223 = vmatpush1.msra.mxu0 0.0
    %1224 = vmatprep.subr.mxu0 0.0
    %1225 = vmatpush1.msra.mxu0 0.0
    %1226 = vmatprep.subr.mxu0 0.0
    %1227 = vmatpush1.msra.mxu0 0.0
    %1228 = vmatprep.subr.mxu0 0.0
    %1229 = vmatpush1.msra.mxu0 0.0
    %1230 = vmatprep.subr.mxu0 0.0
    %1231 = vmatpush1.msra.mxu0 0.0
    %1232 = vmatprep.subr.mxu0 0.0
    %1233 = vmatpush1.msra.mxu0 0.0
    %1234 = vmatprep.subr.mxu0 0.0
    %1235 = vmatpush1.msra.mxu0 0.0
    %1236 = vmatprep.subr.mxu0 0.0
    %1237 = vmatpush1.msra.mxu0 0.0
    %1238 = vmatprep.subr.mxu0 0.0
    %1239 = vmatpush1.msra.mxu0 0.0
    %1240 = vmatprep.subr.mxu0 0.0
    %1241 = vmatpush1.msra.mxu0 0.0
    %1242 = vmatprep.subr.mxu0 0.0
    %1243 = vmatpush1.msra.mxu0 0.0
    %1244 = vmatprep.mubr.f32.mxu0 0.0
    %1245 = vmatmul.mubr.f32.gmra.mrb[0].mxu0 %v1163
    %v1246 = vpop.f32.mrb[0].mxu0
    %v1247 = vadd.f32 0.0, %v1246
    %v1248 = vpop.f32.mrb[0].mxu0
    %1249 = vmatprep.mubr.f32.mxu0 0.0
    %1250 = vmatmul.mubr.f32.gmra.mrb[0].mxu0 %v1166
    %v1251 = vpop.f32.mrb[0].mxu0
    %v1252 = vadd.f32 0.0, %v1251
    %v1253 = vpop.f32.mrb[0].mxu0
    %1254 = vmatprep.mubr.f32.mxu0 0.0
    %1255 = vmatmul.mubr.f32.gmra.mrb[0].mxu0 %v1169
    %v1256 = vpop.f32.mrb[0].mxu0
    %v1257 = vadd.f32 0.0, %v1256
    %v1258 = vpop.f32.mrb[0].mxu0
    %1259 = vmatprep.mubr.f32.mxu0 0.0
    %1260 = vmatmul.mubr.f32.gmra.mrb[0].mxu0 %v1172
    %v1261 = vpop.f32.mrb[0].mxu0
    %v1262 = vadd.f32 0.0, %v1261
    %v1263 = vpop.f32.mrb[0].mxu0
    %1264 = vmatprep.mubr.f32.mxu0 0.0
    %1265 = vmatmul.mubr.f32.gmra.mrb[0].mxu0 %v1175
    %v1266 = vpop.f32.mrb[0].mxu0
    %v1267 = vadd.f32 0.0, %v1266
    %v1268 = vpop.f32.mrb[0].mxu0
    %1269 = vmatprep.mubr.f32.mxu0 0.0
    %1270 = vmatmul.mubr.f32.gmra.mrb[0].mxu0 %v1178
    %v1271 = vpop.f32.mrb[0].mxu0
    %v1272 = vadd.f32 0.0, %v1271
    %v1273 = vpop.f32.mrb[0].mxu0
    %1274 = vdwg.mxu0
    %v1276 = vsel %vm594, %v1247, 0
    %v1279 = vsel %vm594, %v1252, 0
    %v1282 = vsel %vm594, %v1257, 0
    %v1285 = vsel %vm594, %v1262, 0
    %v1288 = vsel %vm594, %v1267, 0
    %v1291 = vsel %vm594, %v1272, 0
    %1293 = vmatprep.subr.mxu0 0.0
    %1294 = vmatpush1.msra.mxu0 %v145
    %1295 = vmatprep.subr.mxu0 0.0
    %1296 = vmatpush1.msra.mxu0 0.0
    %1297 = vmatprep.subr.mxu0 0.0
    %1298 = vmatpush1.msra.mxu0 0.0
    %1299 = vmatprep.subr.mxu0 0.0
    %1300 = vmatpush1.msra.mxu0 0.0
    %1301 = vmatprep.subr.mxu0 0.0
    %1302 = vmatpush1.msra.mxu0 0.0
    %1303 = vmatprep.subr.mxu0 0.0
    %1304 = vmatpush1.msra.mxu0 0.0
    %1305 = vmatprep.subr.mxu0 0.0
    %1306 = vmatpush1.msra.mxu0 0.0
    %1307 = vmatprep.subr.mxu0 0.0
    %1308 = vmatpush1.msra.mxu0 0.0
    %1309 = vmatprep.subr.mxu0 0.0
    %1310 = vmatpush1.msra.mxu0 0.0
    %1311 = vmatprep.subr.mxu0 0.0
    %1312 = vmatpush1.msra.mxu0 0.0
    %1313 = vmatprep.subr.mxu0 0.0
    %1314 = vmatpush1.msra.mxu0 0.0
    %1315 = vmatprep.subr.mxu0 0.0
    %1316 = vmatpush1.msra.mxu0 0.0
    %1317 = vmatprep.subr.mxu0 0.0
    %1318 = vmatpush1.msra.mxu0 0.0
    %1319 = vmatprep.subr.mxu0 0.0
    %1320 = vmatpush1.msra.mxu0 0.0
    %1321 = vmatprep.subr.mxu0 0.0
    %1322 = vmatpush1.msra.mxu0 0.0
    %1323 = vmatprep.subr.mxu0 0.0
    %1324 = vmatpush1.msra.mxu0 0.0
    %1325 = vmatprep.subr.mxu0 0.0
    %1326 = vmatpush1.msra.mxu0 0.0
    %1327 = vmatprep.subr.mxu0 0.0
    %1328 = vmatpush1.msra.mxu0 0.0
    %1329 = vmatprep.subr.mxu0 0.0
    %1330 = vmatpush1.msra.mxu0 0.0
    %1331 = vmatprep.subr.mxu0 0.0
    %1332 = vmatpush1.msra.mxu0 0.0
    %1333 = vmatprep.subr.mxu0 0.0
    %1334 = vmatpush1.msra.mxu0 0.0
    %1335 = vmatprep.subr.mxu0 0.0
    %1336 = vmatpush1.msra.mxu0 0.0
    %1337 = vmatprep.subr.mxu0 0.0
    %1338 = vmatpush1.msra.mxu0 0.0
    %1339 = vmatprep.subr.mxu0 0.0
    %1340 = vmatpush1.msra.mxu0 0.0
    %1341 = vmatprep.subr.mxu0 0.0
    %1342 = vmatpush1.msra.mxu0 0.0
    %1343 = vmatprep.subr.mxu0 0.0
    %1344 = vmatpush1.msra.mxu0 0.0
    %1345 = vmatprep.subr.mxu0 0.0
    %1346 = vmatpush1.msra.mxu0 0.0
    %1347 = vmatprep.subr.mxu0 0.0
    %1348 = vmatpush1.msra.mxu0 0.0
    %1349 = vmatprep.subr.mxu0 0.0
    %1350 = vmatpush1.msra.mxu0 0.0
    %1351 = vmatprep.subr.mxu0 0.0
    %1352 = vmatpush1.msra.mxu0 0.0
    %1353 = vmatprep.subr.mxu0 0.0
    %1354 = vmatpush1.msra.mxu0 0.0
    %1355 = vmatprep.subr.mxu0 0.0
    %1356 = vmatpush1.msra.mxu0 0.0
    %1357 = vmatprep.mubr.f32.mxu0 0.0
    %1358 = vmatmul.mubr.f32.gmra.mrb[0].mxu0 %v1276
    %v1359 = vpop.f32.mrb[0].mxu0
    %v1360 = vadd.f32 0.0, %v1359
    %v1361 = vpop.f32.mrb[0].mxu0
    %1362 = vmatprep.mubr.f32.mxu0 0.0
    %1363 = vmatmul.mubr.f32.gmra.mrb[0].mxu0 %v1279
    %v1364 = vpop.f32.mrb[0].mxu0
    %v1365 = vadd.f32 0.0, %v1364
    %v1366 = vpop.f32.mrb[0].mxu0
    %1367 = vmatprep.mubr.f32.mxu0 0.0
    %1368 = vmatmul.mubr.f32.gmra.mrb[0].mxu0 %v1282
    %v1369 = vpop.f32.mrb[0].mxu0
    %v1370 = vadd.f32 0.0, %v1369
    %v1371 = vpop.f32.mrb[0].mxu0
    %1372 = vmatprep.mubr.f32.mxu0 0.0
    %1373 = vmatmul.mubr.f32.gmra.mrb[0].mxu0 %v1285
    %v1374 = vpop.f32.mrb[0].mxu0
    %v1375 = vadd.f32 0.0, %v1374
    %v1376 = vpop.f32.mrb[0].mxu0
    %1377 = vmatprep.mubr.f32.mxu0 0.0
    %1378 = vmatmul.mubr.f32.gmra.mrb[0].mxu0 %v1288
    %v1379 = vpop.f32.mrb[0].mxu0
    %v1380 = vadd.f32 0.0, %v1379
    %v1381 = vpop.f32.mrb[0].mxu0
    %1382 = vmatprep.mubr.f32.mxu0 0.0
    %1383 = vmatmul.mubr.f32.gmra.mrb[0].mxu0 %v1291
    %v1384 = vpop.f32.mrb[0].mxu0
    %v1385 = vadd.f32 0.0, %v1384
    %v1386 = vpop.f32.mrb[0].mxu0
    %1387 = vdwg.mxu0
    %v1389 = vsel %vm594, %v895, 0
    %v1392 = vsel %vm594, %v900, 0
    %v1395 = vsel %vm594, %v905, 0
    %v1398 = vsel %vm594, %v910, 0
    %v1401 = vsel %vm594, %v915, 0
    %v1404 = vsel %vm594, %v920, 0
    %1406 = vmatprep.subr.mxu0 0.0
    %1407 = vmatpush1.msra.mxu0 %v144
    %1408 = vmatprep.subr.mxu0 0.0
    %1409 = vmatpush1.msra.mxu0 0.0
    %1410 = vmatprep.subr.mxu0 0.0
    %1411 = vmatpush1.msra.mxu0 0.0
    %1412 = vmatprep.subr.mxu0 0.0
    %1413 = vmatpush1.msra.mxu0 0.0
    %1414 = vmatprep.subr.mxu0 0.0
    %1415 = vmatpush1.msra.mxu0 0.0
    %1416 = vmatprep.subr.mxu0 0.0
    %1417 = vmatpush1.msra.mxu0 0.0
    %1418 = vmatprep.subr.mxu0 0.0
    %1419 = vmatpush1.msra.mxu0 0.0
    %1420 = vmatprep.subr.mxu0 0.0
    %1421 = vmatpush1.msra.mxu0 0.0
    %1422 = vmatprep.subr.mxu0 0.0
    %1423 = vmatpush1.msra.mxu0 0.0
    %1424 = vmatprep.subr.mxu0 0.0
    %1425 = vmatpush1.msra.mxu0 0.0
    %1426 = vmatprep.subr.mxu0 0.0
    %1427 = vmatpush1.msra.mxu0 0.0
    %1428 = vmatprep.subr.mxu0 0.0
    %1429 = vmatpush1.msra.mxu0 0.0
    %1430 = vmatprep.subr.mxu0 0.0
    %1431 = vmatpush1.msra.mxu0 0.0
    %1432 = vmatprep.subr.mxu0 0.0
    %1433 = vmatpush1.msra.mxu0 0.0
    %1434 = vmatprep.subr.mxu0 0.0
    %1435 = vmatpush1.msra.mxu0 0.0
    %1436 = vmatprep.subr.mxu0 0.0
    %1437 = vmatpush1.msra.mxu0 0.0
    %1438 = vmatprep.subr.mxu0 0.0
    %1439 = vmatpush1.msra.mxu0 0.0
    %1440 = vmatprep.subr.mxu0 0.0
    %1441 = vmatpush1.msra.mxu0 0.0
    %1442 = vmatprep.subr.mxu0 0.0
    %1443 = vmatpush1.msra.mxu0 0.0
    %1444 = vmatprep.subr.mxu0 0.0
    %1445 = vmatpush1.msra.mxu0 0.0
    %1446 = vmatprep.subr.mxu0 0.0
    %1447 = vmatpush1.msra.mxu0 0.0
    %1448 = vmatprep.subr.mxu0 0.0
    %1449 = vmatpush1.msra.mxu0 0.0
    %1450 = vmatprep.subr.mxu0 0.0
    %1451 = vmatpush1.msra.mxu0 0.0
    %1452 = vmatprep.subr.mxu0 0.0
    %1453 = vmatpush1.msra.mxu0 0.0
    %1454 = vmatprep.subr.mxu0 0.0
    %1455 = vmatpush1.msra.mxu0 0.0
    %1456 = vmatprep.subr.mxu0 0.0
    %1457 = vmatpush1.msra.mxu0 0.0
    %1458 = vmatprep.subr.mxu0 0.0
    %1459 = vmatpush1.msra.mxu0 0.0
    %1460 = vmatprep.subr.mxu0 0.0
    %1461 = vmatpush1.msra.mxu0 0.0
    %1462 = vmatprep.subr.mxu0 0.0
    %1463 = vmatpush1.msra.mxu0 0.0
    %1464 = vmatprep.subr.mxu0 0.0
    %1465 = vmatpush1.msra.mxu0 0.0
    %1466 = vmatprep.subr.mxu0 0.0
    %1467 = vmatpush1.msra.mxu0 0.0
    %1468 = vmatprep.subr.mxu0 0.0
    %1469 = vmatpush1.msra.mxu0 0.0
    %1470 = vmatprep.mubr.f32.mxu0 0.0
    %1471 = vmatmul.mubr.f32.gmra.mrb[0].mxu0 %v1389
    %v1472 = vpop.f32.mrb[0].mxu0
    %v1473 = vadd.f32 %v1360, %v1472
    %v1474 = vpop.f32.mrb[0].mxu0
    %1475 = vmatprep.mubr.f32.mxu0 0.0
    %1476 = vmatmul.mubr.f32.gmra.mrb[0].mxu0 %v1392
    %v1477 = vpop.f32.mrb[0].mxu0
    %v1478 = vadd.f32 %v1365, %v1477
    %v1479 = vpop.f32.mrb[0].mxu0
    %1480 = vmatprep.mubr.f32.mxu0 0.0
    %1481 = vmatmul.mubr.f32.gmra.mrb[0].mxu0 %v1395
    %v1482 = vpop.f32.mrb[0].mxu0
    %v1483 = vadd.f32 %v1370, %v1482
    %v1484 = vpop.f32.mrb[0].mxu0
    %1485 = vmatprep.mubr.f32.mxu0 0.0
    %1486 = vmatmul.mubr.f32.gmra.mrb[0].mxu0 %v1398
    %v1487 = vpop.f32.mrb[0].mxu0
    %v1488 = vadd.f32 %v1375, %v1487
    %v1489 = vpop.f32.mrb[0].mxu0
    %1490 = vmatprep.mubr.f32.mxu0 0.0
    %1491 = vmatmul.mubr.f32.gmra.mrb[0].mxu0 %v1401
    %v1492 = vpop.f32.mrb[0].mxu0
    %v1493 = vadd.f32 %v1380, %v1492
    %v1494 = vpop.f32.mrb[0].mxu0
    %1495 = vmatprep.mubr.f32.mxu0 0.0
    %1496 = vmatmul.mubr.f32.gmra.mrb[0].mxu0 %v1404
    %v1497 = vpop.f32.mrb[0].mxu0
    %v1498 = vadd.f32 %v1385, %v1497
    %v1499 = vpop.f32.mrb[0].mxu0
    %1500 = vdwg.mxu0
    %1501 = vrot.lane.b32.xlu0 %v548, 112
    %v1502 = vpop.permute.xlu0 %1501
    %1503 = vrot.lane.b32.xlu0 %v553, 112
    %v1504 = vpop.permute.xlu0 %1503
    %1505 = vrot.lane.b32.xlu0 %v558, 112
    %v1506 = vpop.permute.xlu0 %1505
    %1507 = vrot.lane.b32.xlu0 %v563, 112
    %v1508 = vpop.permute.xlu0 %1507
    %1509 = vrot.lane.b32.xlu0 %v568, 112
    %v1510 = vpop.permute.xlu0 %1509
    %1511 = vrot.lane.b32.xlu0 %v573, 112
    %v1512 = vpop.permute.xlu0 %1511
    %1513 = vrot.lane.b32.xlu0 %v548, 80
    %v1514 = vpop.permute.xlu0 %1513
    %1515 = vrot.lane.b32.xlu0 %v553, 80
    %v1516 = vpop.permute.xlu0 %1515
    %1517 = vrot.lane.b32.xlu0 %v558, 80
    %v1518 = vpop.permute.xlu0 %1517
    %1519 = vrot.lane.b32.xlu0 %v563, 80
    %v1520 = vpop.permute.xlu0 %1519
    %1521 = vrot.lane.b32.xlu0 %v568, 80
    %v1522 = vpop.permute.xlu0 %1521
    %1523 = vrot.lane.b32.xlu0 %v573, 80
    %v1524 = vpop.permute.xlu0 %1523
    %v1525 = vsel %vm594, %v1502, 0
    %v1527 = vsel %vm594, %v1504, 0
    %v1529 = vsel %vm594, %v1506, 0
    %v1531 = vsel %vm594, %v1508, 0
    %v1533 = vsel %vm594, %v1510, 0
    %v1535 = vsel %vm594, %v1512, 0
    %v1537 = vsel %vm594, %v1514, 0
    %v1539 = vsel %vm594, %v1516, 0
    %v1541 = vsel %vm594, %v1518, 0
    %v1543 = vsel %vm594, %v1520, 0
    %v1545 = vsel %vm594, %v1522, 0
    %v1547 = vsel %vm594, %v1524, 0
    %1549 = vmatprep.subr.mxu0 0.0
    %1550 = vmatpush1.xpose.msra.mxu0 %v1537
    %1551 = vmatprep.subr.mxu0 0.0
    %1552 = vmatpush1.xpose.msra.mxu0 %v1539
    %1553 = vmatprep.subr.mxu0 0.0
    %1554 = vmatpush1.xpose.msra.mxu0 %v1541
    %1555 = vmatprep.subr.mxu0 0.0
    %1556 = vmatpush1.xpose.msra.mxu0 %v1543
    %1557 = vmatprep.subr.mxu0 0.0
    %1558 = vmatpush1.xpose.msra.mxu0 %v1545
    %1559 = vmatprep.subr.mxu0 0.0
    %1560 = vmatpush1.xpose.msra.mxu0 %v1547
    %1561 = vmatprep.subr.mxu0 0.0
    %1562 = vmatpush1.xpose.msra.mxu0 0.0
    %1563 = vmatprep.subr.mxu0 0.0
    %1564 = vmatpush1.xpose.msra.mxu0 0.0
    %1565 = vmatprep.subr.mxu0 0.0
    %1566 = vmatpush1.xpose.msra.mxu0 0.0
    %1567 = vmatprep.subr.mxu0 0.0
    %1568 = vmatpush1.xpose.msra.mxu0 0.0
    %1569 = vmatprep.subr.mxu0 0.0
    %1570 = vmatpush1.xpose.msra.mxu0 0.0
    %1571 = vmatprep.subr.mxu0 0.0
    %1572 = vmatpush1.xpose.msra.mxu0 0.0
    %1573 = vmatprep.subr.mxu0 0.0
    %1574 = vmatpush1.xpose.msra.mxu0 0.0
    %1575 = vmatprep.subr.mxu0 0.0
    %1576 = vmatpush1.xpose.msra.mxu0 0.0
    %1577 = vmatprep.subr.mxu0 0.0
    %1578 = vmatpush1.xpose.msra.mxu0 0.0
    %1579 = vmatprep.subr.mxu0 0.0
    %1580 = vmatpush1.xpose.msra.mxu0 0.0
    %1581 = vmatprep.subr.mxu0 0.0
    %1582 = vmatpush1.xpose.msra.mxu0 0.0
    %1583 = vmatprep.subr.mxu0 0.0
    %1584 = vmatpush1.xpose.msra.mxu0 0.0
    %1585 = vmatprep.subr.mxu0 0.0
    %1586 = vmatpush1.xpose.msra.mxu0 0.0
    %1587 = vmatprep.subr.mxu0 0.0
    %1588 = vmatpush1.xpose.msra.mxu0 0.0
    %1589 = vmatprep.subr.mxu0 0.0
    %1590 = vmatpush1.xpose.msra.mxu0 0.0
    %1591 = vmatprep.subr.mxu0 0.0
    %1592 = vmatpush1.xpose.msra.mxu0 0.0
    %1593 = vmatprep.subr.mxu0 0.0
    %1594 = vmatpush1.xpose.msra.mxu0 0.0
    %1595 = vmatprep.subr.mxu0 0.0
    %1596 = vmatpush1.xpose.msra.mxu0 0.0
    %1597 = vmatprep.subr.mxu0 0.0
    %1598 = vmatpush1.xpose.msra.mxu0 0.0
    %1599 = vmatprep.subr.mxu0 0.0
    %1600 = vmatpush1.xpose.msra.mxu0 0.0
    %1601 = vmatprep.subr.mxu0 0.0
    %1602 = vmatpush1.xpose.msra.mxu0 0.0
    %1603 = vmatprep.subr.mxu0 0.0
    %1604 = vmatpush1.xpose.msra.mxu0 0.0
    %1605 = vmatprep.subr.mxu0 0.0
    %1606 = vmatpush1.xpose.msra.mxu0 0.0
    %1607 = vmatprep.subr.mxu0 0.0
    %1608 = vmatpush1.xpose.msra.mxu0 0.0
    %1609 = vmatprep.subr.mxu0 0.0
    %1610 = vmatpush1.xpose.msra.mxu0 0.0
    %1611 = vmatprep.subr.mxu0 0.0
    %1612 = vmatpush1.xpose.msra.mxu0 0.0
    %1613 = vmatprep.mubr.f32.mxu0 0.0
    %1614 = vmatmul.mubr.f32.gmra.mrb[0].mxu0 %v1525
    %v1615 = vpop.f32.mrb[0].mxu0
    %v1616 = vadd.f32 0.0, %v1615
    %v1617 = vpop.f32.mrb[0].mxu0
    %1618 = vmatprep.mubr.f32.mxu0 0.0
    %1619 = vmatmul.mubr.f32.gmra.mrb[0].mxu0 %v1527
    %v1620 = vpop.f32.mrb[0].mxu0
    %v1621 = vadd.f32 0.0, %v1620
    %v1622 = vpop.f32.mrb[0].mxu0
    %1623 = vmatprep.mubr.f32.mxu0 0.0
    %1624 = vmatmul.mubr.f32.gmra.mrb[0].mxu0 %v1529
    %v1625 = vpop.f32.mrb[0].mxu0
    %v1626 = vadd.f32 0.0, %v1625
    %v1627 = vpop.f32.mrb[0].mxu0
    %1628 = vmatprep.mubr.f32.mxu0 0.0
    %1629 = vmatmul.mubr.f32.gmra.mrb[0].mxu0 %v1531
    %v1630 = vpop.f32.mrb[0].mxu0
    %v1631 = vadd.f32 0.0, %v1630
    %v1632 = vpop.f32.mrb[0].mxu0
    %1633 = vmatprep.mubr.f32.mxu0 0.0
    %1634 = vmatmul.mubr.f32.gmra.mrb[0].mxu0 %v1533
    %v1635 = vpop.f32.mrb[0].mxu0
    %v1636 = vadd.f32 0.0, %v1635
    %v1637 = vpop.f32.mrb[0].mxu0
    %1638 = vmatprep.mubr.f32.mxu0 0.0
    %1639 = vmatmul.mubr.f32.gmra.mrb[0].mxu0 %v1535
    %v1640 = vpop.f32.mrb[0].mxu0
    %v1641 = vadd.f32 0.0, %v1640
    %v1642 = vpop.f32.mrb[0].mxu0
    %1643 = vdwg.mxu0
    %v1644 = vmul.f32 %v1616, 0.35355338
    %v1645 = vmul.f32 %v1621, 0.35355338
    %v1646 = vmul.f32 %v1626, 0.35355338
    %v1647 = vmul.f32 %v1631, 0.35355338
    %v1648 = vmul.f32 %v1636, 0.35355338
    %v1649 = vmul.f32 %v1641, 0.35355338
    %v1650 = vadd.f32 %v1644, %v215
    %v1651 = vadd.f32 %v1645, %v216
    %v1652 = vadd.f32 %v1646, %v217
    %v1653 = vadd.f32 %v1647, %v218
    %v1654 = vadd.f32 %v1648, %v219
    %v1655 = vadd.f32 %v1649, %v220
    %v1656 = vsel %vm233, %v1650, -inf
    %1657 = vmax.xlane.f32.xlu0 %v1656
    %v1658 = vpop.xlane.xlu0 %1657
    %v1659 = vsel %vm233, %v1651, -inf
    %1660 = vmax.xlane.f32.xlu0 %v1659
    %v1661 = vpop.xlane.xlu0 %1660
    %v1662 = vsel %vm233, %v1652, -inf
    %1663 = vmax.xlane.f32.xlu0 %v1662
    %v1664 = vpop.xlane.xlu0 %1663
    %v1665 = vsel %vm233, %v1653, -inf
    %1666 = vmax.xlane.f32.xlu0 %v1665
    %v1667 = vpop.xlane.xlu0 %1666
    %v1668 = vsel %vm233, %v1654, -inf
    %1669 = vmax.xlane.f32.xlu0 %v1668
    %v1670 = vpop.xlane.xlu0 %1669
    %v1671 = vsel %vm233, %v1655, -inf
    %1672 = vmax.xlane.f32.xlu0 %v1671
    %v1673 = vpop.xlane.xlu0 %1672
    %v1674 = vsub.f32 %v1650, %v1658
    %v1675 = vsub.f32 %v1651, %v1661
    %v1676 = vsub.f32 %v1652, %v1664
    %v1677 = vsub.f32 %v1653, %v1667
    %v1678 = vsub.f32 %v1654, %v1670
    %v1679 = vsub.f32 %v1655, %v1673
    %v1680 = vmul.f32 %v1674, 1.442695
    %v1681 = vpow.pop %v1680
    %v1682 = vmul.f32 %v1675, 1.442695
    %v1683 = vpow.pop %v1682
    %v1684 = vmul.f32 %v1676, 1.442695
    %v1685 = vpow.pop %v1684
    %v1686 = vmul.f32 %v1677, 1.442695
    %v1687 = vpow.pop %v1686
    %v1688 = vmul.f32 %v1678, 1.442695
    %v1689 = vpow.pop %v1688
    %v1690 = vmul.f32 %v1679, 1.442695
    %v1691 = vpow.pop %v1690
    %v1692 = vsel %vm233, %v1681, 0.0
    %1693 = vadd.xlane.f32.xlu0 %v1692
    %v1694 = vpop.xlane.xlu0 %1693
    %v1695 = vsel %vm233, %v1683, 0.0
    %1696 = vadd.xlane.f32.xlu0 %v1695
    %v1697 = vpop.xlane.xlu0 %1696
    %v1698 = vsel %vm233, %v1685, 0.0
    %1699 = vadd.xlane.f32.xlu0 %v1698
    %v1700 = vpop.xlane.xlu0 %1699
    %v1701 = vsel %vm233, %v1687, 0.0
    %1702 = vadd.xlane.f32.xlu0 %v1701
    %v1703 = vpop.xlane.xlu0 %1702
    %v1704 = vsel %vm233, %v1689, 0.0
    %1705 = vadd.xlane.f32.xlu0 %v1704
    %v1706 = vpop.xlane.xlu0 %1705
    %v1707 = vsel %vm233, %v1691, 0.0
    %1708 = vadd.xlane.f32.xlu0 %v1707
    %v1709 = vpop.xlane.xlu0 %1708
    %v1710 = vrcp.pop %v1694
    %v1711 = vrcp.pop %v1697
    %v1712 = vrcp.pop %v1700
    %v1713 = vrcp.pop %v1703
    %v1714 = vrcp.pop %v1706
    %v1715 = vrcp.pop %v1709
    %v1716 = vmul.f32 %v1681, %v1710
    %v1717 = vmul.f32 %v1683, %v1711
    %v1718 = vmul.f32 %v1685, %v1712
    %v1719 = vmul.f32 %v1687, %v1713
    %v1720 = vmul.f32 %v1689, %v1714
    %v1721 = vmul.f32 %v1691, %v1715
    %1722 = vrot.lane.b32.xlu0 %v548, 48
    %v1723 = vpop.permute.xlu0 %1722
    %1724 = vrot.lane.b32.xlu0 %v553, 48
    %v1725 = vpop.permute.xlu0 %1724
    %1726 = vrot.lane.b32.xlu0 %v558, 48
    %v1727 = vpop.permute.xlu0 %1726
    %1728 = vrot.lane.b32.xlu0 %v563, 48
    %v1729 = vpop.permute.xlu0 %1728
    %1730 = vrot.lane.b32.xlu0 %v568, 48
    %v1731 = vpop.permute.xlu0 %1730
    %1732 = vrot.lane.b32.xlu0 %v573, 48
    %v1733 = vpop.permute.xlu0 %1732
    %v1741 = vsel %vm233, %v1716, 0
    %v1744 = vsel %vm233, %v1717, 0
    %v1747 = vsel %vm233, %v1718, 0
    %v1750 = vsel %vm233, %v1719, 0
    %v1753 = vsel %vm233, %v1720, 0
    %v1756 = vsel %vm233, %v1721, 0
    %1758 = vmatprep.subr.mxu0 0.0
    %1759 = vmatpush1.msra.mxu0 %v1723
    %1760 = vmatprep.subr.mxu0 0.0
    %1761 = vmatpush1.msra.mxu0 %v1725
    %1762 = vmatprep.subr.mxu0 0.0
    %1763 = vmatpush1.msra.mxu0 %v1727
    %1764 = vmatprep.subr.mxu0 0.0
    %1765 = vmatpush1.msra.mxu0 %v1729
    %1766 = vmatprep.subr.mxu0 0.0
    %1767 = vmatpush1.msra.mxu0 %v1731
    %1768 = vmatprep.subr.mxu0 0.0
    %1769 = vmatpush1.msra.mxu0 %v1733
    %1770 = vmatprep.subr.mxu0 0.0
    %1771 = vmatpush1.msra.mxu0 0.0
    %1772 = vmatprep.subr.mxu0 0.0
    %1773 = vmatpush1.msra.mxu0 0.0
    %1774 = vmatprep.subr.mxu0 0.0
    %1775 = vmatpush1.msra.mxu0 0.0
    %1776 = vmatprep.subr.mxu0 0.0
    %1777 = vmatpush1.msra.mxu0 0.0
    %1778 = vmatprep.subr.mxu0 0.0
    %1779 = vmatpush1.msra.mxu0 0.0
    %1780 = vmatprep.subr.mxu0 0.0
    %1781 = vmatpush1.msra.mxu0 0.0
    %1782 = vmatprep.subr.mxu0 0.0
    %1783 = vmatpush1.msra.mxu0 0.0
    %1784 = vmatprep.subr.mxu0 0.0
    %1785 = vmatpush1.msra.mxu0 0.0
    %1786 = vmatprep.subr.mxu0 0.0
    %1787 = vmatpush1.msra.mxu0 0.0
    %1788 = vmatprep.subr.mxu0 0.0
    %1789 = vmatpush1.msra.mxu0 0.0
    %1790 = vmatprep.subr.mxu0 0.0
    %1791 = vmatpush1.msra.mxu0 0.0
    %1792 = vmatprep.subr.mxu0 0.0
    %1793 = vmatpush1.msra.mxu0 0.0
    %1794 = vmatprep.subr.mxu0 0.0
    %1795 = vmatpush1.msra.mxu0 0.0
    %1796 = vmatprep.subr.mxu0 0.0
    %1797 = vmatpush1.msra.mxu0 0.0
    %1798 = vmatprep.subr.mxu0 0.0
    %1799 = vmatpush1.msra.mxu0 0.0
    %1800 = vmatprep.subr.mxu0 0.0
    %1801 = vmatpush1.msra.mxu0 0.0
    %1802 = vmatprep.subr.mxu0 0.0
    %1803 = vmatpush1.msra.mxu0 0.0
    %1804 = vmatprep.subr.mxu0 0.0
    %1805 = vmatpush1.msra.mxu0 0.0
    %1806 = vmatprep.subr.mxu0 0.0
    %1807 = vmatpush1.msra.mxu0 0.0
    %1808 = vmatprep.subr.mxu0 0.0
    %1809 = vmatpush1.msra.mxu0 0.0
    %1810 = vmatprep.subr.mxu0 0.0
    %1811 = vmatpush1.msra.mxu0 0.0
    %1812 = vmatprep.subr.mxu0 0.0
    %1813 = vmatpush1.msra.mxu0 0.0
    %1814 = vmatprep.subr.mxu0 0.0
    %1815 = vmatpush1.msra.mxu0 0.0
    %1816 = vmatprep.subr.mxu0 0.0
    %1817 = vmatpush1.msra.mxu0 0.0
    %1818 = vmatprep.subr.mxu0 0.0
    %1819 = vmatpush1.msra.mxu0 0.0
    %1820 = vmatprep.subr.mxu0 0.0
    %1821 = vmatpush1.msra.mxu0 0.0
    %1822 = vmatprep.mubr.f32.mxu0 0.0
    %1823 = vmatmul.mubr.f32.gmra.mrb[0].mxu0 %v1741
    %v1824 = vpop.f32.mrb[0].mxu0
    %v1825 = vadd.f32 0.0, %v1824
    %v1826 = vpop.f32.mrb[0].mxu0
    %1827 = vmatprep.mubr.f32.mxu0 0.0
    %1828 = vmatmul.mubr.f32.gmra.mrb[0].mxu0 %v1744
    %v1829 = vpop.f32.mrb[0].mxu0
    %v1830 = vadd.f32 0.0, %v1829
    %v1831 = vpop.f32.mrb[0].mxu0
    %1832 = vmatprep.mubr.f32.mxu0 0.0
    %1833 = vmatmul.mubr.f32.gmra.mrb[0].mxu0 %v1747
    %v1834 = vpop.f32.mrb[0].mxu0
    %v1835 = vadd.f32 0.0, %v1834
    %v1836 = vpop.f32.mrb[0].mxu0
    %1837 = vmatprep.mubr.f32.mxu0 0.0
    %1838 = vmatmul.mubr.f32.gmra.mrb[0].mxu0 %v1750
    %v1839 = vpop.f32.mrb[0].mxu0
    %v1840 = vadd.f32 0.0, %v1839
    %v1841 = vpop.f32.mrb[0].mxu0
    %1842 = vmatprep.mubr.f32.mxu0 0.0
    %1843 = vmatmul.mubr.f32.gmra.mrb[0].mxu0 %v1753
    %v1844 = vpop.f32.mrb[0].mxu0
    %v1845 = vadd.f32 0.0, %v1844
    %v1846 = vpop.f32.mrb[0].mxu0
    %1847 = vmatprep.mubr.f32.mxu0 0.0
    %1848 = vmatmul.mubr.f32.gmra.mrb[0].mxu0 %v1756
    %v1849 = vpop.f32.mrb[0].mxu0
    %v1850 = vadd.f32 0.0, %v1849
    %v1851 = vpop.f32.mrb[0].mxu0
    %1852 = vdwg.mxu0
    %v1854 = vsel %vm594, %v1825, 0
    %v1857 = vsel %vm594, %v1830, 0
    %v1860 = vsel %vm594, %v1835, 0
    %v1863 = vsel %vm594, %v1840, 0
    %v1866 = vsel %vm594, %v1845, 0
    %v1869 = vsel %vm594, %v1850, 0
    %1871 = vmatprep.subr.mxu0 0.0
    %1872 = vmatpush1.msra.mxu0 %v146
    %1873 = vmatprep.subr.mxu0 0.0
    %1874 = vmatpush1.msra.mxu0 0.0
    %1875 = vmatprep.subr.mxu0 0.0
    %1876 = vmatpush1.msra.mxu0 0.0
    %1877 = vmatprep.subr.mxu0 0.0
    %1878 = vmatpush1.msra.mxu0 0.0
    %1879 = vmatprep.subr.mxu0 0.0
    %1880 = vmatpush1.msra.mxu0 0.0
    %1881 = vmatprep.subr.mxu0 0.0
    %1882 = vmatpush1.msra.mxu0 0.0
    %1883 = vmatprep.subr.mxu0 0.0
    %1884 = vmatpush1.msra.mxu0 0.0
    %1885 = vmatprep.subr.mxu0 0.0
    %1886 = vmatpush1.msra.mxu0 0.0
    %1887 = vmatprep.subr.mxu0 0.0
    %1888 = vmatpush1.msra.mxu0 0.0
    %1889 = vmatprep.subr.mxu0 0.0
    %1890 = vmatpush1.msra.mxu0 0.0
    %1891 = vmatprep.subr.mxu0 0.0
    %1892 = vmatpush1.msra.mxu0 0.0
    %1893 = vmatprep.subr.mxu0 0.0
    %1894 = vmatpush1.msra.mxu0 0.0
    %1895 = vmatprep.subr.mxu0 0.0
    %1896 = vmatpush1.msra.mxu0 0.0
    %1897 = vmatprep.subr.mxu0 0.0
    %1898 = vmatpush1.msra.mxu0 0.0
    %1899 = vmatprep.subr.mxu0 0.0
    %1900 = vmatpush1.msra.mxu0 0.0
    %1901 = vmatprep.subr.mxu0 0.0
    %1902 = vmatpush1.msra.mxu0 0.0
    %1903 = vmatprep.subr.mxu0 0.0
    %1904 = vmatpush1.msra.mxu0 0.0
    %1905 = vmatprep.subr.mxu0 0.0
    %1906 = vmatpush1.msra.mxu0 0.0
    %1907 = vmatprep.subr.mxu0 0.0
    %1908 = vmatpush1.msra.mxu0 0.0
    %1909 = vmatprep.subr.mxu0 0.0
    %1910 = vmatpush1.msra.mxu0 0.0
    %1911 = vmatprep.subr.mxu0 0.0
    %1912 = vmatpush1.msra.mxu0 0.0
    %1913 = vmatprep.subr.mxu0 0.0
    %1914 = vmatpush1.msra.mxu0 0.0
    %1915 = vmatprep.subr.mxu0 0.0
    %1916 = vmatpush1.msra.mxu0 0.0
    %1917 = vmatprep.subr.mxu0 0.0
    %1918 = vmatpush1.msra.mxu0 0.0
    %1919 = vmatprep.subr.mxu0 0.0
    %1920 = vmatpush1.msra.mxu0 0.0
    %1921 = vmatprep.subr.mxu0 0.0
    %1922 = vmatpush1.msra.mxu0 0.0
    %1923 = vmatprep.subr.mxu0 0.0
    %1924 = vmatpush1.msra.mxu0 0.0
    %1925 = vmatprep.subr.mxu0 0.0
    %1926 = vmatpush1.msra.mxu0 0.0
    %1927 = vmatprep.subr.mxu0 0.0
    %1928 = vmatpush1.msra.mxu0 0.0
    %1929 = vmatprep.subr.mxu0 0.0
    %1930 = vmatpush1.msra.mxu0 0.0
    %1931 = vmatprep.subr.mxu0 0.0
    %1932 = vmatpush1.msra.mxu0 0.0
    %1933 = vmatprep.subr.mxu0 0.0
    %1934 = vmatpush1.msra.mxu0 0.0
    %1935 = vmatprep.mubr.f32.mxu0 0.0
    %1936 = vmatmul.mubr.f32.gmra.mrb[0].mxu0 %v1854
    %v1937 = vpop.f32.mrb[0].mxu0
    %v1938 = vadd.f32 0.0, %v1937
    %v1939 = vpop.f32.mrb[0].mxu0
    %1940 = vmatprep.mubr.f32.mxu0 0.0
    %1941 = vmatmul.mubr.f32.gmra.mrb[0].mxu0 %v1857
    %v1942 = vpop.f32.mrb[0].mxu0
    %v1943 = vadd.f32 0.0, %v1942
    %v1944 = vpop.f32.mrb[0].mxu0
    %1945 = vmatprep.mubr.f32.mxu0 0.0
    %1946 = vmatmul.mubr.f32.gmra.mrb[0].mxu0 %v1860
    %v1947 = vpop.f32.mrb[0].mxu0
    %v1948 = vadd.f32 0.0, %v1947
    %v1949 = vpop.f32.mrb[0].mxu0
    %1950 = vmatprep.mubr.f32.mxu0 0.0
    %1951 = vmatmul.mubr.f32.gmra.mrb[0].mxu0 %v1863
    %v1952 = vpop.f32.mrb[0].mxu0
    %v1953 = vadd.f32 0.0, %v1952
    %v1954 = vpop.f32.mrb[0].mxu0
    %1955 = vmatprep.mubr.f32.mxu0 0.0
    %1956 = vmatmul.mubr.f32.gmra.mrb[0].mxu0 %v1866
    %v1957 = vpop.f32.mrb[0].mxu0
    %v1958 = vadd.f32 0.0, %v1957
    %v1959 = vpop.f32.mrb[0].mxu0
    %1960 = vmatprep.mubr.f32.mxu0 0.0
    %1961 = vmatmul.mubr.f32.gmra.mrb[0].mxu0 %v1869
    %v1962 = vpop.f32.mrb[0].mxu0
    %v1963 = vadd.f32 0.0, %v1962
    %v1964 = vpop.f32.mrb[0].mxu0
    %1965 = vdwg.mxu0
    %v1966 = vadd.f32 %v1473, %v1938
    %v1967 = vadd.f32 %v1478, %v1943
    %v1968 = vadd.f32 %v1483, %v1948
    %v1969 = vadd.f32 %v1488, %v1953
    %v1970 = vadd.f32 %v1493, %v1958
    %v1971 = vadd.f32 %v1498, %v1963
    %1972 = vrot.lane.b32.xlu0 %v548, 104
    %v1973 = vpop.permute.xlu0 %1972
    %1974 = vrot.lane.b32.xlu0 %v553, 104
    %v1975 = vpop.permute.xlu0 %1974
    %1976 = vrot.lane.b32.xlu0 %v558, 104
    %v1977 = vpop.permute.xlu0 %1976
    %1978 = vrot.lane.b32.xlu0 %v563, 104
    %v1979 = vpop.permute.xlu0 %1978
    %1980 = vrot.lane.b32.xlu0 %v568, 104
    %v1981 = vpop.permute.xlu0 %1980
    %1982 = vrot.lane.b32.xlu0 %v573, 104
    %v1983 = vpop.permute.xlu0 %1982
    %1984 = vrot.lane.b32.xlu0 %v548, 72
    %v1985 = vpop.permute.xlu0 %1984
    %1986 = vrot.lane.b32.xlu0 %v553, 72
    %v1987 = vpop.permute.xlu0 %1986
    %1988 = vrot.lane.b32.xlu0 %v558, 72
    %v1989 = vpop.permute.xlu0 %1988
    %1990 = vrot.lane.b32.xlu0 %v563, 72
    %v1991 = vpop.permute.xlu0 %1990
    %1992 = vrot.lane.b32.xlu0 %v568, 72
    %v1993 = vpop.permute.xlu0 %1992
    %1994 = vrot.lane.b32.xlu0 %v573, 72
    %v1995 = vpop.permute.xlu0 %1994
    %v1996 = vsel %vm594, %v1973, 0
    %v1998 = vsel %vm594, %v1975, 0
    %v2000 = vsel %vm594, %v1977, 0
    %v2002 = vsel %vm594, %v1979, 0
    %v2004 = vsel %vm594, %v1981, 0
    %v2006 = vsel %vm594, %v1983, 0
    %v2008 = vsel %vm594, %v1985, 0
    %v2010 = vsel %vm594, %v1987, 0
    %v2012 = vsel %vm594, %v1989, 0
    %v2014 = vsel %vm594, %v1991, 0
    %v2016 = vsel %vm594, %v1993, 0
    %v2018 = vsel %vm594, %v1995, 0
    %2020 = vmatprep.subr.mxu0 0.0
    %2021 = vmatpush1.xpose.msra.mxu0 %v2008
    %2022 = vmatprep.subr.mxu0 0.0
    %2023 = vmatpush1.xpose.msra.mxu0 %v2010
    %2024 = vmatprep.subr.mxu0 0.0
    %2025 = vmatpush1.xpose.msra.mxu0 %v2012
    %2026 = vmatprep.subr.mxu0 0.0
    %2027 = vmatpush1.xpose.msra.mxu0 %v2014
    %2028 = vmatprep.subr.mxu0 0.0
    %2029 = vmatpush1.xpose.msra.mxu0 %v2016
    %2030 = vmatprep.subr.mxu0 0.0
    %2031 = vmatpush1.xpose.msra.mxu0 %v2018
    %2032 = vmatprep.subr.mxu0 0.0
    %2033 = vmatpush1.xpose.msra.mxu0 0.0
    %2034 = vmatprep.subr.mxu0 0.0
    %2035 = vmatpush1.xpose.msra.mxu0 0.0
    %2036 = vmatprep.subr.mxu0 0.0
    %2037 = vmatpush1.xpose.msra.mxu0 0.0
    %2038 = vmatprep.subr.mxu0 0.0
    %2039 = vmatpush1.xpose.msra.mxu0 0.0
    %2040 = vmatprep.subr.mxu0 0.0
    %2041 = vmatpush1.xpose.msra.mxu0 0.0
    %2042 = vmatprep.subr.mxu0 0.0
    %2043 = vmatpush1.xpose.msra.mxu0 0.0
    %2044 = vmatprep.subr.mxu0 0.0
    %2045 = vmatpush1.xpose.msra.mxu0 0.0
    %2046 = vmatprep.subr.mxu0 0.0
    %2047 = vmatpush1.xpose.msra.mxu0 0.0
    %2048 = vmatprep.subr.mxu0 0.0
    %2049 = vmatpush1.xpose.msra.mxu0 0.0
    %2050 = vmatprep.subr.mxu0 0.0
    %2051 = vmatpush1.xpose.msra.mxu0 0.0
    %2052 = vmatprep.subr.mxu0 0.0
    %2053 = vmatpush1.xpose.msra.mxu0 0.0
    %2054 = vmatprep.subr.mxu0 0.0
    %2055 = vmatpush1.xpose.msra.mxu0 0.0
    %2056 = vmatprep.subr.mxu0 0.0
    %2057 = vmatpush1.xpose.msra.mxu0 0.0
    %2058 = vmatprep.subr.mxu0 0.0
    %2059 = vmatpush1.xpose.msra.mxu0 0.0
    %2060 = vmatprep.subr.mxu0 0.0
    %2061 = vmatpush1.xpose.msra.mxu0 0.0
    %2062 = vmatprep.subr.mxu0 0.0
    %2063 = vmatpush1.xpose.msra.mxu0 0.0
    %2064 = vmatprep.subr.mxu0 0.0
    %2065 = vmatpush1.xpose.msra.mxu0 0.0
    %2066 = vmatprep.subr.mxu0 0.0
    %2067 = vmatpush1.xpose.msra.mxu0 0.0
    %2068 = vmatprep.subr.mxu0 0.0
    %2069 = vmatpush1.xpose.msra.mxu0 0.0
    %2070 = vmatprep.subr.mxu0 0.0
    %2071 = vmatpush1.xpose.msra.mxu0 0.0
    %2072 = vmatprep.subr.mxu0 0.0
    %2073 = vmatpush1.xpose.msra.mxu0 0.0
    %2074 = vmatprep.subr.mxu0 0.0
    %2075 = vmatpush1.xpose.msra.mxu0 0.0
    %2076 = vmatprep.subr.mxu0 0.0
    %2077 = vmatpush1.xpose.msra.mxu0 0.0
    %2078 = vmatprep.subr.mxu0 0.0
    %2079 = vmatpush1.xpose.msra.mxu0 0.0
    %2080 = vmatprep.subr.mxu0 0.0
    %2081 = vmatpush1.xpose.msra.mxu0 0.0
    %2082 = vmatprep.subr.mxu0 0.0
    %2083 = vmatpush1.xpose.msra.mxu0 0.0
    %2084 = vmatprep.mubr.f32.mxu0 0.0
    %2085 = vmatmul.mubr.f32.gmra.mrb[0].mxu0 %v1996
    %v2086 = vpop.f32.mrb[0].mxu0
    %v2087 = vadd.f32 0.0, %v2086
    %v2088 = vpop.f32.mrb[0].mxu0
    %2089 = vmatprep.mubr.f32.mxu0 0.0
    %2090 = vmatmul.mubr.f32.gmra.mrb[0].mxu0 %v1998
    %v2091 = vpop.f32.mrb[0].mxu0
    %v2092 = vadd.f32 0.0, %v2091
    %v2093 = vpop.f32.mrb[0].mxu0
    %2094 = vmatprep.mubr.f32.mxu0 0.0
    %2095 = vmatmul.mubr.f32.gmra.mrb[0].mxu0 %v2000
    %v2096 = vpop.f32.mrb[0].mxu0
    %v2097 = vadd.f32 0.0, %v2096
    %v2098 = vpop.f32.mrb[0].mxu0
    %2099 = vmatprep.mubr.f32.mxu0 0.0
    %2100 = vmatmul.mubr.f32.gmra.mrb[0].mxu0 %v2002
    %v2101 = vpop.f32.mrb[0].mxu0
    %v2102 = vadd.f32 0.0, %v2101
    %v2103 = vpop.f32.mrb[0].mxu0
    %2104 = vmatprep.mubr.f32.mxu0 0.0
    %2105 = vmatmul.mubr.f32.gmra.mrb[0].mxu0 %v2004
    %v2106 = vpop.f32.mrb[0].mxu0
    %v2107 = vadd.f32 0.0, %v2106
    %v2108 = vpop.f32.mrb[0].mxu0
    %2109 = vmatprep.mubr.f32.mxu0 0.0
    %2110 = vmatmul.mubr.f32.gmra.mrb[0].mxu0 %v2006
    %v2111 = vpop.f32.mrb[0].mxu0
    %v2112 = vadd.f32 0.0, %v2111
    %v2113 = vpop.f32.mrb[0].mxu0
    %2114 = vdwg.mxu0
    %v2115 = vmul.f32 %v2087, 0.35355338
    %v2116 = vmul.f32 %v2092, 0.35355338
    %v2117 = vmul.f32 %v2097, 0.35355338
    %v2118 = vmul.f32 %v2102, 0.35355338
    %v2119 = vmul.f32 %v2107, 0.35355338
    %v2120 = vmul.f32 %v2112, 0.35355338
    %v2121 = vadd.f32 %v2115, %v215
    %v2122 = vadd.f32 %v2116, %v216
    %v2123 = vadd.f32 %v2117, %v217
    %v2124 = vadd.f32 %v2118, %v218
    %v2125 = vadd.f32 %v2119, %v219
    %v2126 = vadd.f32 %v2120, %v220
    %v2127 = vsel %vm233, %v2121, -inf
    %2128 = vmax.xlane.f32.xlu0 %v2127
    %v2129 = vpop.xlane.xlu0 %2128
    %v2130 = vsel %vm233, %v2122, -inf
    %2131 = vmax.xlane.f32.xlu0 %v2130
    %v2132 = vpop.xlane.xlu0 %2131
    %v2133 = vsel %vm233, %v2123, -inf
    %2134 = vmax.xlane.f32.xlu0 %v2133
    %v2135 = vpop.xlane.xlu0 %2134
    %v2136 = vsel %vm233, %v2124, -inf
    %2137 = vmax.xlane.f32.xlu0 %v2136
    %v2138 = vpop.xlane.xlu0 %2137
    %v2139 = vsel %vm233, %v2125, -inf
    %2140 = vmax.xlane.f32.xlu0 %v2139
    %v2141 = vpop.xlane.xlu0 %2140
    %v2142 = vsel %vm233, %v2126, -inf
    %2143 = vmax.xlane.f32.xlu0 %v2142
    %v2144 = vpop.xlane.xlu0 %2143
    %v2145 = vsub.f32 %v2121, %v2129
    %v2146 = vsub.f32 %v2122, %v2132
    %v2147 = vsub.f32 %v2123, %v2135
    %v2148 = vsub.f32 %v2124, %v2138
    %v2149 = vsub.f32 %v2125, %v2141
    %v2150 = vsub.f32 %v2126, %v2144
    %v2151 = vmul.f32 %v2145, 1.442695
    %v2152 = vpow.pop %v2151
    %v2153 = vmul.f32 %v2146, 1.442695
    %v2154 = vpow.pop %v2153
    %v2155 = vmul.f32 %v2147, 1.442695
    %v2156 = vpow.pop %v2155
    %v2157 = vmul.f32 %v2148, 1.442695
    %v2158 = vpow.pop %v2157
    %v2159 = vmul.f32 %v2149, 1.442695
    %v2160 = vpow.pop %v2159
    %v2161 = vmul.f32 %v2150, 1.442695
    %v2162 = vpow.pop %v2161
    %v2163 = vsel %vm233, %v2152, 0.0
    %2164 = vadd.xlane.f32.xlu0 %v2163
    %v2165 = vpop.xlane.xlu0 %2164
    %v2166 = vsel %vm233, %v2154, 0.0
    %2167 = vadd.xlane.f32.xlu0 %v2166
    %v2168 = vpop.xlane.xlu0 %2167
    %v2169 = vsel %vm233, %v2156, 0.0
    %2170 = vadd.xlane.f32.xlu0 %v2169
    %v2171 = vpop.xlane.xlu0 %2170
    %v2172 = vsel %vm233, %v2158, 0.0
    %2173 = vadd.xlane.f32.xlu0 %v2172
    %v2174 = vpop.xlane.xlu0 %2173
    %v2175 = vsel %vm233, %v2160, 0.0
    %2176 = vadd.xlane.f32.xlu0 %v2175
    %v2177 = vpop.xlane.xlu0 %2176
    %v2178 = vsel %vm233, %v2162, 0.0
    %2179 = vadd.xlane.f32.xlu0 %v2178
    %v2180 = vpop.xlane.xlu0 %2179
    %v2181 = vrcp.pop %v2165
    %v2182 = vrcp.pop %v2168
    %v2183 = vrcp.pop %v2171
    %v2184 = vrcp.pop %v2174
    %v2185 = vrcp.pop %v2177
    %v2186 = vrcp.pop %v2180
    %v2187 = vmul.f32 %v2152, %v2181
    %v2188 = vmul.f32 %v2154, %v2182
    %v2189 = vmul.f32 %v2156, %v2183
    %v2190 = vmul.f32 %v2158, %v2184
    %v2191 = vmul.f32 %v2160, %v2185
    %v2192 = vmul.f32 %v2162, %v2186
    %2193 = vrot.lane.b32.xlu0 %v548, 40
    %v2194 = vpop.permute.xlu0 %2193
    %2195 = vrot.lane.b32.xlu0 %v553, 40
    %v2196 = vpop.permute.xlu0 %2195
    %2197 = vrot.lane.b32.xlu0 %v558, 40
    %v2198 = vpop.permute.xlu0 %2197
    %2199 = vrot.lane.b32.xlu0 %v563, 40
    %v2200 = vpop.permute.xlu0 %2199
    %2201 = vrot.lane.b32.xlu0 %v568, 40
    %v2202 = vpop.permute.xlu0 %2201
    %2203 = vrot.lane.b32.xlu0 %v573, 40
    %v2204 = vpop.permute.xlu0 %2203
    %v2212 = vsel %vm233, %v2187, 0
    %v2215 = vsel %vm233, %v2188, 0
    %v2218 = vsel %vm233, %v2189, 0
    %v2221 = vsel %vm233, %v2190, 0
    %v2224 = vsel %vm233, %v2191, 0
    %v2227 = vsel %vm233, %v2192, 0
    %2229 = vmatprep.subr.mxu0 0.0
    %2230 = vmatpush1.msra.mxu0 %v2194
    %2231 = vmatprep.subr.mxu0 0.0
    %2232 = vmatpush1.msra.mxu0 %v2196
    %2233 = vmatprep.subr.mxu0 0.0
    %2234 = vmatpush1.msra.mxu0 %v2198
    %2235 = vmatprep.subr.mxu0 0.0
    %2236 = vmatpush1.msra.mxu0 %v2200
    %2237 = vmatprep.subr.mxu0 0.0
    %2238 = vmatpush1.msra.mxu0 %v2202
    %2239 = vmatprep.subr.mxu0 0.0
    %2240 = vmatpush1.msra.mxu0 %v2204
    %2241 = vmatprep.subr.mxu0 0.0
    %2242 = vmatpush1.msra.mxu0 0.0
    %2243 = vmatprep.subr.mxu0 0.0
    %2244 = vmatpush1.msra.mxu0 0.0
    %2245 = vmatprep.subr.mxu0 0.0
    %2246 = vmatpush1.msra.mxu0 0.0
    %2247 = vmatprep.subr.mxu0 0.0
    %2248 = vmatpush1.msra.mxu0 0.0
    %2249 = vmatprep.subr.mxu0 0.0
    %2250 = vmatpush1.msra.mxu0 0.0
    %2251 = vmatprep.subr.mxu0 0.0
    %2252 = vmatpush1.msra.mxu0 0.0
    %2253 = vmatprep.subr.mxu0 0.0
    %2254 = vmatpush1.msra.mxu0 0.0
    %2255 = vmatprep.subr.mxu0 0.0
    %2256 = vmatpush1.msra.mxu0 0.0
    %2257 = vmatprep.subr.mxu0 0.0
    %2258 = vmatpush1.msra.mxu0 0.0
    %2259 = vmatprep.subr.mxu0 0.0
    %2260 = vmatpush1.msra.mxu0 0.0
    %2261 = vmatprep.subr.mxu0 0.0
    %2262 = vmatpush1.msra.mxu0 0.0
    %2263 = vmatprep.subr.mxu0 0.0
    %2264 = vmatpush1.msra.mxu0 0.0
    %2265 = vmatprep.subr.mxu0 0.0
    %2266 = vmatpush1.msra.mxu0 0.0
    %2267 = vmatprep.subr.mxu0 0.0
    %2268 = vmatpush1.msra.mxu0 0.0
    %2269 = vmatprep.subr.mxu0 0.0
    %2270 = vmatpush1.msra.mxu0 0.0
    %2271 = vmatprep.subr.mxu0 0.0
    %2272 = vmatpush1.msra.mxu0 0.0
    %2273 = vmatprep.subr.mxu0 0.0
    %2274 = vmatpush1.msra.mxu0 0.0
    %2275 = vmatprep.subr.mxu0 0.0
    %2276 = vmatpush1.msra.mxu0 0.0
    %2277 = vmatprep.subr.mxu0 0.0
    %2278 = vmatpush1.msra.mxu0 0.0
    %2279 = vmatprep.subr.mxu0 0.0
    %2280 = vmatpush1.msra.mxu0 0.0
    %2281 = vmatprep.subr.mxu0 0.0
    %2282 = vmatpush1.msra.mxu0 0.0
    %2283 = vmatprep.subr.mxu0 0.0
    %2284 = vmatpush1.msra.mxu0 0.0
    %2285 = vmatprep.subr.mxu0 0.0
    %2286 = vmatpush1.msra.mxu0 0.0
    %2287 = vmatprep.subr.mxu0 0.0
    %2288 = vmatpush1.msra.mxu0 0.0
    %2289 = vmatprep.subr.mxu0 0.0
    %2290 = vmatpush1.msra.mxu0 0.0
    %2291 = vmatprep.subr.mxu0 0.0
    %2292 = vmatpush1.msra.mxu0 0.0
    %2293 = vmatprep.mubr.f32.mxu0 0.0
    %2294 = vmatmul.mubr.f32.gmra.mrb[0].mxu0 %v2212
    %v2295 = vpop.f32.mrb[0].mxu0
    %v2296 = vadd.f32 0.0, %v2295
    %v2297 = vpop.f32.mrb[0].mxu0
    %2298 = vmatprep.mubr.f32.mxu0 0.0
    %2299 = vmatmul.mubr.f32.gmra.mrb[0].mxu0 %v2215
    %v2300 = vpop.f32.mrb[0].mxu0
    %v2301 = vadd.f32 0.0, %v2300
    %v2302 = vpop.f32.mrb[0].mxu0
    %2303 = vmatprep.mubr.f32.mxu0 0.0
    %2304 = vmatmul.mubr.f32.gmra.mrb[0].mxu0 %v2218
    %v2305 = vpop.f32.mrb[0].mxu0
    %v2306 = vadd.f32 0.0, %v2305
    %v2307 = vpop.f32.mrb[0].mxu0
    %2308 = vmatprep.mubr.f32.mxu0 0.0
    %2309 = vmatmul.mubr.f32.gmra.mrb[0].mxu0 %v2221
    %v2310 = vpop.f32.mrb[0].mxu0
    %v2311 = vadd.f32 0.0, %v2310
    %v2312 = vpop.f32.mrb[0].mxu0
    %2313 = vmatprep.mubr.f32.mxu0 0.0
    %2314 = vmatmul.mubr.f32.gmra.mrb[0].mxu0 %v2224
    %v2315 = vpop.f32.mrb[0].mxu0
    %v2316 = vadd.f32 0.0, %v2315
    %v2317 = vpop.f32.mrb[0].mxu0
    %2318 = vmatprep.mubr.f32.mxu0 0.0
    %2319 = vmatmul.mubr.f32.gmra.mrb[0].mxu0 %v2227
    %v2320 = vpop.f32.mrb[0].mxu0
    %v2321 = vadd.f32 0.0, %v2320
    %v2322 = vpop.f32.mrb[0].mxu0
    %2323 = vdwg.mxu0
    %v2325 = vsel %vm594, %v2296, 0
    %v2328 = vsel %vm594, %v2301, 0
    %v2331 = vsel %vm594, %v2306, 0
    %v2334 = vsel %vm594, %v2311, 0
    %v2337 = vsel %vm594, %v2316, 0
    %v2340 = vsel %vm594, %v2321, 0
    %2342 = vmatprep.subr.mxu0 0.0
    %2343 = vmatpush1.msra.mxu0 %v147
    %2344 = vmatprep.subr.mxu0 0.0
    %2345 = vmatpush1.msra.mxu0 0.0
    %2346 = vmatprep.subr.mxu0 0.0
    %2347 = vmatpush1.msra.mxu0 0.0
    %2348 = vmatprep.subr.mxu0 0.0
    %2349 = vmatpush1.msra.mxu0 0.0
    %2350 = vmatprep.subr.mxu0 0.0
    %2351 = vmatpush1.msra.mxu0 0.0
    %2352 = vmatprep.subr.mxu0 0.0
    %2353 = vmatpush1.msra.mxu0 0.0
    %2354 = vmatprep.subr.mxu0 0.0
    %2355 = vmatpush1.msra.mxu0 0.0
    %2356 = vmatprep.subr.mxu0 0.0
    %2357 = vmatpush1.msra.mxu0 0.0
    %2358 = vmatprep.subr.mxu0 0.0
    %2359 = vmatpush1.msra.mxu0 0.0
    %2360 = vmatprep.subr.mxu0 0.0
    %2361 = vmatpush1.msra.mxu0 0.0
    %2362 = vmatprep.subr.mxu0 0.0
    %2363 = vmatpush1.msra.mxu0 0.0
    %2364 = vmatprep.subr.mxu0 0.0
    %2365 = vmatpush1.msra.mxu0 0.0
    %2366 = vmatprep.subr.mxu0 0.0
    %2367 = vmatpush1.msra.mxu0 0.0
    %2368 = vmatprep.subr.mxu0 0.0
    %2369 = vmatpush1.msra.mxu0 0.0
    %2370 = vmatprep.subr.mxu0 0.0
    %2371 = vmatpush1.msra.mxu0 0.0
    %2372 = vmatprep.subr.mxu0 0.0
    %2373 = vmatpush1.msra.mxu0 0.0
    %2374 = vmatprep.subr.mxu0 0.0
    %2375 = vmatpush1.msra.mxu0 0.0
    %2376 = vmatprep.subr.mxu0 0.0
    %2377 = vmatpush1.msra.mxu0 0.0
    %2378 = vmatprep.subr.mxu0 0.0
    %2379 = vmatpush1.msra.mxu0 0.0
    %2380 = vmatprep.subr.mxu0 0.0
    %2381 = vmatpush1.msra.mxu0 0.0
    %2382 = vmatprep.subr.mxu0 0.0
    %2383 = vmatpush1.msra.mxu0 0.0
    %2384 = vmatprep.subr.mxu0 0.0
    %2385 = vmatpush1.msra.mxu0 0.0
    %2386 = vmatprep.subr.mxu0 0.0
    %2387 = vmatpush1.msra.mxu0 0.0
    %2388 = vmatprep.subr.mxu0 0.0
    %2389 = vmatpush1.msra.mxu0 0.0
    %2390 = vmatprep.subr.mxu0 0.0
    %2391 = vmatpush1.msra.mxu0 0.0
    %2392 = vmatprep.subr.mxu0 0.0
    %2393 = vmatpush1.msra.mxu0 0.0
    %2394 = vmatprep.subr.mxu0 0.0
    %2395 = vmatpush1.msra.mxu0 0.0
    %2396 = vmatprep.subr.mxu0 0.0
    %2397 = vmatpush1.msra.mxu0 0.0
    %2398 = vmatprep.subr.mxu0 0.0
    %2399 = vmatpush1.msra.mxu0 0.0
    %2400 = vmatprep.subr.mxu0 0.0
    %2401 = vmatpush1.msra.mxu0 0.0
    %2402 = vmatprep.subr.mxu0 0.0
    %2403 = vmatpush1.msra.mxu0 0.0
    %2404 = vmatprep.subr.mxu0 0.0
    %2405 = vmatpush1.msra.mxu0 0.0
    %2406 = vmatprep.mubr.f32.mxu0 0.0
    %2407 = vmatmul.mubr.f32.gmra.mrb[0].mxu0 %v2325
    %v2408 = vpop.f32.mrb[0].mxu0
    %v2409 = vadd.f32 0.0, %v2408
    %v2410 = vpop.f32.mrb[0].mxu0
    %2411 = vmatprep.mubr.f32.mxu0 0.0
    %2412 = vmatmul.mubr.f32.gmra.mrb[0].mxu0 %v2328
    %v2413 = vpop.f32.mrb[0].mxu0
    %v2414 = vadd.f32 0.0, %v2413
    %v2415 = vpop.f32.mrb[0].mxu0
    %2416 = vmatprep.mubr.f32.mxu0 0.0
    %2417 = vmatmul.mubr.f32.gmra.mrb[0].mxu0 %v2331
    %v2418 = vpop.f32.mrb[0].mxu0
    %v2419 = vadd.f32 0.0, %v2418
    %v2420 = vpop.f32.mrb[0].mxu0
    %2421 = vmatprep.mubr.f32.mxu0 0.0
    %2422 = vmatmul.mubr.f32.gmra.mrb[0].mxu0 %v2334
    %v2423 = vpop.f32.mrb[0].mxu0
    %v2424 = vadd.f32 0.0, %v2423
    %v2425 = vpop.f32.mrb[0].mxu0
    %2426 = vmatprep.mubr.f32.mxu0 0.0
    %2427 = vmatmul.mubr.f32.gmra.mrb[0].mxu0 %v2337
    %v2428 = vpop.f32.mrb[0].mxu0
    %v2429 = vadd.f32 0.0, %v2428
    %v2430 = vpop.f32.mrb[0].mxu0
    %2431 = vmatprep.mubr.f32.mxu0 0.0
    %2432 = vmatmul.mubr.f32.gmra.mrb[0].mxu0 %v2340
    %v2433 = vpop.f32.mrb[0].mxu0
    %v2434 = vadd.f32 0.0, %v2433
    %v2435 = vpop.f32.mrb[0].mxu0
    %2436 = vdwg.mxu0
    %v2437 = vadd.f32 %v1966, %v2409
    %v2438 = vadd.f32 %v1967, %v2414
    %v2439 = vadd.f32 %v1968, %v2419
    %v2440 = vadd.f32 %v1969, %v2424
    %v2441 = vadd.f32 %v1970, %v2429
    %v2442 = vadd.f32 %v1971, %v2434
    %v2443 = vadd.f32 %v353, %v2437
    %v2444 = vadd.f32 %v354, %v2438
    %v2445 = vadd.f32 %v355, %v2439
    %v2446 = vadd.f32 %v356, %v2440
    %v2447 = vadd.f32 %v357, %v2441
    %v2448 = vadd.f32 %v358, %v2442
    %v2450 = vlaneseq
    %v2451 = vshrl.u32 %v2450, 7
    %v2452 = vsub.s32 0, %v2451
    %v2453 = vrot.slane %v148, %v2452
    %v2455 = vadd.f32 %v2443, %v2453
    %v2456 = vadd.f32 %v2444, %v2453
    %v2457 = vadd.f32 %v2445, %v2453
    %v2458 = vadd.f32 %v2446, %v2453
    %v2459 = vadd.f32 %v2447, %v2453
    %v2460 = vadd.f32 %v2448, %v2453
    %v2461 = vsel %vm359, %v2455, 0.0
    %2462 = vadd.xlane.f32.xlu0 %v2461
    %v2463 = vpop.xlane.xlu0 %2462
    %v2464 = vsel %vm359, %v2456, 0.0
    %2465 = vadd.xlane.f32.xlu0 %v2464
    %v2466 = vpop.xlane.xlu0 %2465
    %v2467 = vsel %vm359, %v2457, 0.0
    %2468 = vadd.xlane.f32.xlu0 %v2467
    %v2469 = vpop.xlane.xlu0 %2468
    %v2470 = vsel %vm359, %v2458, 0.0
    %2471 = vadd.xlane.f32.xlu0 %v2470
    %v2472 = vpop.xlane.xlu0 %2471
    %v2473 = vsel %vm359, %v2459, 0.0
    %2474 = vadd.xlane.f32.xlu0 %v2473
    %v2475 = vpop.xlane.xlu0 %2474
    %v2476 = vsel %vm359, %v2460, 0.0
    %2477 = vadd.xlane.f32.xlu0 %v2476
    %v2478 = vpop.xlane.xlu0 %2477
    %v2479 = vmul.f32 %v2463, %v378
    %v2480 = vmul.f32 %v2466, %v378
    %v2481 = vmul.f32 %v2469, %v378
    %v2482 = vmul.f32 %v2472, %v378
    %v2483 = vmul.f32 %v2475, %v378
    %v2484 = vmul.f32 %v2478, %v378
    %v2485 = vsub.f32 %v2455, %v2479
    %v2486 = vsub.f32 %v2456, %v2480
    %v2487 = vsub.f32 %v2457, %v2481
    %v2488 = vsub.f32 %v2458, %v2482
    %v2489 = vsub.f32 %v2459, %v2483
    %v2490 = vsub.f32 %v2460, %v2484
    %v2491 = vmul.f32 %v2485, %v2485
    %v2492 = vmul.f32 %v2486, %v2486
    %v2493 = vmul.f32 %v2487, %v2487
    %v2494 = vmul.f32 %v2488, %v2488
    %v2495 = vmul.f32 %v2489, %v2489
    %v2496 = vmul.f32 %v2490, %v2490
    %v2497 = vsel %vm359, %v2491, 0.0
    %2498 = vadd.xlane.f32.xlu0 %v2497
    %v2499 = vpop.xlane.xlu0 %2498
    %v2500 = vsel %vm359, %v2492, 0.0
    %2501 = vadd.xlane.f32.xlu0 %v2500
    %v2502 = vpop.xlane.xlu0 %2501
    %v2503 = vsel %vm359, %v2493, 0.0
    %2504 = vadd.xlane.f32.xlu0 %v2503
    %v2505 = vpop.xlane.xlu0 %2504
    %v2506 = vsel %vm359, %v2494, 0.0
    %2507 = vadd.xlane.f32.xlu0 %v2506
    %v2508 = vpop.xlane.xlu0 %2507
    %v2509 = vsel %vm359, %v2495, 0.0
    %2510 = vadd.xlane.f32.xlu0 %v2509
    %v2511 = vpop.xlane.xlu0 %2510
    %v2512 = vsel %vm359, %v2496, 0.0
    %2513 = vadd.xlane.f32.xlu0 %v2512
    %v2514 = vpop.xlane.xlu0 %2513
    %v2515 = vmul.f32 %v2499, %v378
    %v2516 = vmul.f32 %v2502, %v378
    %v2517 = vmul.f32 %v2505, %v378
    %v2518 = vmul.f32 %v2508, %v378
    %v2519 = vmul.f32 %v2511, %v378
    %v2520 = vmul.f32 %v2514, %v378
    %v2521 = vadd.f32 %v2515, 1e-06
    %v2522 = vadd.f32 %v2516, 1e-06
    %v2523 = vadd.f32 %v2517, 1e-06
    %v2524 = vadd.f32 %v2518, 1e-06
    %v2525 = vadd.f32 %v2519, 1e-06
    %v2526 = vadd.f32 %v2520, 1e-06
    %v2527 = vrsqrt.pop %v2521
    %v2528 = vrsqrt.pop %v2522
    %v2529 = vrsqrt.pop %v2523
    %v2530 = vrsqrt.pop %v2524
    %v2531 = vrsqrt.pop %v2525
    %v2532 = vrsqrt.pop %v2526
    %v2533 = vmul.f32 %v2485, %v2527
    %v2534 = vmul.f32 %v2486, %v2528
    %v2535 = vmul.f32 %v2487, %v2529
    %v2536 = vmul.f32 %v2488, %v2530
    %v2537 = vmul.f32 %v2489, %v2531
    %v2538 = vmul.f32 %v2490, %v2532
    %v2540 = vlaneseq
    %v2541 = vshrl.u32 %v2540, 7
    %v2542 = vsub.s32 0, %v2541
    %v2543 = vrot.slane %v149, %v2542
    %v2545 = vmul.f32 %v2533, %v2543
    %v2546 = vmul.f32 %v2534, %v2543
    %v2547 = vmul.f32 %v2535, %v2543
    %v2548 = vmul.f32 %v2536, %v2543
    %v2549 = vmul.f32 %v2537, %v2543
    %v2550 = vmul.f32 %v2538, %v2543
    %v2552 = vlaneseq
    %v2553 = vshrl.u32 %v2552, 7
    %v2554 = vsub.s32 0, %v2553
    %v2555 = vrot.slane %v150, %v2554
    %v2557 = vadd.f32 %v2545, %v2555
    %v2558 = vadd.f32 %v2546, %v2555
    %v2559 = vadd.f32 %v2547, %v2555
    %v2560 = vadd.f32 %v2548, %v2555
    %v2561 = vadd.f32 %v2549, %v2555
    %v2562 = vadd.f32 %v2550, %v2555
    %v2564 = vlaneseq
    %v2565 = vshrl.u32 %v2564, 7
    %v2566 = vsub.s32 0, %v2565
    %v2567 = vrot.slane %v155, %v2566
    %v2570 = vsel %vm359, %v2557, 0
    %v2573 = vsel %vm359, %v2558, 0
    %v2576 = vsel %vm359, %v2559, 0
    %v2579 = vsel %vm359, %v2560, 0
    %v2582 = vsel %vm359, %v2561, 0
    %v2585 = vsel %vm359, %v2562, 0
    %2587 = vmatprep.subr.mxu0 0.0
    %2588 = vmatpush1.msra.mxu0 %v151
    %2589 = vmatprep.subr.mxu0 0.0
    %2590 = vmatpush1.msra.mxu0 %v152
    %2591 = vmatprep.subr.mxu0 0.0
    %2592 = vmatpush1.msra.mxu0 %v153
    %2593 = vmatprep.subr.mxu0 0.0
    %2594 = vmatpush1.msra.mxu0 %v154
    %2595 = vmatprep.subr.mxu0 0.0
    %2596 = vmatpush1.msra.mxu0 0.0
    %2597 = vmatprep.subr.mxu0 0.0
    %2598 = vmatpush1.msra.mxu0 0.0
    %2599 = vmatprep.subr.mxu0 0.0
    %2600 = vmatpush1.msra.mxu0 0.0
    %2601 = vmatprep.subr.mxu0 0.0
    %2602 = vmatpush1.msra.mxu0 0.0
    %2603 = vmatprep.subr.mxu0 0.0
    %2604 = vmatpush1.msra.mxu0 0.0
    %2605 = vmatprep.subr.mxu0 0.0
    %2606 = vmatpush1.msra.mxu0 0.0
    %2607 = vmatprep.subr.mxu0 0.0
    %2608 = vmatpush1.msra.mxu0 0.0
    %2609 = vmatprep.subr.mxu0 0.0
    %2610 = vmatpush1.msra.mxu0 0.0
    %2611 = vmatprep.subr.mxu0 0.0
    %2612 = vmatpush1.msra.mxu0 0.0
    %2613 = vmatprep.subr.mxu0 0.0
    %2614 = vmatpush1.msra.mxu0 0.0
    %2615 = vmatprep.subr.mxu0 0.0
    %2616 = vmatpush1.msra.mxu0 0.0
    %2617 = vmatprep.subr.mxu0 0.0
    %2618 = vmatpush1.msra.mxu0 0.0
    %2619 = vmatprep.subr.mxu0 0.0
    %2620 = vmatpush1.msra.mxu0 0.0
    %2621 = vmatprep.subr.mxu0 0.0
    %2622 = vmatpush1.msra.mxu0 0.0
    %2623 = vmatprep.subr.mxu0 0.0
    %2624 = vmatpush1.msra.mxu0 0.0
    %2625 = vmatprep.subr.mxu0 0.0
    %2626 = vmatpush1.msra.mxu0 0.0
    %2627 = vmatprep.subr.mxu0 0.0
    %2628 = vmatpush1.msra.mxu0 0.0
    %2629 = vmatprep.subr.mxu0 0.0
    %2630 = vmatpush1.msra.mxu0 0.0
    %2631 = vmatprep.subr.mxu0 0.0
    %2632 = vmatpush1.msra.mxu0 0.0
    %2633 = vmatprep.subr.mxu0 0.0
    %2634 = vmatpush1.msra.mxu0 0.0
    %2635 = vmatprep.subr.mxu0 0.0
    %2636 = vmatpush1.msra.mxu0 0.0
    %2637 = vmatprep.subr.mxu0 0.0
    %2638 = vmatpush1.msra.mxu0 0.0
    %2639 = vmatprep.subr.mxu0 0.0
    %2640 = vmatpush1.msra.mxu0 0.0
    %2641 = vmatprep.subr.mxu0 0.0
    %2642 = vmatpush1.msra.mxu0 0.0
    %2643 = vmatprep.subr.mxu0 0.0
    %2644 = vmatpush1.msra.mxu0 0.0
    %2645 = vmatprep.subr.mxu0 0.0
    %2646 = vmatpush1.msra.mxu0 0.0
    %2647 = vmatprep.subr.mxu0 0.0
    %2648 = vmatpush1.msra.mxu0 0.0
    %2649 = vmatprep.subr.mxu0 0.0
    %2650 = vmatpush1.msra.mxu0 0.0
    %2651 = vmatprep.mubr.f32.mxu0 0.0
    %2652 = vmatmul.mubr.f32.gmra.mrb[0].mxu0 %v2570
    %v2653 = vpop.f32.mrb[0].mxu0
    %v2654 = vadd.f32 %v2567, %v2653
    %v2655 = vpop.f32.mrb[0].mxu0
    %2656 = vmatprep.mubr.f32.mxu0 0.0
    %2657 = vmatmul.mubr.f32.gmra.mrb[0].mxu0 %v2573
    %v2658 = vpop.f32.mrb[0].mxu0
    %v2659 = vadd.f32 %v2567, %v2658
    %v2660 = vpop.f32.mrb[0].mxu0
    %2661 = vmatprep.mubr.f32.mxu0 0.0
    %2662 = vmatmul.mubr.f32.gmra.mrb[0].mxu0 %v2576
    %v2663 = vpop.f32.mrb[0].mxu0
    %v2664 = vadd.f32 %v2567, %v2663
    %v2665 = vpop.f32.mrb[0].mxu0
    %2666 = vmatprep.mubr.f32.mxu0 0.0
    %2667 = vmatmul.mubr.f32.gmra.mrb[0].mxu0 %v2579
    %v2668 = vpop.f32.mrb[0].mxu0
    %v2669 = vadd.f32 %v2567, %v2668
    %v2670 = vpop.f32.mrb[0].mxu0
    %2671 = vmatprep.mubr.f32.mxu0 0.0
    %2672 = vmatmul.mubr.f32.gmra.mrb[0].mxu0 %v2582
    %v2673 = vpop.f32.mrb[0].mxu0
    %v2674 = vadd.f32 %v2567, %v2673
    %v2675 = vpop.f32.mrb[0].mxu0
    %2676 = vmatprep.mubr.f32.mxu0 0.0
    %2677 = vmatmul.mubr.f32.gmra.mrb[0].mxu0 %v2585
    %v2678 = vpop.f32.mrb[0].mxu0
    %v2679 = vadd.f32 %v2567, %v2678
    %v2680 = vpop.f32.mrb[0].mxu0
    %2681 = vdwg.mxu0
    %v2682 = vmul.f32 %v2654, 0.5
    %v2683 = vmul.f32 %v2659, 0.5
    %v2684 = vmul.f32 %v2664, 0.5
    %v2685 = vmul.f32 %v2669, 0.5
    %v2686 = vmul.f32 %v2674, 0.5
    %v2687 = vmul.f32 %v2679, 0.5
    %v2688 = vmul.f32 %v2654, 0.70710677
    %v2689 = vmul.f32 %v2659, 0.70710677
    %v2690 = vmul.f32 %v2664, 0.70710677
    %v2691 = vmul.f32 %v2669, 0.70710677
    %v2692 = vmul.f32 %v2674, 0.70710677
    %v2693 = vmul.f32 %v2679, 0.70710677
    %v2694 = verf.f32.pop %v2688
    %v2695 = verf.f32.pop %v2689
    %v2696 = verf.f32.pop %v2690
    %v2697 = verf.f32.pop %v2691
    %v2698 = verf.f32.pop %v2692
    %v2699 = verf.f32.pop %v2693
    %v2700 = vadd.f32 %v2694, 1.0
    %v2701 = vadd.f32 %v2695, 1.0
    %v2702 = vadd.f32 %v2696, 1.0
    %v2703 = vadd.f32 %v2697, 1.0
    %v2704 = vadd.f32 %v2698, 1.0
    %v2705 = vadd.f32 %v2699, 1.0
    %v2706 = vmul.f32 %v2682, %v2700
    %v2707 = vmul.f32 %v2683, %v2701
    %v2708 = vmul.f32 %v2684, %v2702
    %v2709 = vmul.f32 %v2685, %v2703
    %v2710 = vmul.f32 %v2686, %v2704
    %v2711 = vmul.f32 %v2687, %v2705
    %v2713 = vlaneseq
    %v2714 = vshrl.u32 %v2713, 7
    %v2715 = vsub.s32 0, %v2714
    %v2716 = vrot.slane %v172, %v2715
    %2718 = vmatprep.subr.mxu0 0.0
    %2719 = vmatpush1.msra.mxu0 %v156
    %2720 = vmatprep.subr.mxu0 0.0
    %2721 = vmatpush1.msra.mxu0 %v157
    %2722 = vmatprep.subr.mxu0 0.0
    %2723 = vmatpush1.msra.mxu0 %v158
    %2724 = vmatprep.subr.mxu0 0.0
    %2725 = vmatpush1.msra.mxu0 %v159
    %2726 = vmatprep.subr.mxu0 0.0
    %2727 = vmatpush1.msra.mxu0 %v160
    %2728 = vmatprep.subr.mxu0 0.0
    %2729 = vmatpush1.msra.mxu0 %v161
    %2730 = vmatprep.subr.mxu0 0.0
    %2731 = vmatpush1.msra.mxu0 %v162
    %2732 = vmatprep.subr.mxu0 0.0
    %2733 = vmatpush1.msra.mxu0 %v163
    %2734 = vmatprep.subr.mxu0 0.0
    %2735 = vmatpush1.msra.mxu0 %v164
    %2736 = vmatprep.subr.mxu0 0.0
    %2737 = vmatpush1.msra.mxu0 %v165
    %2738 = vmatprep.subr.mxu0 0.0
    %2739 = vmatpush1.msra.mxu0 %v166
    %2740 = vmatprep.subr.mxu0 0.0
    %2741 = vmatpush1.msra.mxu0 %v167
    %2742 = vmatprep.subr.mxu0 0.0
    %2743 = vmatpush1.msra.mxu0 %v168
    %2744 = vmatprep.subr.mxu0 0.0
    %2745 = vmatpush1.msra.mxu0 %v169
    %2746 = vmatprep.subr.mxu0 0.0
    %2747 = vmatpush1.msra.mxu0 %v170
    %2748 = vmatprep.subr.mxu0 0.0
    %2749 = vmatpush1.msra.mxu0 %v171
    %2750 = vmatprep.subr.mxu0 0.0
    %2751 = vmatpush1.msra.mxu0 0.0
    %2752 = vmatprep.subr.mxu0 0.0
    %2753 = vmatpush1.msra.mxu0 0.0
    %2754 = vmatprep.subr.mxu0 0.0
    %2755 = vmatpush1.msra.mxu0 0.0
    %2756 = vmatprep.subr.mxu0 0.0
    %2757 = vmatpush1.msra.mxu0 0.0
    %2758 = vmatprep.subr.mxu0 0.0
    %2759 = vmatpush1.msra.mxu0 0.0
    %2760 = vmatprep.subr.mxu0 0.0
    %2761 = vmatpush1.msra.mxu0 0.0
    %2762 = vmatprep.subr.mxu0 0.0
    %2763 = vmatpush1.msra.mxu0 0.0
    %2764 = vmatprep.subr.mxu0 0.0
    %2765 = vmatpush1.msra.mxu0 0.0
    %2766 = vmatprep.subr.mxu0 0.0
    %2767 = vmatpush1.msra.mxu0 0.0
    %2768 = vmatprep.subr.mxu0 0.0
    %2769 = vmatpush1.msra.mxu0 0.0
    %2770 = vmatprep.subr.mxu0 0.0
    %2771 = vmatpush1.msra.mxu0 0.0
    %2772 = vmatprep.subr.mxu0 0.0
    %2773 = vmatpush1.msra.mxu0 0.0
    %2774 = vmatprep.subr.mxu0 0.0
    %2775 = vmatpush1.msra.mxu0 0.0
    %2776 = vmatprep.subr.mxu0 0.0
    %2777 = vmatpush1.msra.mxu0 0.0
    %2778 = vmatprep.subr.mxu0 0.0
    %2779 = vmatpush1.msra.mxu0 0.0
    %2780 = vmatprep.subr.mxu0 0.0
    %2781 = vmatpush1.msra.mxu0 0.0
    %2782 = vmatprep.mubr.f32.mxu0 0.0
    %2783 = vmatmul.mubr.f32.gmra.mrb[0].mxu0 %v2706
    %v2784 = vpop.f32.mrb[0].mxu0
    %v2785 = vadd.f32 %v2716, %v2784
    %v2786 = vpop.f32.mrb[0].mxu0
    %2787 = vmatprep.mubr.f32.mxu0 0.0
    %2788 = vmatmul.mubr.f32.gmra.mrb[0].mxu0 %v2707
    %v2789 = vpop.f32.mrb[0].mxu0
    %v2790 = vadd.f32 %v2716, %v2789
    %v2791 = vpop.f32.mrb[0].mxu0
    %2792 = vmatprep.mubr.f32.mxu0 0.0
    %2793 = vmatmul.mubr.f32.gmra.mrb[0].mxu0 %v2708
    %v2794 = vpop.f32.mrb[0].mxu0
    %v2795 = vadd.f32 %v2716, %v2794
    %v2796 = vpop.f32.mrb[0].mxu0
    %2797 = vmatprep.mubr.f32.mxu0 0.0
    %2798 = vmatmul.mubr.f32.gmra.mrb[0].mxu0 %v2709
    %v2799 = vpop.f32.mrb[0].mxu0
    %v2800 = vadd.f32 %v2716, %v2799
    %v2801 = vpop.f32.mrb[0].mxu0
    %2802 = vmatprep.mubr.f32.mxu0 0.0
    %2803 = vmatmul.mubr.f32.gmra.mrb[0].mxu0 %v2710
    %v2804 = vpop.f32.mrb[0].mxu0
    %v2805 = vadd.f32 %v2716, %v2804
    %v2806 = vpop.f32.mrb[0].mxu0
    %2807 = vmatprep.mubr.f32.mxu0 0.0
    %2808 = vmatmul.mubr.f32.gmra.mrb[0].mxu0 %v2711
    %v2809 = vpop.f32.mrb[0].mxu0
    %v2810 = vadd.f32 %v2716, %v2809
    %v2811 = vpop.f32.mrb[0].mxu0
    %2812 = vdwg.mxu0
    %v2813 = vadd.f32 %v2455, %v2785
    %v2814 = vadd.f32 %v2456, %v2790
    %v2815 = vadd.f32 %v2457, %v2795
    %v2816 = vadd.f32 %v2458, %v2800
    %v2817 = vadd.f32 %v2459, %v2805
    %v2818 = vadd.f32 %v2460, %v2810
    %v2819 = vsel %vm359, %v2813, 0.0
    %2820 = vadd.xlane.f32.xlu0 %v2819
    %v2821 = vpop.xlane.xlu0 %2820
    %v2822 = vsel %vm359, %v2814, 0.0
    %2823 = vadd.xlane.f32.xlu0 %v2822
    %v2824 = vpop.xlane.xlu0 %2823
    %v2825 = vsel %vm359, %v2815, 0.0
    %2826 = vadd.xlane.f32.xlu0 %v2825
    %v2827 = vpop.xlane.xlu0 %2826
    %v2828 = vsel %vm359, %v2816, 0.0
    %2829 = vadd.xlane.f32.xlu0 %v2828
    %v2830 = vpop.xlane.xlu0 %2829
    %v2831 = vsel %vm359, %v2817, 0.0
    %2832 = vadd.xlane.f32.xlu0 %v2831
    %v2833 = vpop.xlane.xlu0 %2832
    %v2834 = vsel %vm359, %v2818, 0.0
    %2835 = vadd.xlane.f32.xlu0 %v2834
    %v2836 = vpop.xlane.xlu0 %2835
    %v2837 = vmul.f32 %v2821, %v378
    %v2838 = vmul.f32 %v2824, %v378
    %v2839 = vmul.f32 %v2827, %v378
    %v2840 = vmul.f32 %v2830, %v378
    %v2841 = vmul.f32 %v2833, %v378
    %v2842 = vmul.f32 %v2836, %v378
    %v2843 = vsub.f32 %v2813, %v2837
    %v2844 = vsub.f32 %v2814, %v2838
    %v2845 = vsub.f32 %v2815, %v2839
    %v2846 = vsub.f32 %v2816, %v2840
    %v2847 = vsub.f32 %v2817, %v2841
    %v2848 = vsub.f32 %v2818, %v2842
    %v2849 = vmul.f32 %v2843, %v2843
    %v2850 = vmul.f32 %v2844, %v2844
    %v2851 = vmul.f32 %v2845, %v2845
    %v2852 = vmul.f32 %v2846, %v2846
    %v2853 = vmul.f32 %v2847, %v2847
    %v2854 = vmul.f32 %v2848, %v2848
    %v2855 = vsel %vm359, %v2849, 0.0
    %2856 = vadd.xlane.f32.xlu0 %v2855
    %v2857 = vpop.xlane.xlu0 %2856
    %v2858 = vsel %vm359, %v2850, 0.0
    %2859 = vadd.xlane.f32.xlu0 %v2858
    %v2860 = vpop.xlane.xlu0 %2859
    %v2861 = vsel %vm359, %v2851, 0.0
    %2862 = vadd.xlane.f32.xlu0 %v2861
    %v2863 = vpop.xlane.xlu0 %2862
    %v2864 = vsel %vm359, %v2852, 0.0
    %2865 = vadd.xlane.f32.xlu0 %v2864
    %v2866 = vpop.xlane.xlu0 %2865
    %v2867 = vsel %vm359, %v2853, 0.0
    %2868 = vadd.xlane.f32.xlu0 %v2867
    %v2869 = vpop.xlane.xlu0 %2868
    %v2870 = vsel %vm359, %v2854, 0.0
    %2871 = vadd.xlane.f32.xlu0 %v2870
    %v2872 = vpop.xlane.xlu0 %2871
    %v2873 = vmul.f32 %v2857, %v378
    %v2874 = vmul.f32 %v2860, %v378
    %v2875 = vmul.f32 %v2863, %v378
    %v2876 = vmul.f32 %v2866, %v378
    %v2877 = vmul.f32 %v2869, %v378
    %v2878 = vmul.f32 %v2872, %v378
    %v2879 = vadd.f32 %v2873, 1e-06
    %v2880 = vadd.f32 %v2874, 1e-06
    %v2881 = vadd.f32 %v2875, 1e-06
    %v2882 = vadd.f32 %v2876, 1e-06
    %v2883 = vadd.f32 %v2877, 1e-06
    %v2884 = vadd.f32 %v2878, 1e-06
    %v2885 = vrsqrt.pop %v2879
    %v2886 = vrsqrt.pop %v2880
    %v2887 = vrsqrt.pop %v2881
    %v2888 = vrsqrt.pop %v2882
    %v2889 = vrsqrt.pop %v2883
    %v2890 = vrsqrt.pop %v2884
    %v2891 = vmul.f32 %v2843, %v2885
    %v2892 = vmul.f32 %v2844, %v2886
    %v2893 = vmul.f32 %v2845, %v2887
    %v2894 = vmul.f32 %v2846, %v2888
    %v2895 = vmul.f32 %v2847, %v2889
    %v2896 = vmul.f32 %v2848, %v2890
    %v2898 = vlaneseq
    %v2899 = vshrl.u32 %v2898, 7
    %v2900 = vsub.s32 0, %v2899
    %v2901 = vrot.slane %v173, %v2900
    %v2903 = vmul.f32 %v2891, %v2901
    %v2904 = vmul.f32 %v2892, %v2901
    %v2905 = vmul.f32 %v2893, %v2901
    %v2906 = vmul.f32 %v2894, %v2901
    %v2907 = vmul.f32 %v2895, %v2901
    %v2908 = vmul.f32 %v2896, %v2901
    %v2910 = vlaneseq
    %v2911 = vshrl.u32 %v2910, 7
    %v2912 = vsub.s32 0, %v2911
    %v2913 = vrot.slane %v174, %v2912
    %v2915 = vadd.f32 %v2903, %v2913
    %v2916 = vadd.f32 %v2904, %v2913
    %v2917 = vadd.f32 %v2905, %v2913
    %v2918 = vadd.f32 %v2906, %v2913
    %v2919 = vadd.f32 %v2907, %v2913
    %v2920 = vadd.f32 %v2908, %v2913
    %v2922 = vsel %vm359, %v2915, 0
    %v2925 = vsel %vm359, %v2916, 0
    %v2928 = vsel %vm359, %v2917, 0
    %v2931 = vsel %vm359, %v2918, 0
    %v2934 = vsel %vm359, %v2919, 0
    %v2937 = vsel %vm359, %v2920, 0
    %2939 = vmatprep.subr.mxu0 0.0
    %2940 = vmatpush1.msra.mxu0 %v175
    %2941 = vmatprep.subr.mxu0 0.0
    %2942 = vmatpush1.msra.mxu0 %v176
    %2943 = vmatprep.subr.mxu0 0.0
    %2944 = vmatpush1.msra.mxu0 %v177
    %2945 = vmatprep.subr.mxu0 0.0
    %2946 = vmatpush1.msra.mxu0 %v178
    %2947 = vmatprep.subr.mxu0 0.0
    %2948 = vmatpush1.msra.mxu0 0.0
    %2949 = vmatprep.subr.mxu0 0.0
    %2950 = vmatpush1.msra.mxu0 0.0
    %2951 = vmatprep.subr.mxu0 0.0
    %2952 = vmatpush1.msra.mxu0 0.0
    %2953 = vmatprep.subr.mxu0 0.0
    %2954 = vmatpush1.msra.mxu0 0.0
    %2955 = vmatprep.subr.mxu0 0.0
    %2956 = vmatpush1.msra.mxu0 0.0
    %2957 = vmatprep.subr.mxu0 0.0
    %2958 = vmatpush1.msra.mxu0 0.0
    %2959 = vmatprep.subr.mxu0 0.0
    %2960 = vmatpush1.msra.mxu0 0.0
    %2961 = vmatprep.subr.mxu0 0.0
    %2962 = vmatpush1.msra.mxu0 0.0
    %2963 = vmatprep.subr.mxu0 0.0
    %2964 = vmatpush1.msra.mxu0 0.0
    %2965 = vmatprep.subr.mxu0 0.0
    %2966 = vmatpush1.msra.mxu0 0.0
    %2967 = vmatprep.subr.mxu0 0.0
    %2968 = vmatpush1.msra.mxu0 0.0
    %2969 = vmatprep.subr.mxu0 0.0
    %2970 = vmatpush1.msra.mxu0 0.0
    %2971 = vmatprep.subr.mxu0 0.0
    %2972 = vmatpush1.msra.mxu0 0.0
    %2973 = vmatprep.subr.mxu0 0.0
    %2974 = vmatpush1.msra.mxu0 0.0
    %2975 = vmatprep.subr.mxu0 0.0
    %2976 = vmatpush1.msra.mxu0 0.0
    %2977 = vmatprep.subr.mxu0 0.0
    %2978 = vmatpush1.msra.mxu0 0.0
    %2979 = vmatprep.subr.mxu0 0.0
    %2980 = vmatpush1.msra.mxu0 0.0
    %2981 = vmatprep.subr.mxu0 0.0
    %2982 = vmatpush1.msra.mxu0 0.0
    %2983 = vmatprep.subr.mxu0 0.0
    %2984 = vmatpush1.msra.mxu0 0.0
    %2985 = vmatprep.subr.mxu0 0.0
    %2986 = vmatpush1.msra.mxu0 0.0
    %2987 = vmatprep.subr.mxu0 0.0
    %2988 = vmatpush1.msra.mxu0 0.0
    %2989 = vmatprep.subr.mxu0 0.0
    %2990 = vmatpush1.msra.mxu0 0.0
    %2991 = vmatprep.subr.mxu0 0.0
    %2992 = vmatpush1.msra.mxu0 0.0
    %2993 = vmatprep.subr.mxu0 0.0
    %2994 = vmatpush1.msra.mxu0 0.0
    %2995 = vmatprep.subr.mxu0 0.0
    %2996 = vmatpush1.msra.mxu0 0.0
    %2997 = vmatprep.subr.mxu0 0.0
    %2998 = vmatpush1.msra.mxu0 0.0
    %2999 = vmatprep.subr.mxu0 0.0
    %3000 = vmatpush1.msra.mxu0 0.0
    %3001 = vmatprep.subr.mxu0 0.0
    %3002 = vmatpush1.msra.mxu0 0.0
    %3003 = vmatprep.mubr.f32.mxu0 0.0
    %3004 = vmatmul.mubr.f32.gmra.mrb[0].mxu0 %v2922
    %v3005 = vpop.f32.mrb[0].mxu0
    %v3006 = vadd.f32 0.0, %v3005
    %v3007 = vpop.f32.mrb[0].mxu0
    %3008 = vmatprep.mubr.f32.mxu0 0.0
    %3009 = vmatmul.mubr.f32.gmra.mrb[0].mxu0 %v2925
    %v3010 = vpop.f32.mrb[0].mxu0
    %v3011 = vadd.f32 0.0, %v3010
    %v3012 = vpop.f32.mrb[0].mxu0
    %3013 = vmatprep.mubr.f32.mxu0 0.0
    %3014 = vmatmul.mubr.f32.gmra.mrb[0].mxu0 %v2928
    %v3015 = vpop.f32.mrb[0].mxu0
    %v3016 = vadd.f32 0.0, %v3015
    %v3017 = vpop.f32.mrb[0].mxu0
    %3018 = vmatprep.mubr.f32.mxu0 0.0
    %3019 = vmatmul.mubr.f32.gmra.mrb[0].mxu0 %v2931
    %v3020 = vpop.f32.mrb[0].mxu0
    %v3021 = vadd.f32 0.0, %v3020
    %v3022 = vpop.f32.mrb[0].mxu0
    %3023 = vmatprep.mubr.f32.mxu0 0.0
    %3024 = vmatmul.mubr.f32.gmra.mrb[0].mxu0 %v2934
    %v3025 = vpop.f32.mrb[0].mxu0
    %v3026 = vadd.f32 0.0, %v3025
    %v3027 = vpop.f32.mrb[0].mxu0
    %3028 = vmatprep.mubr.f32.mxu0 0.0
    %3029 = vmatmul.mubr.f32.gmra.mrb[0].mxu0 %v2937
    %v3030 = vpop.f32.mrb[0].mxu0
    %v3031 = vadd.f32 0.0, %v3030
    %v3032 = vpop.f32.mrb[0].mxu0
    %3033 = vdwg.mxu0
    %3040 = vrot.lane.b32.xlu0 %v3006, 96
    %v3041 = vpop.permute.xlu0 %3040
    %3042 = vrot.lane.b32.xlu0 %v3011, 96
    %v3043 = vpop.permute.xlu0 %3042
    %3044 = vrot.lane.b32.xlu0 %v3016, 96
    %v3045 = vpop.permute.xlu0 %3044
    %3046 = vrot.lane.b32.xlu0 %v3021, 96
    %v3047 = vpop.permute.xlu0 %3046
    %3048 = vrot.lane.b32.xlu0 %v3026, 96
    %v3049 = vpop.permute.xlu0 %3048
    %3050 = vrot.lane.b32.xlu0 %v3031, 96
    %v3051 = vpop.permute.xlu0 %3050
    %v3052 = vsel %vm594, %v3006, 0
    %v3054 = vsel %vm594, %v3011, 0
    %v3056 = vsel %vm594, %v3016, 0
    %v3058 = vsel %vm594, %v3021, 0
    %v3060 = vsel %vm594, %v3026, 0
    %v3062 = vsel %vm594, %v3031, 0
    %v3064 = vsel %vm594, %v3041, 0
    %v3066 = vsel %vm594, %v3043, 0
    %v3068 = vsel %vm594, %v3045, 0
    %v3070 = vsel %vm594, %v3047, 0
    %v3072 = vsel %vm594, %v3049, 0
    %v3074 = vsel %vm594, %v3051, 0
    %3076 = vmatprep.subr.mxu0 0.0
    %3077 = vmatpush1.xpose.msra.mxu0 %v3064
    %3078 = vmatprep.subr.mxu0 0.0
    %3079 = vmatpush1.xpose.msra.mxu0 %v3066
    %3080 = vmatprep.subr.mxu0 0.0
    %3081 = vmatpush1.xpose.msra.mxu0 %v3068
    %3082 = vmatprep.subr.mxu0 0.0
    %3083 = vmatpush1.xpose.msra.mxu0 %v3070
    %3084 = vmatprep.subr.mxu0 0.0
    %3085 = vmatpush1.xpose.msra.mxu0 %v3072
    %3086 = vmatprep.subr.mxu0 0.0
    %3087 = vmatpush1.xpose.msra.mxu0 %v3074
    %3088 = vmatprep.subr.mxu0 0.0
    %3089 = vmatpush1.xpose.msra.mxu0 0.0
    %3090 = vmatprep.subr.mxu0 0.0
    %3091 = vmatpush1.xpose.msra.mxu0 0.0
    %3092 = vmatprep.subr.mxu0 0.0
    %3093 = vmatpush1.xpose.msra.mxu0 0.0
    %3094 = vmatprep.subr.mxu0 0.0
    %3095 = vmatpush1.xpose.msra.mxu0 0.0
    %3096 = vmatprep.subr.mxu0 0.0
    %3097 = vmatpush1.xpose.msra.mxu0 0.0
    %3098 = vmatprep.subr.mxu0 0.0
    %3099 = vmatpush1.xpose.msra.mxu0 0.0
    %3100 = vmatprep.subr.mxu0 0.0
    %3101 = vmatpush1.xpose.msra.mxu0 0.0
    %3102 = vmatprep.subr.mxu0 0.0
    %3103 = vmatpush1.xpose.msra.mxu0 0.0
    %3104 = vmatprep.subr.mxu0 0.0
    %3105 = vmatpush1.xpose.msra.mxu0 0.0
    %3106 = vmatprep.subr.mxu0 0.0
    %3107 = vmatpush1.xpose.msra.mxu0 0.0
    %3108 = vmatprep.subr.mxu0 0.0
    %3109 = vmatpush1.xpose.msra.mxu0 0.0
    %3110 = vmatprep.subr.mxu0 0.0
    %3111 = vmatpush1.xpose.msra.mxu0 0.0
    %3112 = vmatprep.subr.mxu0 0.0
    %3113 = vmatpush1.xpose.msra.mxu0 0.0
    %3114 = vmatprep.subr.mxu0 0.0
    %3115 = vmatpush1.xpose.msra.mxu0 0.0
    %3116 = vmatprep.subr.mxu0 0.0
    %3117 = vmatpush1.xpose.msra.mxu0 0.0
    %3118 = vmatprep.subr.mxu0 0.0
    %3119 = vmatpush1.xpose.msra.mxu0 0.0
    %3120 = vmatprep.subr.mxu0 0.0
    %3121 = vmatpush1.xpose.msra.mxu0 0.0
    %3122 = vmatprep.subr.mxu0 0.0
    %3123 = vmatpush1.xpose.msra.mxu0 0.0
    %3124 = vmatprep.subr.mxu0 0.0
    %3125 = vmatpush1.xpose.msra.mxu0 0.0
    %3126 = vmatprep.subr.mxu0 0.0
    %3127 = vmatpush1.xpose.msra.mxu0 0.0
    %3128 = vmatprep.subr.mxu0 0.0
    %3129 = vmatpush1.xpose.msra.mxu0 0.0
    %3130 = vmatprep.subr.mxu0 0.0
    %3131 = vmatpush1.xpose.msra.mxu0 0.0
    %3132 = vmatprep.subr.mxu0 0.0
    %3133 = vmatpush1.xpose.msra.mxu0 0.0
    %3134 = vmatprep.subr.mxu0 0.0
    %3135 = vmatpush1.xpose.msra.mxu0 0.0
    %3136 = vmatprep.subr.mxu0 0.0
    %3137 = vmatpush1.xpose.msra.mxu0 0.0
    %3138 = vmatprep.subr.mxu0 0.0
    %3139 = vmatpush1.xpose.msra.mxu0 0.0
    %3140 = vmatprep.mubr.f32.mxu0 0.0
    %3141 = vmatmul.mubr.f32.gmra.mrb[0].mxu0 %v3052
    %v3142 = vpop.f32.mrb[0].mxu0
    %v3143 = vadd.f32 0.0, %v3142
    %v3144 = vpop.f32.mrb[0].mxu0
    %3145 = vmatprep.mubr.f32.mxu0 0.0
    %3146 = vmatmul.mubr.f32.gmra.mrb[0].mxu0 %v3054
    %v3147 = vpop.f32.mrb[0].mxu0
    %v3148 = vadd.f32 0.0, %v3147
    %v3149 = vpop.f32.mrb[0].mxu0
    %3150 = vmatprep.mubr.f32.mxu0 0.0
    %3151 = vmatmul.mubr.f32.gmra.mrb[0].mxu0 %v3056
    %v3152 = vpop.f32.mrb[0].mxu0
    %v3153 = vadd.f32 0.0, %v3152
    %v3154 = vpop.f32.mrb[0].mxu0
    %3155 = vmatprep.mubr.f32.mxu0 0.0
    %3156 = vmatmul.mubr.f32.gmra.mrb[0].mxu0 %v3058
    %v3157 = vpop.f32.mrb[0].mxu0
    %v3158 = vadd.f32 0.0, %v3157
    %v3159 = vpop.f32.mrb[0].mxu0
    %3160 = vmatprep.mubr.f32.mxu0 0.0
    %3161 = vmatmul.mubr.f32.gmra.mrb[0].mxu0 %v3060
    %v3162 = vpop.f32.mrb[0].mxu0
    %v3163 = vadd.f32 0.0, %v3162
    %v3164 = vpop.f32.mrb[0].mxu0
    %3165 = vmatprep.mubr.f32.mxu0 0.0
    %3166 = vmatmul.mubr.f32.gmra.mrb[0].mxu0 %v3062
    %v3167 = vpop.f32.mrb[0].mxu0
    %v3168 = vadd.f32 0.0, %v3167
    %v3169 = vpop.f32.mrb[0].mxu0
    %3170 = vdwg.mxu0
    %v3171 = vmul.f32 %v3143, 0.35355338
    %v3172 = vmul.f32 %v3148, 0.35355338
    %v3173 = vmul.f32 %v3153, 0.35355338
    %v3174 = vmul.f32 %v3158, 0.35355338
    %v3175 = vmul.f32 %v3163, 0.35355338
    %v3176 = vmul.f32 %v3168, 0.35355338
    %v3177 = vadd.f32 %v3171, %v215
    %v3178 = vadd.f32 %v3172, %v216
    %v3179 = vadd.f32 %v3173, %v217
    %v3180 = vadd.f32 %v3174, %v218
    %v3181 = vadd.f32 %v3175, %v219
    %v3182 = vadd.f32 %v3176, %v220
    %v3183 = vsel %vm233, %v3177, -inf
    %3184 = vmax.xlane.f32.xlu0 %v3183
    %v3185 = vpop.xlane.xlu0 %3184
    %v3186 = vsel %vm233, %v3178, -inf
    %3187 = vmax.xlane.f32.xlu0 %v3186
    %v3188 = vpop.xlane.xlu0 %3187
    %v3189 = vsel %vm233, %v3179, -inf
    %3190 = vmax.xlane.f32.xlu0 %v3189
    %v3191 = vpop.xlane.xlu0 %3190
    %v3192 = vsel %vm233, %v3180, -inf
    %3193 = vmax.xlane.f32.xlu0 %v3192
    %v3194 = vpop.xlane.xlu0 %3193
    %v3195 = vsel %vm233, %v3181, -inf
    %3196 = vmax.xlane.f32.xlu0 %v3195
    %v3197 = vpop.xlane.xlu0 %3196
    %v3198 = vsel %vm233, %v3182, -inf
    %3199 = vmax.xlane.f32.xlu0 %v3198
    %v3200 = vpop.xlane.xlu0 %3199
    %v3201 = vsub.f32 %v3177, %v3185
    %v3202 = vsub.f32 %v3178, %v3188
    %v3203 = vsub.f32 %v3179, %v3191
    %v3204 = vsub.f32 %v3180, %v3194
    %v3205 = vsub.f32 %v3181, %v3197
    %v3206 = vsub.f32 %v3182, %v3200
    %v3207 = vmul.f32 %v3201, 1.442695
    %v3208 = vpow.pop %v3207
    %v3209 = vmul.f32 %v3202, 1.442695
    %v3210 = vpow.pop %v3209
    %v3211 = vmul.f32 %v3203, 1.442695
    %v3212 = vpow.pop %v3211
    %v3213 = vmul.f32 %v3204, 1.442695
    %v3214 = vpow.pop %v3213
    %v3215 = vmul.f32 %v3205, 1.442695
    %v3216 = vpow.pop %v3215
    %v3217 = vmul.f32 %v3206, 1.442695
    %v3218 = vpow.pop %v3217
    %v3219 = vsel %vm233, %v3208, 0.0
    %3220 = vadd.xlane.f32.xlu0 %v3219
    %v3221 = vpop.xlane.xlu0 %3220
    %v3222 = vsel %vm233, %v3210, 0.0
    %3223 = vadd.xlane.f32.xlu0 %v3222
    %v3224 = vpop.xlane.xlu0 %3223
    %v3225 = vsel %vm233, %v3212, 0.0
    %3226 = vadd.xlane.f32.xlu0 %v3225
    %v3227 = vpop.xlane.xlu0 %3226
    %v3228 = vsel %vm233, %v3214, 0.0
    %3229 = vadd.xlane.f32.xlu0 %v3228
    %v3230 = vpop.xlane.xlu0 %3229
    %v3231 = vsel %vm233, %v3216, 0.0
    %3232 = vadd.xlane.f32.xlu0 %v3231
    %v3233 = vpop.xlane.xlu0 %3232
    %v3234 = vsel %vm233, %v3218, 0.0
    %3235 = vadd.xlane.f32.xlu0 %v3234
    %v3236 = vpop.xlane.xlu0 %3235
    %v3237 = vrcp.pop %v3221
    %v3238 = vrcp.pop %v3224
    %v3239 = vrcp.pop %v3227
    %v3240 = vrcp.pop %v3230
    %v3241 = vrcp.pop %v3233
    %v3242 = vrcp.pop %v3236
    %v3243 = vmul.f32 %v3208, %v3237
    %v3244 = vmul.f32 %v3210, %v3238
    %v3245 = vmul.f32 %v3212, %v3239
    %v3246 = vmul.f32 %v3214, %v3240
    %v3247 = vmul.f32 %v3216, %v3241
    %v3248 = vmul.f32 %v3218, %v3242
    %3249 = vrot.lane.b32.xlu0 %v3006, 64
    %v3250 = vpop.permute.xlu0 %3249
    %3251 = vrot.lane.b32.xlu0 %v3011, 64
    %v3252 = vpop.permute.xlu0 %3251
    %3253 = vrot.lane.b32.xlu0 %v3016, 64
    %v3254 = vpop.permute.xlu0 %3253
    %3255 = vrot.lane.b32.xlu0 %v3021, 64
    %v3256 = vpop.permute.xlu0 %3255
    %3257 = vrot.lane.b32.xlu0 %v3026, 64
    %v3258 = vpop.permute.xlu0 %3257
    %3259 = vrot.lane.b32.xlu0 %v3031, 64
    %v3260 = vpop.permute.xlu0 %3259
    %v3268 = vsel %vm233, %v3243, 0
    %v3271 = vsel %vm233, %v3244, 0
    %v3274 = vsel %vm233, %v3245, 0
    %v3277 = vsel %vm233, %v3246, 0
    %v3280 = vsel %vm233, %v3247, 0
    %v3283 = vsel %vm233, %v3248, 0
    %3285 = vmatprep.subr.mxu0 0.0
    %3286 = vmatpush1.msra.mxu0 %v3250
    %3287 = vmatprep.subr.mxu0 0.0
    %3288 = vmatpush1.msra.mxu0 %v3252
    %3289 = vmatprep.subr.mxu0 0.0
    %3290 = vmatpush1.msra.mxu0 %v3254
    %3291 = vmatprep.subr.mxu0 0.0
    %3292 = vmatpush1.msra.mxu0 %v3256
    %3293 = vmatprep.subr.mxu0 0.0
    %3294 = vmatpush1.msra.mxu0 %v3258
    %3295 = vmatprep.subr.mxu0 0.0
    %3296 = vmatpush1.msra.mxu0 %v3260
    %3297 = vmatprep.subr.mxu0 0.0
    %3298 = vmatpush1.msra.mxu0 0.0
    %3299 = vmatprep.subr.mxu0 0.0
    %3300 = vmatpush1.msra.mxu0 0.0
    %3301 = vmatprep.subr.mxu0 0.0
    %3302 = vmatpush1.msra.mxu0 0.0
    %3303 = vmatprep.subr.mxu0 0.0
    %3304 = vmatpush1.msra.mxu0 0.0
    %3305 = vmatprep.subr.mxu0 0.0
    %3306 = vmatpush1.msra.mxu0 0.0
    %3307 = vmatprep.subr.mxu0 0.0
    %3308 = vmatpush1.msra.mxu0 0.0
    %3309 = vmatprep.subr.mxu0 0.0
    %3310 = vmatpush1.msra.mxu0 0.0
    %3311 = vmatprep.subr.mxu0 0.0
    %3312 = vmatpush1.msra.mxu0 0.0
    %3313 = vmatprep.subr.mxu0 0.0
    %3314 = vmatpush1.msra.mxu0 0.0
    %3315 = vmatprep.subr.mxu0 0.0
    %3316 = vmatpush1.msra.mxu0 0.0
    %3317 = vmatprep.subr.mxu0 0.0
    %3318 = vmatpush1.msra.mxu0 0.0
    %3319 = vmatprep.subr.mxu0 0.0
    %3320 = vmatpush1.msra.mxu0 0.0
    %3321 = vmatprep.subr.mxu0 0.0
    %3322 = vmatpush1.msra.mxu0 0.0
    %3323 = vmatprep.subr.mxu0 0.0
    %3324 = vmatpush1.msra.mxu0 0.0
    %3325 = vmatprep.subr.mxu0 0.0
    %3326 = vmatpush1.msra.mxu0 0.0
    %3327 = vmatprep.subr.mxu0 0.0
    %3328 = vmatpush1.msra.mxu0 0.0
    %3329 = vmatprep.subr.mxu0 0.0
    %3330 = vmatpush1.msra.mxu0 0.0
    %3331 = vmatprep.subr.mxu0 0.0
    %3332 = vmatpush1.msra.mxu0 0.0
    %3333 = vmatprep.subr.mxu0 0.0
    %3334 = vmatpush1.msra.mxu0 0.0
    %3335 = vmatprep.subr.mxu0 0.0
    %3336 = vmatpush1.msra.mxu0 0.0
    %3337 = vmatprep.subr.mxu0 0.0
    %3338 = vmatpush1.msra.mxu0 0.0
    %3339 = vmatprep.subr.mxu0 0.0
    %3340 = vmatpush1.msra.mxu0 0.0
    %3341 = vmatprep.subr.mxu0 0.0
    %3342 = vmatpush1.msra.mxu0 0.0
    %3343 = vmatprep.subr.mxu0 0.0
    %3344 = vmatpush1.msra.mxu0 0.0
    %3345 = vmatprep.subr.mxu0 0.0
    %3346 = vmatpush1.msra.mxu0 0.0
    %3347 = vmatprep.subr.mxu0 0.0
    %3348 = vmatpush1.msra.mxu0 0.0
    %3349 = vmatprep.mubr.f32.mxu0 0.0
    %3350 = vmatmul.mubr.f32.gmra.mrb[0].mxu0 %v3268
    %v3351 = vpop.f32.mrb[0].mxu0
    %v3352 = vadd.f32 0.0, %v3351
    %v3353 = vpop.f32.mrb[0].mxu0
    %3354 = vmatprep.mubr.f32.mxu0 0.0
    %3355 = vmatmul.mubr.f32.gmra.mrb[0].mxu0 %v3271
    %v3356 = vpop.f32.mrb[0].mxu0
    %v3357 = vadd.f32 0.0, %v3356
    %v3358 = vpop.f32.mrb[0].mxu0
    %3359 = vmatprep.mubr.f32.mxu0 0.0
    %3360 = vmatmul.mubr.f32.gmra.mrb[0].mxu0 %v3274
    %v3361 = vpop.f32.mrb[0].mxu0
    %v3362 = vadd.f32 0.0, %v3361
    %v3363 = vpop.f32.mrb[0].mxu0
    %3364 = vmatprep.mubr.f32.mxu0 0.0
    %3365 = vmatmul.mubr.f32.gmra.mrb[0].mxu0 %v3277
    %v3366 = vpop.f32.mrb[0].mxu0
    %v3367 = vadd.f32 0.0, %v3366
    %v3368 = vpop.f32.mrb[0].mxu0
    %3369 = vmatprep.mubr.f32.mxu0 0.0
    %3370 = vmatmul.mubr.f32.gmra.mrb[0].mxu0 %v3280
    %v3371 = vpop.f32.mrb[0].mxu0
    %v3372 = vadd.f32 0.0, %v3371
    %v3373 = vpop.f32.mrb[0].mxu0
    %3374 = vmatprep.mubr.f32.mxu0 0.0
    %3375 = vmatmul.mubr.f32.gmra.mrb[0].mxu0 %v3283
    %v3376 = vpop.f32.mrb[0].mxu0
    %v3377 = vadd.f32 0.0, %v3376
    %v3378 = vpop.f32.mrb[0].mxu0
    %3379 = vdwg.mxu0
    %3380 = vrot.lane.b32.xlu0 %v3006, 120
    %v3381 = vpop.permute.xlu0 %3380
    %3382 = vrot.lane.b32.xlu0 %v3011, 120
    %v3383 = vpop.permute.xlu0 %3382
    %3384 = vrot.lane.b32.xlu0 %v3016, 120
    %v3385 = vpop.permute.xlu0 %3384
    %3386 = vrot.lane.b32.xlu0 %v3021, 120
    %v3387 = vpop.permute.xlu0 %3386
    %3388 = vrot.lane.b32.xlu0 %v3026, 120
    %v3389 = vpop.permute.xlu0 %3388
    %3390 = vrot.lane.b32.xlu0 %v3031, 120
    %v3391 = vpop.permute.xlu0 %3390
    %3392 = vrot.lane.b32.xlu0 %v3006, 88
    %v3393 = vpop.permute.xlu0 %3392
    %3394 = vrot.lane.b32.xlu0 %v3011, 88
    %v3395 = vpop.permute.xlu0 %3394
    %3396 = vrot.lane.b32.xlu0 %v3016, 88
    %v3397 = vpop.permute.xlu0 %3396
    %3398 = vrot.lane.b32.xlu0 %v3021, 88
    %v3399 = vpop.permute.xlu0 %3398
    %3400 = vrot.lane.b32.xlu0 %v3026, 88
    %v3401 = vpop.permute.xlu0 %3400
    %3402 = vrot.lane.b32.xlu0 %v3031, 88
    %v3403 = vpop.permute.xlu0 %3402
    %v3404 = vsel %vm594, %v3381, 0
    %v3406 = vsel %vm594, %v3383, 0
    %v3408 = vsel %vm594, %v3385, 0
    %v3410 = vsel %vm594, %v3387, 0
    %v3412 = vsel %vm594, %v3389, 0
    %v3414 = vsel %vm594, %v3391, 0
    %v3416 = vsel %vm594, %v3393, 0
    %v3418 = vsel %vm594, %v3395, 0
    %v3420 = vsel %vm594, %v3397, 0
    %v3422 = vsel %vm594, %v3399, 0
    %v3424 = vsel %vm594, %v3401, 0
    %v3426 = vsel %vm594, %v3403, 0
    %3428 = vmatprep.subr.mxu0 0.0
    %3429 = vmatpush1.xpose.msra.mxu0 %v3416
    %3430 = vmatprep.subr.mxu0 0.0
    %3431 = vmatpush1.xpose.msra.mxu0 %v3418
    %3432 = vmatprep.subr.mxu0 0.0
    %3433 = vmatpush1.xpose.msra.mxu0 %v3420
    %3434 = vmatprep.subr.mxu0 0.0
    %3435 = vmatpush1.xpose.msra.mxu0 %v3422
    %3436 = vmatprep.subr.mxu0 0.0
    %3437 = vmatpush1.xpose.msra.mxu0 %v3424
    %3438 = vmatprep.subr.mxu0 0.0
    %3439 = vmatpush1.xpose.msra.mxu0 %v3426
    %3440 = vmatprep.subr.mxu0 0.0
    %3441 = vmatpush1.xpose.msra.mxu0 0.0
    %3442 = vmatprep.subr.mxu0 0.0
    %3443 = vmatpush1.xpose.msra.mxu0 0.0
    %3444 = vmatprep.subr.mxu0 0.0
    %3445 = vmatpush1.xpose.msra.mxu0 0.0
    %3446 = vmatprep.subr.mxu0 0.0
    %3447 = vmatpush1.xpose.msra.mxu0 0.0
    %3448 = vmatprep.subr.mxu0 0.0
    %3449 = vmatpush1.xpose.msra.mxu0 0.0
    %3450 = vmatprep.subr.mxu0 0.0
    %3451 = vmatpush1.xpose.msra.mxu0 0.0
    %3452 = vmatprep.subr.mxu0 0.0
    %3453 = vmatpush1.xpose.msra.mxu0 0.0
    %3454 = vmatprep.subr.mxu0 0.0
    %3455 = vmatpush1.xpose.msra.mxu0 0.0
    %3456 = vmatprep.subr.mxu0 0.0
    %3457 = vmatpush1.xpose.msra.mxu0 0.0
    %3458 = vmatprep.subr.mxu0 0.0
    %3459 = vmatpush1.xpose.msra.mxu0 0.0
    %3460 = vmatprep.subr.mxu0 0.0
    %3461 = vmatpush1.xpose.msra.mxu0 0.0
    %3462 = vmatprep.subr.mxu0 0.0
    %3463 = vmatpush1.xpose.msra.mxu0 0.0
    %3464 = vmatprep.subr.mxu0 0.0
    %3465 = vmatpush1.xpose.msra.mxu0 0.0
    %3466 = vmatprep.subr.mxu0 0.0
    %3467 = vmatpush1.xpose.msra.mxu0 0.0
    %3468 = vmatprep.subr.mxu0 0.0
    %3469 = vmatpush1.xpose.msra.mxu0 0.0
    %3470 = vmatprep.subr.mxu0 0.0
    %3471 = vmatpush1.xpose.msra.mxu0 0.0
    %3472 = vmatprep.subr.mxu0 0.0
    %3473 = vmatpush1.xpose.msra.mxu0 0.0
    %3474 = vmatprep.subr.mxu0 0.0
    %3475 = vmatpush1.xpose.msra.mxu0 0.0
    %3476 = vmatprep.subr.mxu0 0.0
    %3477 = vmatpush1.xpose.msra.mxu0 0.0
    %3478 = vmatprep.subr.mxu0 0.0
    %3479 = vmatpush1.xpose.msra.mxu0 0.0
    %3480 = vmatprep.subr.mxu0 0.0
    %3481 = vmatpush1.xpose.msra.mxu0 0.0
    %3482 = vmatprep.subr.mxu0 0.0
    %3483 = vmatpush1.xpose.msra.mxu0 0.0
    %3484 = vmatprep.subr.mxu0 0.0
    %3485 = vmatpush1.xpose.msra.mxu0 0.0
    %3486 = vmatprep.subr.mxu0 0.0
    %3487 = vmatpush1.xpose.msra.mxu0 0.0
    %3488 = vmatprep.subr.mxu0 0.0
    %3489 = vmatpush1.xpose.msra.mxu0 0.0
    %3490 = vmatprep.subr.mxu0 0.0
    %3491 = vmatpush1.xpose.msra.mxu0 0.0
    %3492 = vmatprep.mubr.f32.mxu0 0.0
    %3493 = vmatmul.mubr.f32.gmra.mrb[0].mxu0 %v3404
    %v3494 = vpop.f32.mrb[0].mxu0
    %v3495 = vadd.f32 0.0, %v3494
    %v3496 = vpop.f32.mrb[0].mxu0
    %3497 = vmatprep.mubr.f32.mxu0 0.0
    %3498 = vmatmul.mubr.f32.gmra.mrb[0].mxu0 %v3406
    %v3499 = vpop.f32.mrb[0].mxu0
    %v3500 = vadd.f32 0.0, %v3499
    %v3501 = vpop.f32.mrb[0].mxu0
    %3502 = vmatprep.mubr.f32.mxu0 0.0
    %3503 = vmatmul.mubr.f32.gmra.mrb[0].mxu0 %v3408
    %v3504 = vpop.f32.mrb[0].mxu0
    %v3505 = vadd.f32 0.0, %v3504
    %v3506 = vpop.f32.mrb[0].mxu0
    %3507 = vmatprep.mubr.f32.mxu0 0.0
    %3508 = vmatmul.mubr.f32.gmra.mrb[0].mxu0 %v3410
    %v3509 = vpop.f32.mrb[0].mxu0
    %v3510 = vadd.f32 0.0, %v3509
    %v3511 = vpop.f32.mrb[0].mxu0
    %3512 = vmatprep.mubr.f32.mxu0 0.0
    %3513 = vmatmul.mubr.f32.gmra.mrb[0].mxu0 %v3412
    %v3514 = vpop.f32.mrb[0].mxu0
    %v3515 = vadd.f32 0.0, %v3514
    %v3516 = vpop.f32.mrb[0].mxu0
    %3517 = vmatprep.mubr.f32.mxu0 0.0
    %3518 = vmatmul.mubr.f32.gmra.mrb[0].mxu0 %v3414
    %v3519 = vpop.f32.mrb[0].mxu0
    %v3520 = vadd.f32 0.0, %v3519
    %v3521 = vpop.f32.mrb[0].mxu0
    %3522 = vdwg.mxu0
    %v3523 = vmul.f32 %v3495, 0.35355338
    %v3524 = vmul.f32 %v3500, 0.35355338
    %v3525 = vmul.f32 %v3505, 0.35355338
    %v3526 = vmul.f32 %v3510, 0.35355338
    %v3527 = vmul.f32 %v3515, 0.35355338
    %v3528 = vmul.f32 %v3520, 0.35355338
    %v3529 = vadd.f32 %v3523, %v215
    %v3530 = vadd.f32 %v3524, %v216
    %v3531 = vadd.f32 %v3525, %v217
    %v3532 = vadd.f32 %v3526, %v218
    %v3533 = vadd.f32 %v3527, %v219
    %v3534 = vadd.f32 %v3528, %v220
    %v3535 = vsel %vm233, %v3529, -inf
    %3536 = vmax.xlane.f32.xlu0 %v3535
    %v3537 = vpop.xlane.xlu0 %3536
    %v3538 = vsel %vm233, %v3530, -inf
    %3539 = vmax.xlane.f32.xlu0 %v3538
    %v3540 = vpop.xlane.xlu0 %3539
    %v3541 = vsel %vm233, %v3531, -inf
    %3542 = vmax.xlane.f32.xlu0 %v3541
    %v3543 = vpop.xlane.xlu0 %3542
    %v3544 = vsel %vm233, %v3532, -inf
    %3545 = vmax.xlane.f32.xlu0 %v3544
    %v3546 = vpop.xlane.xlu0 %3545
    %v3547 = vsel %vm233, %v3533, -inf
    %3548 = vmax.xlane.f32.xlu0 %v3547
    %v3549 = vpop.xlane.xlu0 %3548
    %v3550 = vsel %vm233, %v3534, -inf
    %3551 = vmax.xlane.f32.xlu0 %v3550
    %v3552 = vpop.xlane.xlu0 %3551
    %v3553 = vsub.f32 %v3529, %v3537
    %v3554 = vsub.f32 %v3530, %v3540
    %v3555 = vsub.f32 %v3531, %v3543
    %v3556 = vsub.f32 %v3532, %v3546
    %v3557 = vsub.f32 %v3533, %v3549
    %v3558 = vsub.f32 %v3534, %v3552
    %v3559 = vmul.f32 %v3553, 1.442695
    %v3560 = vpow.pop %v3559
    %v3561 = vmul.f32 %v3554, 1.442695
    %v3562 = vpow.pop %v3561
    %v3563 = vmul.f32 %v3555, 1.442695
    %v3564 = vpow.pop %v3563
    %v3565 = vmul.f32 %v3556, 1.442695
    %v3566 = vpow.pop %v3565
    %v3567 = vmul.f32 %v3557, 1.442695
    %v3568 = vpow.pop %v3567
    %v3569 = vmul.f32 %v3558, 1.442695
    %v3570 = vpow.pop %v3569
    %v3571 = vsel %vm233, %v3560, 0.0
    %3572 = vadd.xlane.f32.xlu0 %v3571
    %v3573 = vpop.xlane.xlu0 %3572
    %v3574 = vsel %vm233, %v3562, 0.0
    %3575 = vadd.xlane.f32.xlu0 %v3574
    %v3576 = vpop.xlane.xlu0 %3575
    %v3577 = vsel %vm233, %v3564, 0.0
    %3578 = vadd.xlane.f32.xlu0 %v3577
    %v3579 = vpop.xlane.xlu0 %3578
    %v3580 = vsel %vm233, %v3566, 0.0
    %3581 = vadd.xlane.f32.xlu0 %v3580
    %v3582 = vpop.xlane.xlu0 %3581
    %v3583 = vsel %vm233, %v3568, 0.0
    %3584 = vadd.xlane.f32.xlu0 %v3583
    %v3585 = vpop.xlane.xlu0 %3584
    %v3586 = vsel %vm233, %v3570, 0.0
    %3587 = vadd.xlane.f32.xlu0 %v3586
    %v3588 = vpop.xlane.xlu0 %3587
    %v3589 = vrcp.pop %v3573
    %v3590 = vrcp.pop %v3576
    %v3591 = vrcp.pop %v3579
    %v3592 = vrcp.pop %v3582
    %v3593 = vrcp.pop %v3585
    %v3594 = vrcp.pop %v3588
    %v3595 = vmul.f32 %v3560, %v3589
    %v3596 = vmul.f32 %v3562, %v3590
    %v3597 = vmul.f32 %v3564, %v3591
    %v3598 = vmul.f32 %v3566, %v3592
    %v3599 = vmul.f32 %v3568, %v3593
    %v3600 = vmul.f32 %v3570, %v3594
    %3601 = vrot.lane.b32.xlu0 %v3006, 56
    %v3602 = vpop.permute.xlu0 %3601
    %3603 = vrot.lane.b32.xlu0 %v3011, 56
    %v3604 = vpop.permute.xlu0 %3603
    %3605 = vrot.lane.b32.xlu0 %v3016, 56
    %v3606 = vpop.permute.xlu0 %3605
    %3607 = vrot.lane.b32.xlu0 %v3021, 56
    %v3608 = vpop.permute.xlu0 %3607
    %3609 = vrot.lane.b32.xlu0 %v3026, 56
    %v3610 = vpop.permute.xlu0 %3609
    %3611 = vrot.lane.b32.xlu0 %v3031, 56
    %v3612 = vpop.permute.xlu0 %3611
    %v3620 = vsel %vm233, %v3595, 0
    %v3623 = vsel %vm233, %v3596, 0
    %v3626 = vsel %vm233, %v3597, 0
    %v3629 = vsel %vm233, %v3598, 0
    %v3632 = vsel %vm233, %v3599, 0
    %v3635 = vsel %vm233, %v3600, 0
    %3637 = vmatprep.subr.mxu0 0.0
    %3638 = vmatpush1.msra.mxu0 %v3602
    %3639 = vmatprep.subr.mxu0 0.0
    %3640 = vmatpush1.msra.mxu0 %v3604
    %3641 = vmatprep.subr.mxu0 0.0
    %3642 = vmatpush1.msra.mxu0 %v3606
    %3643 = vmatprep.subr.mxu0 0.0
    %3644 = vmatpush1.msra.mxu0 %v3608
    %3645 = vmatprep.subr.mxu0 0.0
    %3646 = vmatpush1.msra.mxu0 %v3610
    %3647 = vmatprep.subr.mxu0 0.0
    %3648 = vmatpush1.msra.mxu0 %v3612
    %3649 = vmatprep.subr.mxu0 0.0
    %3650 = vmatpush1.msra.mxu0 0.0
    %3651 = vmatprep.subr.mxu0 0.0
    %3652 = vmatpush1.msra.mxu0 0.0
    %3653 = vmatprep.subr.mxu0 0.0
    %3654 = vmatpush1.msra.mxu0 0.0
    %3655 = vmatprep.subr.mxu0 0.0
    %3656 = vmatpush1.msra.mxu0 0.0
    %3657 = vmatprep.subr.mxu0 0.0
    %3658 = vmatpush1.msra.mxu0 0.0
    %3659 = vmatprep.subr.mxu0 0.0
    %3660 = vmatpush1.msra.mxu0 0.0
    %3661 = vmatprep.subr.mxu0 0.0
    %3662 = vmatpush1.msra.mxu0 0.0
    %3663 = vmatprep.subr.mxu0 0.0
    %3664 = vmatpush1.msra.mxu0 0.0
    %3665 = vmatprep.subr.mxu0 0.0
    %3666 = vmatpush1.msra.mxu0 0.0
    %3667 = vmatprep.subr.mxu0 0.0
    %3668 = vmatpush1.msra.mxu0 0.0
    %3669 = vmatprep.subr.mxu0 0.0
    %3670 = vmatpush1.msra.mxu0 0.0
    %3671 = vmatprep.subr.mxu0 0.0
    %3672 = vmatpush1.msra.mxu0 0.0
    %3673 = vmatprep.subr.mxu0 0.0
    %3674 = vmatpush1.msra.mxu0 0.0
    %3675 = vmatprep.subr.mxu0 0.0
    %3676 = vmatpush1.msra.mxu0 0.0
    %3677 = vmatprep.subr.mxu0 0.0
    %3678 = vmatpush1.msra.mxu0 0.0
    %3679 = vmatprep.subr.mxu0 0.0
    %3680 = vmatpush1.msra.mxu0 0.0
    %3681 = vmatprep.subr.mxu0 0.0
    %3682 = vmatpush1.msra.mxu0 0.0
    %3683 = vmatprep.subr.mxu0 0.0
    %3684 = vmatpush1.msra.mxu0 0.0
    %3685 = vmatprep.subr.mxu0 0.0
    %3686 = vmatpush1.msra.mxu0 0.0
    %3687 = vmatprep.subr.mxu0 0.0
    %3688 = vmatpush1.msra.mxu0 0.0
    %3689 = vmatprep.subr.mxu0 0.0
    %3690 = vmatpush1.msra.mxu0 0.0
    %3691 = vmatprep.subr.mxu0 0.0
    %3692 = vmatpush1.msra.mxu0 0.0
    %3693 = vmatprep.subr.mxu0 0.0
    %3694 = vmatpush1.msra.mxu0 0.0
    %3695 = vmatprep.subr.mxu0 0.0
    %3696 = vmatpush1.msra.mxu0 0.0
    %3697 = vmatprep.subr.mxu0 0.0
    %3698 = vmatpush1.msra.mxu0 0.0
    %3699 = vmatprep.subr.mxu0 0.0
    %3700 = vmatpush1.msra.mxu0 0.0
    %3701 = vmatprep.mubr.f32.mxu0 0.0
    %3702 = vmatmul.mubr.f32.gmra.mrb[0].mxu0 %v3620
    %v3703 = vpop.f32.mrb[0].mxu0
    %v3704 = vadd.f32 0.0, %v3703
    %v3705 = vpop.f32.mrb[0].mxu0
    %3706 = vmatprep.mubr.f32.mxu0 0.0
    %3707 = vmatmul.mubr.f32.gmra.mrb[0].mxu0 %v3623
    %v3708 = vpop.f32.mrb[0].mxu0
    %v3709 = vadd.f32 0.0, %v3708
    %v3710 = vpop.f32.mrb[0].mxu0
    %3711 = vmatprep.mubr.f32.mxu0 0.0
    %3712 = vmatmul.mubr.f32.gmra.mrb[0].mxu0 %v3626
    %v3713 = vpop.f32.mrb[0].mxu0
    %v3714 = vadd.f32 0.0, %v3713
    %v3715 = vpop.f32.mrb[0].mxu0
    %3716 = vmatprep.mubr.f32.mxu0 0.0
    %3717 = vmatmul.mubr.f32.gmra.mrb[0].mxu0 %v3629
    %v3718 = vpop.f32.mrb[0].mxu0
    %v3719 = vadd.f32 0.0, %v3718
    %v3720 = vpop.f32.mrb[0].mxu0
    %3721 = vmatprep.mubr.f32.mxu0 0.0
    %3722 = vmatmul.mubr.f32.gmra.mrb[0].mxu0 %v3632
    %v3723 = vpop.f32.mrb[0].mxu0
    %v3724 = vadd.f32 0.0, %v3723
    %v3725 = vpop.f32.mrb[0].mxu0
    %3726 = vmatprep.mubr.f32.mxu0 0.0
    %3727 = vmatmul.mubr.f32.gmra.mrb[0].mxu0 %v3635
    %v3728 = vpop.f32.mrb[0].mxu0
    %v3729 = vadd.f32 0.0, %v3728
    %v3730 = vpop.f32.mrb[0].mxu0
    %3731 = vdwg.mxu0
    %v3733 = vsel %vm594, %v3704, 0
    %v3736 = vsel %vm594, %v3709, 0
    %v3739 = vsel %vm594, %v3714, 0
    %v3742 = vsel %vm594, %v3719, 0
    %v3745 = vsel %vm594, %v3724, 0
    %v3748 = vsel %vm594, %v3729, 0
    %3750 = vmatprep.subr.mxu0 0.0
    %3751 = vmatpush1.msra.mxu0 %v180
    %3752 = vmatprep.subr.mxu0 0.0
    %3753 = vmatpush1.msra.mxu0 0.0
    %3754 = vmatprep.subr.mxu0 0.0
    %3755 = vmatpush1.msra.mxu0 0.0
    %3756 = vmatprep.subr.mxu0 0.0
    %3757 = vmatpush1.msra.mxu0 0.0
    %3758 = vmatprep.subr.mxu0 0.0
    %3759 = vmatpush1.msra.mxu0 0.0
    %3760 = vmatprep.subr.mxu0 0.0
    %3761 = vmatpush1.msra.mxu0 0.0
    %3762 = vmatprep.subr.mxu0 0.0
    %3763 = vmatpush1.msra.mxu0 0.0
    %3764 = vmatprep.subr.mxu0 0.0
    %3765 = vmatpush1.msra.mxu0 0.0
    %3766 = vmatprep.subr.mxu0 0.0
    %3767 = vmatpush1.msra.mxu0 0.0
    %3768 = vmatprep.subr.mxu0 0.0
    %3769 = vmatpush1.msra.mxu0 0.0
    %3770 = vmatprep.subr.mxu0 0.0
    %3771 = vmatpush1.msra.mxu0 0.0
    %3772 = vmatprep.subr.mxu0 0.0
    %3773 = vmatpush1.msra.mxu0 0.0
    %3774 = vmatprep.subr.mxu0 0.0
    %3775 = vmatpush1.msra.mxu0 0.0
    %3776 = vmatprep.subr.mxu0 0.0
    %3777 = vmatpush1.msra.mxu0 0.0
    %3778 = vmatprep.subr.mxu0 0.0
    %3779 = vmatpush1.msra.mxu0 0.0
    %3780 = vmatprep.subr.mxu0 0.0
    %3781 = vmatpush1.msra.mxu0 0.0
    %3782 = vmatprep.subr.mxu0 0.0
    %3783 = vmatpush1.msra.mxu0 0.0
    %3784 = vmatprep.subr.mxu0 0.0
    %3785 = vmatpush1.msra.mxu0 0.0
    %3786 = vmatprep.subr.mxu0 0.0
    %3787 = vmatpush1.msra.mxu0 0.0
    %3788 = vmatprep.subr.mxu0 0.0
    %3789 = vmatpush1.msra.mxu0 0.0
    %3790 = vmatprep.subr.mxu0 0.0
    %3791 = vmatpush1.msra.mxu0 0.0
    %3792 = vmatprep.subr.mxu0 0.0
    %3793 = vmatpush1.msra.mxu0 0.0
    %3794 = vmatprep.subr.mxu0 0.0
    %3795 = vmatpush1.msra.mxu0 0.0
    %3796 = vmatprep.subr.mxu0 0.0
    %3797 = vmatpush1.msra.mxu0 0.0
    %3798 = vmatprep.subr.mxu0 0.0
    %3799 = vmatpush1.msra.mxu0 0.0
    %3800 = vmatprep.subr.mxu0 0.0
    %3801 = vmatpush1.msra.mxu0 0.0
    %3802 = vmatprep.subr.mxu0 0.0
    %3803 = vmatpush1.msra.mxu0 0.0
    %3804 = vmatprep.subr.mxu0 0.0
    %3805 = vmatpush1.msra.mxu0 0.0
    %3806 = vmatprep.subr.mxu0 0.0
    %3807 = vmatpush1.msra.mxu0 0.0
    %3808 = vmatprep.subr.mxu0 0.0
    %3809 = vmatpush1.msra.mxu0 0.0
    %3810 = vmatprep.subr.mxu0 0.0
    %3811 = vmatpush1.msra.mxu0 0.0
    %3812 = vmatprep.subr.mxu0 0.0
    %3813 = vmatpush1.msra.mxu0 0.0
    %3814 = vmatprep.mubr.f32.mxu0 0.0
    %3815 = vmatmul.mubr.f32.gmra.mrb[0].mxu0 %v3733
    %v3816 = vpop.f32.mrb[0].mxu0
    %v3817 = vadd.f32 0.0, %v3816
    %v3818 = vpop.f32.mrb[0].mxu0
    %3819 = vmatprep.mubr.f32.mxu0 0.0
    %3820 = vmatmul.mubr.f32.gmra.mrb[0].mxu0 %v3736
    %v3821 = vpop.f32.mrb[0].mxu0
    %v3822 = vadd.f32 0.0, %v3821
    %v3823 = vpop.f32.mrb[0].mxu0
    %3824 = vmatprep.mubr.f32.mxu0 0.0
    %3825 = vmatmul.mubr.f32.gmra.mrb[0].mxu0 %v3739
    %v3826 = vpop.f32.mrb[0].mxu0
    %v3827 = vadd.f32 0.0, %v3826
    %v3828 = vpop.f32.mrb[0].mxu0
    %3829 = vmatprep.mubr.f32.mxu0 0.0
    %3830 = vmatmul.mubr.f32.gmra.mrb[0].mxu0 %v3742
    %v3831 = vpop.f32.mrb[0].mxu0
    %v3832 = vadd.f32 0.0, %v3831
    %v3833 = vpop.f32.mrb[0].mxu0
    %3834 = vmatprep.mubr.f32.mxu0 0.0
    %3835 = vmatmul.mubr.f32.gmra.mrb[0].mxu0 %v3745
    %v3836 = vpop.f32.mrb[0].mxu0
    %v3837 = vadd.f32 0.0, %v3836
    %v3838 = vpop.f32.mrb[0].mxu0
    %3839 = vmatprep.mubr.f32.mxu0 0.0
    %3840 = vmatmul.mubr.f32.gmra.mrb[0].mxu0 %v3748
    %v3841 = vpop.f32.mrb[0].mxu0
    %v3842 = vadd.f32 0.0, %v3841
    %v3843 = vpop.f32.mrb[0].mxu0
    %3844 = vdwg.mxu0
    %v3846 = vsel %vm594, %v3352, 0
    %v3849 = vsel %vm594, %v3357, 0
    %v3852 = vsel %vm594, %v3362, 0
    %v3855 = vsel %vm594, %v3367, 0
    %v3858 = vsel %vm594, %v3372, 0
    %v3861 = vsel %vm594, %v3377, 0
    %3863 = vmatprep.subr.mxu0 0.0
    %3864 = vmatpush1.msra.mxu0 %v179
    %3865 = vmatprep.subr.mxu0 0.0
    %3866 = vmatpush1.msra.mxu0 0.0
    %3867 = vmatprep.subr.mxu0 0.0
    %3868 = vmatpush1.msra.mxu0 0.0
    %3869 = vmatprep.subr.mxu0 0.0
    %3870 = vmatpush1.msra.mxu0 0.0
    %3871 = vmatprep.subr.mxu0 0.0
    %3872 = vmatpush1.msra.mxu0 0.0
    %3873 = vmatprep.subr.mxu0 0.0
    %3874 = vmatpush1.msra.mxu0 0.0
    %3875 = vmatprep.subr.mxu0 0.0
    %3876 = vmatpush1.msra.mxu0 0.0
    %3877 = vmatprep.subr.mxu0 0.0
    %3878 = vmatpush1.msra.mxu0 0.0
    %3879 = vmatprep.subr.mxu0 0.0
    %3880 = vmatpush1.msra.mxu0 0.0
    %3881 = vmatprep.subr.mxu0 0.0
    %3882 = vmatpush1.msra.mxu0 0.0
    %3883 = vmatprep.subr.mxu0 0.0
    %3884 = vmatpush1.msra.mxu0 0.0
    %3885 = vmatprep.subr.mxu0 0.0
    %3886 = vmatpush1.msra.mxu0 0.0
    %3887 = vmatprep.subr.mxu0 0.0
    %3888 = vmatpush1.msra.mxu0 0.0
    %3889 = vmatprep.subr.mxu0 0.0
    %3890 = vmatpush1.msra.mxu0 0.0
    %3891 = vmatprep.subr.mxu0 0.0
    %3892 = vmatpush1.msra.mxu0 0.0
    %3893 = vmatprep.subr.mxu0 0.0
    %3894 = vmatpush1.msra.mxu0 0.0
    %3895 = vmatprep.subr.mxu0 0.0
    %3896 = vmatpush1.msra.mxu0 0.0
    %3897 = vmatprep.subr.mxu0 0.0
    %3898 = vmatpush1.msra.mxu0 0.0
    %3899 = vmatprep.subr.mxu0 0.0
    %3900 = vmatpush1.msra.mxu0 0.0
    %3901 = vmatprep.subr.mxu0 0.0
    %3902 = vmatpush1.msra.mxu0 0.0
    %3903 = vmatprep.subr.mxu0 0.0
    %3904 = vmatpush1.msra.mxu0 0.0
    %3905 = vmatprep.subr.mxu0 0.0
    %3906 = vmatpush1.msra.mxu0 0.0
    %3907 = vmatprep.subr.mxu0 0.0
    %3908 = vmatpush1.msra.mxu0 0.0
    %3909 = vmatprep.subr.mxu0 0.0
    %3910 = vmatpush1.msra.mxu0 0.0
    %3911 = vmatprep.subr.mxu0 0.0
    %3912 = vmatpush1.msra.mxu0 0.0
    %3913 = vmatprep.subr.mxu0 0.0
    %3914 = vmatpush1.msra.mxu0 0.0
    %3915 = vmatprep.subr.mxu0 0.0
    %3916 = vmatpush1.msra.mxu0 0.0
    %3917 = vmatprep.subr.mxu0 0.0
    %3918 = vmatpush1.msra.mxu0 0.0
    %3919 = vmatprep.subr.mxu0 0.0
    %3920 = vmatpush1.msra.mxu0 0.0
    %3921 = vmatprep.subr.mxu0 0.0
    %3922 = vmatpush1.msra.mxu0 0.0
    %3923 = vmatprep.subr.mxu0 0.0
    %3924 = vmatpush1.msra.mxu0 0.0
    %3925 = vmatprep.subr.mxu0 0.0
    %3926 = vmatpush1.msra.mxu0 0.0
    %3927 = vmatprep.mubr.f32.mxu0 0.0
    %3928 = vmatmul.mubr.f32.gmra.mrb[0].mxu0 %v3846
    %v3929 = vpop.f32.mrb[0].mxu0
    %v3930 = vadd.f32 %v3817, %v3929
    %v3931 = vpop.f32.mrb[0].mxu0
    %3932 = vmatprep.mubr.f32.mxu0 0.0
    %3933 = vmatmul.mubr.f32.gmra.mrb[0].mxu0 %v3849
    %v3934 = vpop.f32.mrb[0].mxu0
    %v3935 = vadd.f32 %v3822, %v3934
    %v3936 = vpop.f32.mrb[0].mxu0
    %3937 = vmatprep.mubr.f32.mxu0 0.0
    %3938 = vmatmul.mubr.f32.gmra.mrb[0].mxu0 %v3852
    %v3939 = vpop.f32.mrb[0].mxu0
    %v3940 = vadd.f32 %v3827, %v3939
    %v3941 = vpop.f32.mrb[0].mxu0
    %3942 = vmatprep.mubr.f32.mxu0 0.0
    %3943 = vmatmul.mubr.f32.gmra.mrb[0].mxu0 %v3855
    %v3944 = vpop.f32.mrb[0].mxu0
    %v3945 = vadd.f32 %v3832, %v3944
    %v3946 = vpop.f32.mrb[0].mxu0
    %3947 = vmatprep.mubr.f32.mxu0 0.0
    %3948 = vmatmul.mubr.f32.gmra.mrb[0].mxu0 %v3858
    %v3949 = vpop.f32.mrb[0].mxu0
    %v3950 = vadd.f32 %v3837, %v3949
    %v3951 = vpop.f32.mrb[0].mxu0
    %3952 = vmatprep.mubr.f32.mxu0 0.0
    %3953 = vmatmul.mubr.f32.gmra.mrb[0].mxu0 %v3861
    %v3954 = vpop.f32.mrb[0].mxu0
    %v3955 = vadd.f32 %v3842, %v3954
    %v3956 = vpop.f32.mrb[0].mxu0
    %3957 = vdwg.mxu0
    %3958 = vrot.lane.b32.xlu0 %v3006, 112
    %v3959 = vpop.permute.xlu0 %3958
    %3960 = vrot.lane.b32.xlu0 %v3011, 112
    %v3961 = vpop.permute.xlu0 %3960
    %3962 = vrot.lane.b32.xlu0 %v3016, 112
    %v3963 = vpop.permute.xlu0 %3962
    %3964 = vrot.lane.b32.xlu0 %v3021, 112
    %v3965 = vpop.permute.xlu0 %3964
    %3966 = vrot.lane.b32.xlu0 %v3026, 112
    %v3967 = vpop.permute.xlu0 %3966
    %3968 = vrot.lane.b32.xlu0 %v3031, 112
    %v3969 = vpop.permute.xlu0 %3968
    %3970 = vrot.lane.b32.xlu0 %v3006, 80
    %v3971 = vpop.permute.xlu0 %3970
    %3972 = vrot.lane.b32.xlu0 %v3011, 80
    %v3973 = vpop.permute.xlu0 %3972
    %3974 = vrot.lane.b32.xlu0 %v3016, 80
    %v3975 = vpop.permute.xlu0 %3974
    %3976 = vrot.lane.b32.xlu0 %v3021, 80
    %v3977 = vpop.permute.xlu0 %3976
    %3978 = vrot.lane.b32.xlu0 %v3026, 80
    %v3979 = vpop.permute.xlu0 %3978
    %3980 = vrot.lane.b32.xlu0 %v3031, 80
    %v3981 = vpop.permute.xlu0 %3980
    %v3982 = vsel %vm594, %v3959, 0
    %v3984 = vsel %vm594, %v3961, 0
    %v3986 = vsel %vm594, %v3963, 0
    %v3988 = vsel %vm594, %v3965, 0
    %v3990 = vsel %vm594, %v3967, 0
    %v3992 = vsel %vm594, %v3969, 0
    %v3994 = vsel %vm594, %v3971, 0
    %v3996 = vsel %vm594, %v3973, 0
    %v3998 = vsel %vm594, %v3975, 0
    %v4000 = vsel %vm594, %v3977, 0
    %v4002 = vsel %vm594, %v3979, 0
    %v4004 = vsel %vm594, %v3981, 0
    %4006 = vmatprep.subr.mxu0 0.0
    %4007 = vmatpush1.xpose.msra.mxu0 %v3994
    %4008 = vmatprep.subr.mxu0 0.0
    %4009 = vmatpush1.xpose.msra.mxu0 %v3996
    %4010 = vmatprep.subr.mxu0 0.0
    %4011 = vmatpush1.xpose.msra.mxu0 %v3998
    %4012 = vmatprep.subr.mxu0 0.0
    %4013 = vmatpush1.xpose.msra.mxu0 %v4000
    %4014 = vmatprep.subr.mxu0 0.0
    %4015 = vmatpush1.xpose.msra.mxu0 %v4002
    %4016 = vmatprep.subr.mxu0 0.0
    %4017 = vmatpush1.xpose.msra.mxu0 %v4004
    %4018 = vmatprep.subr.mxu0 0.0
    %4019 = vmatpush1.xpose.msra.mxu0 0.0
    %4020 = vmatprep.subr.mxu0 0.0
    %4021 = vmatpush1.xpose.msra.mxu0 0.0
    %4022 = vmatprep.subr.mxu0 0.0
    %4023 = vmatpush1.xpose.msra.mxu0 0.0
    %4024 = vmatprep.subr.mxu0 0.0
    %4025 = vmatpush1.xpose.msra.mxu0 0.0
    %4026 = vmatprep.subr.mxu0 0.0
    %4027 = vmatpush1.xpose.msra.mxu0 0.0
    %4028 = vmatprep.subr.mxu0 0.0
    %4029 = vmatpush1.xpose.msra.mxu0 0.0
    %4030 = vmatprep.subr.mxu0 0.0
    %4031 = vmatpush1.xpose.msra.mxu0 0.0
    %4032 = vmatprep.subr.mxu0 0.0
    %4033 = vmatpush1.xpose.msra.mxu0 0.0
    %4034 = vmatprep.subr.mxu0 0.0
    %4035 = vmatpush1.xpose.msra.mxu0 0.0
    %4036 = vmatprep.subr.mxu0 0.0
    %4037 = vmatpush1.xpose.msra.mxu0 0.0
    %4038 = vmatprep.subr.mxu0 0.0
    %4039 = vmatpush1.xpose.msra.mxu0 0.0
    %4040 = vmatprep.subr.mxu0 0.0
    %4041 = vmatpush1.xpose.msra.mxu0 0.0
    %4042 = vmatprep.subr.mxu0 0.0
    %4043 = vmatpush1.xpose.msra.mxu0 0.0
    %4044 = vmatprep.subr.mxu0 0.0
    %4045 = vmatpush1.xpose.msra.mxu0 0.0
    %4046 = vmatprep.subr.mxu0 0.0
    %4047 = vmatpush1.xpose.msra.mxu0 0.0
    %4048 = vmatprep.subr.mxu0 0.0
    %4049 = vmatpush1.xpose.msra.mxu0 0.0
    %4050 = vmatprep.subr.mxu0 0.0
    %4051 = vmatpush1.xpose.msra.mxu0 0.0
    %4052 = vmatprep.subr.mxu0 0.0
    %4053 = vmatpush1.xpose.msra.mxu0 0.0
    %4054 = vmatprep.subr.mxu0 0.0
    %4055 = vmatpush1.xpose.msra.mxu0 0.0
    %4056 = vmatprep.subr.mxu0 0.0
    %4057 = vmatpush1.xpose.msra.mxu0 0.0
    %4058 = vmatprep.subr.mxu0 0.0
    %4059 = vmatpush1.xpose.msra.mxu0 0.0
    %4060 = vmatprep.subr.mxu0 0.0
    %4061 = vmatpush1.xpose.msra.mxu0 0.0
    %4062 = vmatprep.subr.mxu0 0.0
    %4063 = vmatpush1.xpose.msra.mxu0 0.0
    %4064 = vmatprep.subr.mxu0 0.0
    %4065 = vmatpush1.xpose.msra.mxu0 0.0
    %4066 = vmatprep.subr.mxu0 0.0
    %4067 = vmatpush1.xpose.msra.mxu0 0.0
    %4068 = vmatprep.subr.mxu0 0.0
    %4069 = vmatpush1.xpose.msra.mxu0 0.0
    %4070 = vmatprep.mubr.f32.mxu0 0.0
    %4071 = vmatmul.mubr.f32.gmra.mrb[0].mxu0 %v3982
    %v4072 = vpop.f32.mrb[0].mxu0
    %v4073 = vadd.f32 0.0, %v4072
    %v4074 = vpop.f32.mrb[0].mxu0
    %4075 = vmatprep.mubr.f32.mxu0 0.0
    %4076 = vmatmul.mubr.f32.gmra.mrb[0].mxu0 %v3984
    %v4077 = vpop.f32.mrb[0].mxu0
    %v4078 = vadd.f32 0.0, %v4077
    %v4079 = vpop.f32.mrb[0].mxu0
    %4080 = vmatprep.mubr.f32.mxu0 0.0
    %4081 = vmatmul.mubr.f32.gmra.mrb[0].mxu0 %v3986
    %v4082 = vpop.f32.mrb[0].mxu0
    %v4083 = vadd.f32 0.0, %v4082
    %v4084 = vpop.f32.mrb[0].mxu0
    %4085 = vmatprep.mubr.f32.mxu0 0.0
    %4086 = vmatmul.mubr.f32.gmra.mrb[0].mxu0 %v3988
    %v4087 = vpop.f32.mrb[0].mxu0
    %v4088 = vadd.f32 0.0, %v4087
    %v4089 = vpop.f32.mrb[0].mxu0
    %4090 = vmatprep.mubr.f32.mxu0 0.0
    %4091 = vmatmul.mubr.f32.gmra.mrb[0].mxu0 %v3990
    %v4092 = vpop.f32.mrb[0].mxu0
    %v4093 = vadd.f32 0.0, %v4092
    %v4094 = vpop.f32.mrb[0].mxu0
    %4095 = vmatprep.mubr.f32.mxu0 0.0
    %4096 = vmatmul.mubr.f32.gmra.mrb[0].mxu0 %v3992
    %v4097 = vpop.f32.mrb[0].mxu0
    %v4098 = vadd.f32 0.0, %v4097
    %v4099 = vpop.f32.mrb[0].mxu0
    %4100 = vdwg.mxu0
    %v4101 = vmul.f32 %v4073, 0.35355338
    %v4102 = vmul.f32 %v4078, 0.35355338
    %v4103 = vmul.f32 %v4083, 0.35355338
    %v4104 = vmul.f32 %v4088, 0.35355338
    %v4105 = vmul.f32 %v4093, 0.35355338
    %v4106 = vmul.f32 %v4098, 0.35355338
    %v4107 = vadd.f32 %v4101, %v215
    %v4108 = vadd.f32 %v4102, %v216
    %v4109 = vadd.f32 %v4103, %v217
    %v4110 = vadd.f32 %v4104, %v218
    %v4111 = vadd.f32 %v4105, %v219
    %v4112 = vadd.f32 %v4106, %v220
    %v4113 = vsel %vm233, %v4107, -inf
    %4114 = vmax.xlane.f32.xlu0 %v4113
    %v4115 = vpop.xlane.xlu0 %4114
    %v4116 = vsel %vm233, %v4108, -inf
    %4117 = vmax.xlane.f32.xlu0 %v4116
    %v4118 = vpop.xlane.xlu0 %4117
    %v4119 = vsel %vm233, %v4109, -inf
    %4120 = vmax.xlane.f32.xlu0 %v4119
    %v4121 = vpop.xlane.xlu0 %4120
    %v4122 = vsel %vm233, %v4110, -inf
    %4123 = vmax.xlane.f32.xlu0 %v4122
    %v4124 = vpop.xlane.xlu0 %4123
    %v4125 = vsel %vm233, %v4111, -inf
    %4126 = vmax.xlane.f32.xlu0 %v4125
    %v4127 = vpop.xlane.xlu0 %4126
    %v4128 = vsel %vm233, %v4112, -inf
    %4129 = vmax.xlane.f32.xlu0 %v4128
    %v4130 = vpop.xlane.xlu0 %4129
    %v4131 = vsub.f32 %v4107, %v4115
    %v4132 = vsub.f32 %v4108, %v4118
    %v4133 = vsub.f32 %v4109, %v4121
    %v4134 = vsub.f32 %v4110, %v4124
    %v4135 = vsub.f32 %v4111, %v4127
    %v4136 = vsub.f32 %v4112, %v4130
    %v4137 = vmul.f32 %v4131, 1.442695
    %v4138 = vpow.pop %v4137
    %v4139 = vmul.f32 %v4132, 1.442695
    %v4140 = vpow.pop %v4139
    %v4141 = vmul.f32 %v4133, 1.442695
    %v4142 = vpow.pop %v4141
    %v4143 = vmul.f32 %v4134, 1.442695
    %v4144 = vpow.pop %v4143
    %v4145 = vmul.f32 %v4135, 1.442695
    %v4146 = vpow.pop %v4145
    %v4147 = vmul.f32 %v4136, 1.442695
    %v4148 = vpow.pop %v4147
    %v4149 = vsel %vm233, %v4138, 0.0
    %4150 = vadd.xlane.f32.xlu0 %v4149
    %v4151 = vpop.xlane.xlu0 %4150
    %v4152 = vsel %vm233, %v4140, 0.0
    %4153 = vadd.xlane.f32.xlu0 %v4152
    %v4154 = vpop.xlane.xlu0 %4153
    %v4155 = vsel %vm233, %v4142, 0.0
    %4156 = vadd.xlane.f32.xlu0 %v4155
    %v4157 = vpop.xlane.xlu0 %4156
    %v4158 = vsel %vm233, %v4144, 0.0
    %4159 = vadd.xlane.f32.xlu0 %v4158
    %v4160 = vpop.xlane.xlu0 %4159
    %v4161 = vsel %vm233, %v4146, 0.0
    %4162 = vadd.xlane.f32.xlu0 %v4161
    %v4163 = vpop.xlane.xlu0 %4162
    %v4164 = vsel %vm233, %v4148, 0.0
    %4165 = vadd.xlane.f32.xlu0 %v4164
    %v4166 = vpop.xlane.xlu0 %4165
    %v4167 = vrcp.pop %v4151
    %v4168 = vrcp.pop %v4154
    %v4169 = vrcp.pop %v4157
    %v4170 = vrcp.pop %v4160
    %v4171 = vrcp.pop %v4163
    %v4172 = vrcp.pop %v4166
    %v4173 = vmul.f32 %v4138, %v4167
    %v4174 = vmul.f32 %v4140, %v4168
    %v4175 = vmul.f32 %v4142, %v4169
    %v4176 = vmul.f32 %v4144, %v4170
    %v4177 = vmul.f32 %v4146, %v4171
    %v4178 = vmul.f32 %v4148, %v4172
    %4179 = vrot.lane.b32.xlu0 %v3006, 48
    %v4180 = vpop.permute.xlu0 %4179
    %4181 = vrot.lane.b32.xlu0 %v3011, 48
    %v4182 = vpop.permute.xlu0 %4181
    %4183 = vrot.lane.b32.xlu0 %v3016, 48
    %v4184 = vpop.permute.xlu0 %4183
    %4185 = vrot.lane.b32.xlu0 %v3021, 48
    %v4186 = vpop.permute.xlu0 %4185
    %4187 = vrot.lane.b32.xlu0 %v3026, 48
    %v4188 = vpop.permute.xlu0 %4187
    %4189 = vrot.lane.b32.xlu0 %v3031, 48
    %v4190 = vpop.permute.xlu0 %4189
    %v4198 = vsel %vm233, %v4173, 0
    %v4201 = vsel %vm233, %v4174, 0
    %v4204 = vsel %vm233, %v4175, 0
    %v4207 = vsel %vm233, %v4176, 0
    %v4210 = vsel %vm233, %v4177, 0
    %v4213 = vsel %vm233, %v4178, 0
    %4215 = vmatprep.subr.mxu0 0.0
    %4216 = vmatpush1.msra.mxu0 %v4180
    %4217 = vmatprep.subr.mxu0 0.0
    %4218 = vmatpush1.msra.mxu0 %v4182
    %4219 = vmatprep.subr.mxu0 0.0
    %4220 = vmatpush1.msra.mxu0 %v4184
    %4221 = vmatprep.subr.mxu0 0.0
    %4222 = vmatpush1.msra.mxu0 %v4186
    %4223 = vmatprep.subr.mxu0 0.0
    %4224 = vmatpush1.msra.mxu0 %v4188
    %4225 = vmatprep.subr.mxu0 0.0
    %4226 = vmatpush1.msra.mxu0 %v4190
    %4227 = vmatprep.subr.mxu0 0.0
    %4228 = vmatpush1.msra.mxu0 0.0
    %4229 = vmatprep.subr.mxu0 0.0
    %4230 = vmatpush1.msra.mxu0 0.0
    %4231 = vmatprep.subr.mxu0 0.0
    %4232 = vmatpush1.msra.mxu0 0.0
    %4233 = vmatprep.subr.mxu0 0.0
    %4234 = vmatpush1.msra.mxu0 0.0
    %4235 = vmatprep.subr.mxu0 0.0
    %4236 = vmatpush1.msra.mxu0 0.0
    %4237 = vmatprep.subr.mxu0 0.0
    %4238 = vmatpush1.msra.mxu0 0.0
    %4239 = vmatprep.subr.mxu0 0.0
    %4240 = vmatpush1.msra.mxu0 0.0
    %4241 = vmatprep.subr.mxu0 0.0
    %4242 = vmatpush1.msra.mxu0 0.0
    %4243 = vmatprep.subr.mxu0 0.0
    %4244 = vmatpush1.msra.mxu0 0.0
    %4245 = vmatprep.subr.mxu0 0.0
    %4246 = vmatpush1.msra.mxu0 0.0
    %4247 = vmatprep.subr.mxu0 0.0
    %4248 = vmatpush1.msra.mxu0 0.0
    %4249 = vmatprep.subr.mxu0 0.0
    %4250 = vmatpush1.msra.mxu0 0.0
    %4251 = vmatprep.subr.mxu0 0.0
    %4252 = vmatpush1.msra.mxu0 0.0
    %4253 = vmatprep.subr.mxu0 0.0
    %4254 = vmatpush1.msra.mxu0 0.0
    %4255 = vmatprep.subr.mxu0 0.0
    %4256 = vmatpush1.msra.mxu0 0.0
    %4257 = vmatprep.subr.mxu0 0.0
    %4258 = vmatpush1.msra.mxu0 0.0
    %4259 = vmatprep.subr.mxu0 0.0
    %4260 = vmatpush1.msra.mxu0 0.0
    %4261 = vmatprep.subr.mxu0 0.0
    %4262 = vmatpush1.msra.mxu0 0.0
    %4263 = vmatprep.subr.mxu0 0.0
    %4264 = vmatpush1.msra.mxu0 0.0
    %4265 = vmatprep.subr.mxu0 0.0
    %4266 = vmatpush1.msra.mxu0 0.0
    %4267 = vmatprep.subr.mxu0 0.0
    %4268 = vmatpush1.msra.mxu0 0.0
    %4269 = vmatprep.subr.mxu0 0.0
    %4270 = vmatpush1.msra.mxu0 0.0
    %4271 = vmatprep.subr.mxu0 0.0
    %4272 = vmatpush1.msra.mxu0 0.0
    %4273 = vmatprep.subr.mxu0 0.0
    %4274 = vmatpush1.msra.mxu0 0.0
    %4275 = vmatprep.subr.mxu0 0.0
    %4276 = vmatpush1.msra.mxu0 0.0
    %4277 = vmatprep.subr.mxu0 0.0
    %4278 = vmatpush1.msra.mxu0 0.0
    %4279 = vmatprep.mubr.f32.mxu0 0.0
    %4280 = vmatmul.mubr.f32.gmra.mrb[0].mxu0 %v4198
    %v4281 = vpop.f32.mrb[0].mxu0
    %v4282 = vadd.f32 0.0, %v4281
    %v4283 = vpop.f32.mrb[0].mxu0
    %4284 = vmatprep.mubr.f32.mxu0 0.0
    %4285 = vmatmul.mubr.f32.gmra.mrb[0].mxu0 %v4201
    %v4286 = vpop.f32.mrb[0].mxu0
    %v4287 = vadd.f32 0.0, %v4286
    %v4288 = vpop.f32.mrb[0].mxu0
    %4289 = vmatprep.mubr.f32.mxu0 0.0
    %4290 = vmatmul.mubr.f32.gmra.mrb[0].mxu0 %v4204
    %v4291 = vpop.f32.mrb[0].mxu0
    %v4292 = vadd.f32 0.0, %v4291
    %v4293 = vpop.f32.mrb[0].mxu0
    %4294 = vmatprep.mubr.f32.mxu0 0.0
    %4295 = vmatmul.mubr.f32.gmra.mrb[0].mxu0 %v4207
    %v4296 = vpop.f32.mrb[0].mxu0
    %v4297 = vadd.f32 0.0, %v4296
    %v4298 = vpop.f32.mrb[0].mxu0
    %4299 = vmatprep.mubr.f32.mxu0 0.0
    %4300 = vmatmul.mubr.f32.gmra.mrb[0].mxu0 %v4210
    %v4301 = vpop.f32.mrb[0].mxu0
    %v4302 = vadd.f32 0.0, %v4301
    %v4303 = vpop.f32.mrb[0].mxu0
    %4304 = vmatprep.mubr.f32.mxu0 0.0
    %4305 = vmatmul.mubr.f32.gmra.mrb[0].mxu0 %v4213
    %v4306 = vpop.f32.mrb[0].mxu0
    %v4307 = vadd.f32 0.0, %v4306
    %v4308 = vpop.f32.mrb[0].mxu0
    %4309 = vdwg.mxu0
    %v4311 = vsel %vm594, %v4282, 0
    %v4314 = vsel %vm594, %v4287, 0
    %v4317 = vsel %vm594, %v4292, 0
    %v4320 = vsel %vm594, %v4297, 0
    %v4323 = vsel %vm594, %v4302, 0
    %v4326 = vsel %vm594, %v4307, 0
    %4328 = vmatprep.subr.mxu0 0.0
    %4329 = vmatpush1.msra.mxu0 %v181
    %4330 = vmatprep.subr.mxu0 0.0
    %4331 = vmatpush1.msra.mxu0 0.0
    %4332 = vmatprep.subr.mxu0 0.0
    %4333 = vmatpush1.msra.mxu0 0.0
    %4334 = vmatprep.subr.mxu0 0.0
    %4335 = vmatpush1.msra.mxu0 0.0
    %4336 = vmatprep.subr.mxu0 0.0
    %4337 = vmatpush1.msra.mxu0 0.0
    %4338 = vmatprep.subr.mxu0 0.0
    %4339 = vmatpush1.msra.mxu0 0.0
    %4340 = vmatprep.subr.mxu0 0.0
    %4341 = vmatpush1.msra.mxu0 0.0
    %4342 = vmatprep.subr.mxu0 0.0
    %4343 = vmatpush1.msra.mxu0 0.0
    %4344 = vmatprep.subr.mxu0 0.0
    %4345 = vmatpush1.msra.mxu0 0.0
    %4346 = vmatprep.subr.mxu0 0.0
    %4347 = vmatpush1.msra.mxu0 0.0
    %4348 = vmatprep.subr.mxu0 0.0
    %4349 = vmatpush1.msra.mxu0 0.0
    %4350 = vmatprep.subr.mxu0 0.0
    %4351 = vmatpush1.msra.mxu0 0.0
    %4352 = vmatprep.subr.mxu0 0.0
    %4353 = vmatpush1.msra.mxu0 0.0
    %4354 = vmatprep.subr.mxu0 0.0
    %4355 = vmatpush1.msra.mxu0 0.0
    %4356 = vmatprep.subr.mxu0 0.0
    %4357 = vmatpush1.msra.mxu0 0.0
    %4358 = vmatprep.subr.mxu0 0.0
    %4359 = vmatpush1.msra.mxu0 0.0
    %4360 = vmatprep.subr.mxu0 0.0
    %4361 = vmatpush1.msra.mxu0 0.0
    %4362 = vmatprep.subr.mxu0 0.0
    %4363 = vmatpush1.msra.mxu0 0.0
    %4364 = vmatprep.subr.mxu0 0.0
    %4365 = vmatpush1.msra.mxu0 0.0
    %4366 = vmatprep.subr.mxu0 0.0
    %4367 = vmatpush1.msra.mxu0 0.0
    %4368 = vmatprep.subr.mxu0 0.0
    %4369 = vmatpush1.msra.mxu0 0.0
    %4370 = vmatprep.subr.mxu0 0.0
    %4371 = vmatpush1.msra.mxu0 0.0
    %4372 = vmatprep.subr.mxu0 0.0
    %4373 = vmatpush1.msra.mxu0 0.0
    %4374 = vmatprep.subr.mxu0 0.0
    %4375 = vmatpush1.msra.mxu0 0.0
    %4376 = vmatprep.subr.mxu0 0.0
    %4377 = vmatpush1.msra.mxu0 0.0
    %4378 = vmatprep.subr.mxu0 0.0
    %4379 = vmatpush1.msra.mxu0 0.0
    %4380 = vmatprep.subr.mxu0 0.0
    %4381 = vmatpush1.msra.mxu0 0.0
    %4382 = vmatprep.subr.mxu0 0.0
    %4383 = vmatpush1.msra.mxu0 0.0
    %4384 = vmatprep.subr.mxu0 0.0
    %4385 = vmatpush1.msra.mxu0 0.0
    %4386 = vmatprep.subr.mxu0 0.0
    %4387 = vmatpush1.msra.mxu0 0.0
    %4388 = vmatprep.subr.mxu0 0.0
    %4389 = vmatpush1.msra.mxu0 0.0
    %4390 = vmatprep.subr.mxu0 0.0
    %4391 = vmatpush1.msra.mxu0 0.0
    %4392 = vmatprep.mubr.f32.mxu0 0.0
    %4393 = vmatmul.mubr.f32.gmra.mrb[0].mxu0 %v4311
    %v4394 = vpop.f32.mrb[0].mxu0
    %v4395 = vadd.f32 0.0, %v4394
    %v4396 = vpop.f32.mrb[0].mxu0
    %4397 = vmatprep.mubr.f32.mxu0 0.0
    %4398 = vmatmul.mubr.f32.gmra.mrb[0].mxu0 %v4314
    %v4399 = vpop.f32.mrb[0].mxu0
    %v4400 = vadd.f32 0.0, %v4399
    %v4401 = vpop.f32.mrb[0].mxu0
    %4402 = vmatprep.mubr.f32.mxu0 0.0
    %4403 = vmatmul.mubr.f32.gmra.mrb[0].mxu0 %v4317
    %v4404 = vpop.f32.mrb[0].mxu0
    %v4405 = vadd.f32 0.0, %v4404
    %v4406 = vpop.f32.mrb[0].mxu0
    %4407 = vmatprep.mubr.f32.mxu0 0.0
    %4408 = vmatmul.mubr.f32.gmra.mrb[0].mxu0 %v4320
    %v4409 = vpop.f32.mrb[0].mxu0
    %v4410 = vadd.f32 0.0, %v4409
    %v4411 = vpop.f32.mrb[0].mxu0
    %4412 = vmatprep.mubr.f32.mxu0 0.0
    %4413 = vmatmul.mubr.f32.gmra.mrb[0].mxu0 %v4323
    %v4414 = vpop.f32.mrb[0].mxu0
    %v4415 = vadd.f32 0.0, %v4414
    %v4416 = vpop.f32.mrb[0].mxu0
    %4417 = vmatprep.mubr.f32.mxu0 0.0
    %4418 = vmatmul.mubr.f32.gmra.mrb[0].mxu0 %v4326
    %v4419 = vpop.f32.mrb[0].mxu0
    %v4420 = vadd.f32 0.0, %v4419
    %v4421 = vpop.f32.mrb[0].mxu0
    %4422 = vdwg.mxu0
    %v4423 = vadd.f32 %v3930, %v4395
    %v4424 = vadd.f32 %v3935, %v4400
    %v4425 = vadd.f32 %v3940, %v4405
    %v4426 = vadd.f32 %v3945, %v4410
    %v4427 = vadd.f32 %v3950, %v4415
    %v4428 = vadd.f32 %v3955, %v4420
    %4429 = vrot.lane.b32.xlu0 %v3006, 104
    %v4430 = vpop.permute.xlu0 %4429
    %4431 = vrot.lane.b32.xlu0 %v3011, 104
    %v4432 = vpop.permute.xlu0 %4431
    %4433 = vrot.lane.b32.xlu0 %v3016, 104
    %v4434 = vpop.permute.xlu0 %4433
    %4435 = vrot.lane.b32.xlu0 %v3021, 104
    %v4436 = vpop.permute.xlu0 %4435
    %4437 = vrot.lane.b32.xlu0 %v3026, 104
    %v4438 = vpop.permute.xlu0 %4437
    %4439 = vrot.lane.b32.xlu0 %v3031, 104
    %v4440 = vpop.permute.xlu0 %4439
    %4441 = vrot.lane.b32.xlu0 %v3006, 72
    %v4442 = vpop.permute.xlu0 %4441
    %4443 = vrot.lane.b32.xlu0 %v3011, 72
    %v4444 = vpop.permute.xlu0 %4443
    %4445 = vrot.lane.b32.xlu0 %v3016, 72
    %v4446 = vpop.permute.xlu0 %4445
    %4447 = vrot.lane.b32.xlu0 %v3021, 72
    %v4448 = vpop.permute.xlu0 %4447
    %4449 = vrot.lane.b32.xlu0 %v3026, 72
    %v4450 = vpop.permute.xlu0 %4449
    %4451 = vrot.lane.b32.xlu0 %v3031, 72
    %v4452 = vpop.permute.xlu0 %4451
    %v4453 = vsel %vm594, %v4430, 0
    %v4455 = vsel %vm594, %v4432, 0
    %v4457 = vsel %vm594, %v4434, 0
    %v4459 = vsel %vm594, %v4436, 0
    %v4461 = vsel %vm594, %v4438, 0
    %v4463 = vsel %vm594, %v4440, 0
    %v4465 = vsel %vm594, %v4442, 0
    %v4467 = vsel %vm594, %v4444, 0
    %v4469 = vsel %vm594, %v4446, 0
    %v4471 = vsel %vm594, %v4448, 0
    %v4473 = vsel %vm594, %v4450, 0
    %v4475 = vsel %vm594, %v4452, 0
    %4477 = vmatprep.subr.mxu0 0.0
    %4478 = vmatpush1.xpose.msra.mxu0 %v4465
    %4479 = vmatprep.subr.mxu0 0.0
    %4480 = vmatpush1.xpose.msra.mxu0 %v4467
    %4481 = vmatprep.subr.mxu0 0.0
    %4482 = vmatpush1.xpose.msra.mxu0 %v4469
    %4483 = vmatprep.subr.mxu0 0.0
    %4484 = vmatpush1.xpose.msra.mxu0 %v4471
    %4485 = vmatprep.subr.mxu0 0.0
    %4486 = vmatpush1.xpose.msra.mxu0 %v4473
    %4487 = vmatprep.subr.mxu0 0.0
    %4488 = vmatpush1.xpose.msra.mxu0 %v4475
    %4489 = vmatprep.subr.mxu0 0.0
    %4490 = vmatpush1.xpose.msra.mxu0 0.0
    %4491 = vmatprep.subr.mxu0 0.0
    %4492 = vmatpush1.xpose.msra.mxu0 0.0
    %4493 = vmatprep.subr.mxu0 0.0
    %4494 = vmatpush1.xpose.msra.mxu0 0.0
    %4495 = vmatprep.subr.mxu0 0.0
    %4496 = vmatpush1.xpose.msra.mxu0 0.0
    %4497 = vmatprep.subr.mxu0 0.0
    %4498 = vmatpush1.xpose.msra.mxu0 0.0
    %4499 = vmatprep.subr.mxu0 0.0
    %4500 = vmatpush1.xpose.msra.mxu0 0.0
    %4501 = vmatprep.subr.mxu0 0.0
    %4502 = vmatpush1.xpose.msra.mxu0 0.0
    %4503 = vmatprep.subr.mxu0 0.0
    %4504 = vmatpush1.xpose.msra.mxu0 0.0
    %4505 = vmatprep.subr.mxu0 0.0
    %4506 = vmatpush1.xpose.msra.mxu0 0.0
    %4507 = vmatprep.subr.mxu0 0.0
    %4508 = vmatpush1.xpose.msra.mxu0 0.0
    %4509 = vmatprep.subr.mxu0 0.0
    %4510 = vmatpush1.xpose.msra.mxu0 0.0
    %4511 = vmatprep.subr.mxu0 0.0
    %4512 = vmatpush1.xpose.msra.mxu0 0.0
    %4513 = vmatprep.subr.mxu0 0.0
    %4514 = vmatpush1.xpose.msra.mxu0 0.0
    %4515 = vmatprep.subr.mxu0 0.0
    %4516 = vmatpush1.xpose.msra.mxu0 0.0
    %4517 = vmatprep.subr.mxu0 0.0
    %4518 = vmatpush1.xpose.msra.mxu0 0.0
    %4519 = vmatprep.subr.mxu0 0.0
    %4520 = vmatpush1.xpose.msra.mxu0 0.0
    %4521 = vmatprep.subr.mxu0 0.0
    %4522 = vmatpush1.xpose.msra.mxu0 0.0
    %4523 = vmatprep.subr.mxu0 0.0
    %4524 = vmatpush1.xpose.msra.mxu0 0.0
    %4525 = vmatprep.subr.mxu0 0.0
    %4526 = vmatpush1.xpose.msra.mxu0 0.0
    %4527 = vmatprep.subr.mxu0 0.0
    %4528 = vmatpush1.xpose.msra.mxu0 0.0
    %4529 = vmatprep.subr.mxu0 0.0
    %4530 = vmatpush1.xpose.msra.mxu0 0.0
    %4531 = vmatprep.subr.mxu0 0.0
    %4532 = vmatpush1.xpose.msra.mxu0 0.0
    %4533 = vmatprep.subr.mxu0 0.0
    %4534 = vmatpush1.xpose.msra.mxu0 0.0
    %4535 = vmatprep.subr.mxu0 0.0
    %4536 = vmatpush1.xpose.msra.mxu0 0.0
    %4537 = vmatprep.subr.mxu0 0.0
    %4538 = vmatpush1.xpose.msra.mxu0 0.0
    %4539 = vmatprep.subr.mxu0 0.0
    %4540 = vmatpush1.xpose.msra.mxu0 0.0
    %4541 = vmatprep.mubr.f32.mxu0 0.0
    %4542 = vmatmul.mubr.f32.gmra.mrb[0].mxu0 %v4453
    %v4543 = vpop.f32.mrb[0].mxu0
    %v4544 = vadd.f32 0.0, %v4543
    %v4545 = vpop.f32.mrb[0].mxu0
    %4546 = vmatprep.mubr.f32.mxu0 0.0
    %4547 = vmatmul.mubr.f32.gmra.mrb[0].mxu0 %v4455
    %v4548 = vpop.f32.mrb[0].mxu0
    %v4549 = vadd.f32 0.0, %v4548
    %v4550 = vpop.f32.mrb[0].mxu0
    %4551 = vmatprep.mubr.f32.mxu0 0.0
    %4552 = vmatmul.mubr.f32.gmra.mrb[0].mxu0 %v4457
    %v4553 = vpop.f32.mrb[0].mxu0
    %v4554 = vadd.f32 0.0, %v4553
    %v4555 = vpop.f32.mrb[0].mxu0
    %4556 = vmatprep.mubr.f32.mxu0 0.0
    %4557 = vmatmul.mubr.f32.gmra.mrb[0].mxu0 %v4459
    %v4558 = vpop.f32.mrb[0].mxu0
    %v4559 = vadd.f32 0.0, %v4558
    %v4560 = vpop.f32.mrb[0].mxu0
    %4561 = vmatprep.mubr.f32.mxu0 0.0
    %4562 = vmatmul.mubr.f32.gmra.mrb[0].mxu0 %v4461
    %v4563 = vpop.f32.mrb[0].mxu0
    %v4564 = vadd.f32 0.0, %v4563
    %v4565 = vpop.f32.mrb[0].mxu0
    %4566 = vmatprep.mubr.f32.mxu0 0.0
    %4567 = vmatmul.mubr.f32.gmra.mrb[0].mxu0 %v4463
    %v4568 = vpop.f32.mrb[0].mxu0
    %v4569 = vadd.f32 0.0, %v4568
    %v4570 = vpop.f32.mrb[0].mxu0
    %4571 = vdwg.mxu0
    %v4572 = vmul.f32 %v4544, 0.35355338
    %v4573 = vmul.f32 %v4549, 0.35355338
    %v4574 = vmul.f32 %v4554, 0.35355338
    %v4575 = vmul.f32 %v4559, 0.35355338
    %v4576 = vmul.f32 %v4564, 0.35355338
    %v4577 = vmul.f32 %v4569, 0.35355338
    %v4578 = vadd.f32 %v4572, %v215
    %v4579 = vadd.f32 %v4573, %v216
    %v4580 = vadd.f32 %v4574, %v217
    %v4581 = vadd.f32 %v4575, %v218
    %v4582 = vadd.f32 %v4576, %v219
    %v4583 = vadd.f32 %v4577, %v220
    %v4584 = vsel %vm233, %v4578, -inf
    %4585 = vmax.xlane.f32.xlu0 %v4584
    %v4586 = vpop.xlane.xlu0 %4585
    %v4587 = vsel %vm233, %v4579, -inf
    %4588 = vmax.xlane.f32.xlu0 %v4587
    %v4589 = vpop.xlane.xlu0 %4588
    %v4590 = vsel %vm233, %v4580, -inf
    %4591 = vmax.xlane.f32.xlu0 %v4590
    %v4592 = vpop.xlane.xlu0 %4591
    %v4593 = vsel %vm233, %v4581, -inf
    %4594 = vmax.xlane.f32.xlu0 %v4593
    %v4595 = vpop.xlane.xlu0 %4594
    %v4596 = vsel %vm233, %v4582, -inf
    %4597 = vmax.xlane.f32.xlu0 %v4596
    %v4598 = vpop.xlane.xlu0 %4597
    %v4599 = vsel %vm233, %v4583, -inf
    %4600 = vmax.xlane.f32.xlu0 %v4599
    %v4601 = vpop.xlane.xlu0 %4600
    %v4602 = vsub.f32 %v4578, %v4586
    %v4603 = vsub.f32 %v4579, %v4589
    %v4604 = vsub.f32 %v4580, %v4592
    %v4605 = vsub.f32 %v4581, %v4595
    %v4606 = vsub.f32 %v4582, %v4598
    %v4607 = vsub.f32 %v4583, %v4601
    %v4608 = vmul.f32 %v4602, 1.442695
    %v4609 = vpow.pop %v4608
    %v4610 = vmul.f32 %v4603, 1.442695
    %v4611 = vpow.pop %v4610
    %v4612 = vmul.f32 %v4604, 1.442695
    %v4613 = vpow.pop %v4612
    %v4614 = vmul.f32 %v4605, 1.442695
    %v4615 = vpow.pop %v4614
    %v4616 = vmul.f32 %v4606, 1.442695
    %v4617 = vpow.pop %v4616
    %v4618 = vmul.f32 %v4607, 1.442695
    %v4619 = vpow.pop %v4618
    %v4620 = vsel %vm233, %v4609, 0.0
    %4621 = vadd.xlane.f32.xlu0 %v4620
    %v4622 = vpop.xlane.xlu0 %4621
    %v4623 = vsel %vm233, %v4611, 0.0
    %4624 = vadd.xlane.f32.xlu0 %v4623
    %v4625 = vpop.xlane.xlu0 %4624
    %v4626 = vsel %vm233, %v4613, 0.0
    %4627 = vadd.xlane.f32.xlu0 %v4626
    %v4628 = vpop.xlane.xlu0 %4627
    %v4629 = vsel %vm233, %v4615, 0.0
    %4630 = vadd.xlane.f32.xlu0 %v4629
    %v4631 = vpop.xlane.xlu0 %4630
    %v4632 = vsel %vm233, %v4617, 0.0
    %4633 = vadd.xlane.f32.xlu0 %v4632
    %v4634 = vpop.xlane.xlu0 %4633
    %v4635 = vsel %vm233, %v4619, 0.0
    %4636 = vadd.xlane.f32.xlu0 %v4635
    %v4637 = vpop.xlane.xlu0 %4636
    %v4638 = vrcp.pop %v4622
    %v4639 = vrcp.pop %v4625
    %v4640 = vrcp.pop %v4628
    %v4641 = vrcp.pop %v4631
    %v4642 = vrcp.pop %v4634
    %v4643 = vrcp.pop %v4637
    %v4644 = vmul.f32 %v4609, %v4638
    %v4645 = vmul.f32 %v4611, %v4639
    %v4646 = vmul.f32 %v4613, %v4640
    %v4647 = vmul.f32 %v4615, %v4641
    %v4648 = vmul.f32 %v4617, %v4642
    %v4649 = vmul.f32 %v4619, %v4643
    %4650 = vrot.lane.b32.xlu0 %v3006, 40
    %v4651 = vpop.permute.xlu0 %4650
    %4652 = vrot.lane.b32.xlu0 %v3011, 40
    %v4653 = vpop.permute.xlu0 %4652
    %4654 = vrot.lane.b32.xlu0 %v3016, 40
    %v4655 = vpop.permute.xlu0 %4654
    %4656 = vrot.lane.b32.xlu0 %v3021, 40
    %v4657 = vpop.permute.xlu0 %4656
    %4658 = vrot.lane.b32.xlu0 %v3026, 40
    %v4659 = vpop.permute.xlu0 %4658
    %4660 = vrot.lane.b32.xlu0 %v3031, 40
    %v4661 = vpop.permute.xlu0 %4660
    %v4669 = vsel %vm233, %v4644, 0
    %v4672 = vsel %vm233, %v4645, 0
    %v4675 = vsel %vm233, %v4646, 0
    %v4678 = vsel %vm233, %v4647, 0
    %v4681 = vsel %vm233, %v4648, 0
    %v4684 = vsel %vm233, %v4649, 0
    %4686 = vmatprep.subr.mxu0 0.0
    %4687 = vmatpush1.msra.mxu0 %v4651
    %4688 = vmatprep.subr.mxu0 0.0
    %4689 = vmatpush1.msra.mxu0 %v4653
    %4690 = vmatprep.subr.mxu0 0.0
    %4691 = vmatpush1.msra.mxu0 %v4655
    %4692 = vmatprep.subr.mxu0 0.0
    %4693 = vmatpush1.msra.mxu0 %v4657
    %4694 = vmatprep.subr.mxu0 0.0
    %4695 = vmatpush1.msra.mxu0 %v4659
    %4696 = vmatprep.subr.mxu0 0.0
    %4697 = vmatpush1.msra.mxu0 %v4661
    %4698 = vmatprep.subr.mxu0 0.0
    %4699 = vmatpush1.msra.mxu0 0.0
    %4700 = vmatprep.subr.mxu0 0.0
    %4701 = vmatpush1.msra.mxu0 0.0
    %4702 = vmatprep.subr.mxu0 0.0
    %4703 = vmatpush1.msra.mxu0 0.0
    %4704 = vmatprep.subr.mxu0 0.0
    %4705 = vmatpush1.msra.mxu0 0.0
    %4706 = vmatprep.subr.mxu0 0.0
    %4707 = vmatpush1.msra.mxu0 0.0
    %4708 = vmatprep.subr.mxu0 0.0
    %4709 = vmatpush1.msra.mxu0 0.0
    %4710 = vmatprep.subr.mxu0 0.0
    %4711 = vmatpush1.msra.mxu0 0.0
    %4712 = vmatprep.subr.mxu0 0.0
    %4713 = vmatpush1.msra.mxu0 0.0
    %4714 = vmatprep.subr.mxu0 0.0
    %4715 = vmatpush1.msra.mxu0 0.0
    %4716 = vmatprep.subr.mxu0 0.0
    %4717 = vmatpush1.msra.mxu0 0.0
    %4718 = vmatprep.subr.mxu0 0.0
    %4719 = vmatpush1.msra.mxu0 0.0
    %4720 = vmatprep.subr.mxu0 0.0
    %4721 = vmatpush1.msra.mxu0 0.0
    %4722 = vmatprep.subr.mxu0 0.0
    %4723 = vmatpush1.msra.mxu0 0.0
    %4724 = vmatprep.subr.mxu0 0.0
    %4725 = vmatpush1.msra.mxu0 0.0
    %4726 = vmatprep.subr.mxu0 0.0
    %4727 = vmatpush1.msra.mxu0 0.0
    %4728 = vmatprep.subr.mxu0 0.0
    %4729 = vmatpush1.msra.mxu0 0.0
    %4730 = vmatprep.subr.mxu0 0.0
    %4731 = vmatpush1.msra.mxu0 0.0
    %4732 = vmatprep.subr.mxu0 0.0
    %4733 = vmatpush1.msra.mxu0 0.0
    %4734 = vmatprep.subr.mxu0 0.0
    %4735 = vmatpush1.msra.mxu0 0.0
    %4736 = vmatprep.subr.mxu0 0.0
    %4737 = vmatpush1.msra.mxu0 0.0
    %4738 = vmatprep.subr.mxu0 0.0
    %4739 = vmatpush1.msra.mxu0 0.0
    %4740 = vmatprep.subr.mxu0 0.0
    %4741 = vmatpush1.msra.mxu0 0.0
    %4742 = vmatprep.subr.mxu0 0.0
    %4743 = vmatpush1.msra.mxu0 0.0
    %4744 = vmatprep.subr.mxu0 0.0
    %4745 = vmatpush1.msra.mxu0 0.0
    %4746 = vmatprep.subr.mxu0 0.0
    %4747 = vmatpush1.msra.mxu0 0.0
    %4748 = vmatprep.subr.mxu0 0.0
    %4749 = vmatpush1.msra.mxu0 0.0
    %4750 = vmatprep.mubr.f32.mxu0 0.0
    %4751 = vmatmul.mubr.f32.gmra.mrb[0].mxu0 %v4669
    %v4752 = vpop.f32.mrb[0].mxu0
    %v4753 = vadd.f32 0.0, %v4752
    %v4754 = vpop.f32.mrb[0].mxu0
    %4755 = vmatprep.mubr.f32.mxu0 0.0
    %4756 = vmatmul.mubr.f32.gmra.mrb[0].mxu0 %v4672
    %v4757 = vpop.f32.mrb[0].mxu0
    %v4758 = vadd.f32 0.0, %v4757
    %v4759 = vpop.f32.mrb[0].mxu0
    %4760 = vmatprep.mubr.f32.mxu0 0.0
    %4761 = vmatmul.mubr.f32.gmra.mrb[0].mxu0 %v4675
    %v4762 = vpop.f32.mrb[0].mxu0
    %v4763 = vadd.f32 0.0, %v4762
    %v4764 = vpop.f32.mrb[0].mxu0
    %4765 = vmatprep.mubr.f32.mxu0 0.0
    %4766 = vmatmul.mubr.f32.gmra.mrb[0].mxu0 %v4678
    %v4767 = vpop.f32.mrb[0].mxu0
    %v4768 = vadd.f32 0.0, %v4767
    %v4769 = vpop.f32.mrb[0].mxu0
    %4770 = vmatprep.mubr.f32.mxu0 0.0
    %4771 = vmatmul.mubr.f32.gmra.mrb[0].mxu0 %v4681
    %v4772 = vpop.f32.mrb[0].mxu0
    %v4773 = vadd.f32 0.0, %v4772
    %v4774 = vpop.f32.mrb[0].mxu0
    %4775 = vmatprep.mubr.f32.mxu0 0.0
    %4776 = vmatmul.mubr.f32.gmra.mrb[0].mxu0 %v4684
    %v4777 = vpop.f32.mrb[0].mxu0
    %v4778 = vadd.f32 0.0, %v4777
    %v4779 = vpop.f32.mrb[0].mxu0
    %4780 = vdwg.mxu0
    %v4782 = vsel %vm594, %v4753, 0
    %v4785 = vsel %vm594, %v4758, 0
    %v4788 = vsel %vm594, %v4763, 0
    %v4791 = vsel %vm594, %v4768, 0
    %v4794 = vsel %vm594, %v4773, 0
    %v4797 = vsel %vm594, %v4778, 0
    %4799 = vmatprep.subr.mxu0 0.0
    %4800 = vmatpush1.msra.mxu0 %v182
    %4801 = vmatprep.subr.mxu0 0.0
    %4802 = vmatpush1.msra.mxu0 0.0
    %4803 = vmatprep.subr.mxu0 0.0
    %4804 = vmatpush1.msra.mxu0 0.0
    %4805 = vmatprep.subr.mxu0 0.0
    %4806 = vmatpush1.msra.mxu0 0.0
    %4807 = vmatprep.subr.mxu0 0.0
    %4808 = vmatpush1.msra.mxu0 0.0
    %4809 = vmatprep.subr.mxu0 0.0
    %4810 = vmatpush1.msra.mxu0 0.0
    %4811 = vmatprep.subr.mxu0 0.0
    %4812 = vmatpush1.msra.mxu0 0.0
    %4813 = vmatprep.subr.mxu0 0.0
    %4814 = vmatpush1.msra.mxu0 0.0
    %4815 = vmatprep.subr.mxu0 0.0
    %4816 = vmatpush1.msra.mxu0 0.0
    %4817 = vmatprep.subr.mxu0 0.0
    %4818 = vmatpush1.msra.mxu0 0.0
    %4819 = vmatprep.subr.mxu0 0.0
    %4820 = vmatpush1.msra.mxu0 0.0
    %4821 = vmatprep.subr.mxu0 0.0
    %4822 = vmatpush1.msra.mxu0 0.0
    %4823 = vmatprep.subr.mxu0 0.0
    %4824 = vmatpush1.msra.mxu0 0.0
    %4825 = vmatprep.subr.mxu0 0.0
    %4826 = vmatpush1.msra.mxu0 0.0
    %4827 = vmatprep.subr.mxu0 0.0
    %4828 = vmatpush1.msra.mxu0 0.0
    %4829 = vmatprep.subr.mxu0 0.0
    %4830 = vmatpush1.msra.mxu0 0.0
    %4831 = vmatprep.subr.mxu0 0.0
    %4832 = vmatpush1.msra.mxu0 0.0
    %4833 = vmatprep.subr.mxu0 0.0
    %4834 = vmatpush1.msra.mxu0 0.0
    %4835 = vmatprep.subr.mxu0 0.0
    %4836 = vmatpush1.msra.mxu0 0.0
    %4837 = vmatprep.subr.mxu0 0.0
    %4838 = vmatpush1.msra.mxu0 0.0
    %4839 = vmatprep.subr.mxu0 0.0
    %4840 = vmatpush1.msra.mxu0 0.0
    %4841 = vmatprep.subr.mxu0 0.0
    %4842 = vmatpush1.msra.mxu0 0.0
    %4843 = vmatprep.subr.mxu0 0.0
    %4844 = vmatpush1.msra.mxu0 0.0
    %4845 = vmatprep.subr.mxu0 0.0
    %4846 = vmatpush1.msra.mxu0 0.0
    %4847 = vmatprep.subr.mxu0 0.0
    %4848 = vmatpush1.msra.mxu0 0.0
    %4849 = vmatprep.subr.mxu0 0.0
    %4850 = vmatpush1.msra.mxu0 0.0
    %4851 = vmatprep.subr.mxu0 0.0
    %4852 = vmatpush1.msra.mxu0 0.0
    %4853 = vmatprep.subr.mxu0 0.0
    %4854 = vmatpush1.msra.mxu0 0.0
    %4855 = vmatprep.subr.mxu0 0.0
    %4856 = vmatpush1.msra.mxu0 0.0
    %4857 = vmatprep.subr.mxu0 0.0
    %4858 = vmatpush1.msra.mxu0 0.0
    %4859 = vmatprep.subr.mxu0 0.0
    %4860 = vmatpush1.msra.mxu0 0.0
    %4861 = vmatprep.subr.mxu0 0.0
    %4862 = vmatpush1.msra.mxu0 0.0
    %4863 = vmatprep.mubr.f32.mxu0 0.0
    %4864 = vmatmul.mubr.f32.gmra.mrb[0].mxu0 %v4782
    %v4865 = vpop.f32.mrb[0].mxu0
    %v4866 = vadd.f32 0.0, %v4865
    %v4867 = vpop.f32.mrb[0].mxu0
    %4868 = vmatprep.mubr.f32.mxu0 0.0
    %4869 = vmatmul.mubr.f32.gmra.mrb[0].mxu0 %v4785
    %v4870 = vpop.f32.mrb[0].mxu0
    %v4871 = vadd.f32 0.0, %v4870
    %v4872 = vpop.f32.mrb[0].mxu0
    %4873 = vmatprep.mubr.f32.mxu0 0.0
    %4874 = vmatmul.mubr.f32.gmra.mrb[0].mxu0 %v4788
    %v4875 = vpop.f32.mrb[0].mxu0
    %v4876 = vadd.f32 0.0, %v4875
    %v4877 = vpop.f32.mrb[0].mxu0
    %4878 = vmatprep.mubr.f32.mxu0 0.0
    %4879 = vmatmul.mubr.f32.gmra.mrb[0].mxu0 %v4791
    %v4880 = vpop.f32.mrb[0].mxu0
    %v4881 = vadd.f32 0.0, %v4880
    %v4882 = vpop.f32.mrb[0].mxu0
    %4883 = vmatprep.mubr.f32.mxu0 0.0
    %4884 = vmatmul.mubr.f32.gmra.mrb[0].mxu0 %v4794
    %v4885 = vpop.f32.mrb[0].mxu0
    %v4886 = vadd.f32 0.0, %v4885
    %v4887 = vpop.f32.mrb[0].mxu0
    %4888 = vmatprep.mubr.f32.mxu0 0.0
    %4889 = vmatmul.mubr.f32.gmra.mrb[0].mxu0 %v4797
    %v4890 = vpop.f32.mrb[0].mxu0
    %v4891 = vadd.f32 0.0, %v4890
    %v4892 = vpop.f32.mrb[0].mxu0
    %4893 = vdwg.mxu0
    %v4894 = vadd.f32 %v4423, %v4866
    %v4895 = vadd.f32 %v4424, %v4871
    %v4896 = vadd.f32 %v4425, %v4876
    %v4897 = vadd.f32 %v4426, %v4881
    %v4898 = vadd.f32 %v4427, %v4886
    %v4899 = vadd.f32 %v4428, %v4891
    %v4900 = vadd.f32 %v2813, %v4894
    %v4901 = vadd.f32 %v2814, %v4895
    %v4902 = vadd.f32 %v2815, %v4896
    %v4903 = vadd.f32 %v2816, %v4897
    %v4904 = vadd.f32 %v2817, %v4898
    %v4905 = vadd.f32 %v2818, %v4899
    %v4907 = vlaneseq
    %v4908 = vshrl.u32 %v4907, 7
    %v4909 = vsub.s32 0, %v4908
    %v4910 = vrot.slane %v183, %v4909
    %v4912 = vadd.f32 %v4900, %v4910
    %v4913 = vadd.f32 %v4901, %v4910
    %v4914 = vadd.f32 %v4902, %v4910
    %v4915 = vadd.f32 %v4903, %v4910
    %v4916 = vadd.f32 %v4904, %v4910
    %v4917 = vadd.f32 %v4905, %v4910
    %v4918 = vsel %vm359, %v4912, 0.0
    %4919 = vadd.xlane.f32.xlu0 %v4918
    %v4920 = vpop.xlane.xlu0 %4919
    %v4921 = vsel %vm359, %v4913, 0.0
    %4922 = vadd.xlane.f32.xlu0 %v4921
    %v4923 = vpop.xlane.xlu0 %4922
    %v4924 = vsel %vm359, %v4914, 0.0
    %4925 = vadd.xlane.f32.xlu0 %v4924
    %v4926 = vpop.xlane.xlu0 %4925
    %v4927 = vsel %vm359, %v4915, 0.0
    %4928 = vadd.xlane.f32.xlu0 %v4927
    %v4929 = vpop.xlane.xlu0 %4928
    %v4930 = vsel %vm359, %v4916, 0.0
    %4931 = vadd.xlane.f32.xlu0 %v4930
    %v4932 = vpop.xlane.xlu0 %4931
    %v4933 = vsel %vm359, %v4917, 0.0
    %4934 = vadd.xlane.f32.xlu0 %v4933
    %v4935 = vpop.xlane.xlu0 %4934
    %v4936 = vmul.f32 %v4920, %v378
    %v4937 = vmul.f32 %v4923, %v378
    %v4938 = vmul.f32 %v4926, %v378
    %v4939 = vmul.f32 %v4929, %v378
    %v4940 = vmul.f32 %v4932, %v378
    %v4941 = vmul.f32 %v4935, %v378
    %v4942 = vsub.f32 %v4912, %v4936
    %v4943 = vsub.f32 %v4913, %v4937
    %v4944 = vsub.f32 %v4914, %v4938
    %v4945 = vsub.f32 %v4915, %v4939
    %v4946 = vsub.f32 %v4916, %v4940
    %v4947 = vsub.f32 %v4917, %v4941
    %v4948 = vmul.f32 %v4942, %v4942
    %v4949 = vmul.f32 %v4943, %v4943
    %v4950 = vmul.f32 %v4944, %v4944
    %v4951 = vmul.f32 %v4945, %v4945
    %v4952 = vmul.f32 %v4946, %v4946
    %v4953 = vmul.f32 %v4947, %v4947
    %v4954 = vsel %vm359, %v4948, 0.0
    %4955 = vadd.xlane.f32.xlu0 %v4954
    %v4956 = vpop.xlane.xlu0 %4955
    %v4957 = vsel %vm359, %v4949, 0.0
    %4958 = vadd.xlane.f32.xlu0 %v4957
    %v4959 = vpop.xlane.xlu0 %4958
    %v4960 = vsel %vm359, %v4950, 0.0
    %4961 = vadd.xlane.f32.xlu0 %v4960
    %v4962 = vpop.xlane.xlu0 %4961
    %v4963 = vsel %vm359, %v4951, 0.0
    %4964 = vadd.xlane.f32.xlu0 %v4963
    %v4965 = vpop.xlane.xlu0 %4964
    %v4966 = vsel %vm359, %v4952, 0.0
    %4967 = vadd.xlane.f32.xlu0 %v4966
    %v4968 = vpop.xlane.xlu0 %4967
    %v4969 = vsel %vm359, %v4953, 0.0
    %4970 = vadd.xlane.f32.xlu0 %v4969
    %v4971 = vpop.xlane.xlu0 %4970
    %v4972 = vmul.f32 %v4956, %v378
    %v4973 = vmul.f32 %v4959, %v378
    %v4974 = vmul.f32 %v4962, %v378
    %v4975 = vmul.f32 %v4965, %v378
    %v4976 = vmul.f32 %v4968, %v378
    %v4977 = vmul.f32 %v4971, %v378
    %v4978 = vadd.f32 %v4972, 1e-06
    %v4979 = vadd.f32 %v4973, 1e-06
    %v4980 = vadd.f32 %v4974, 1e-06
    %v4981 = vadd.f32 %v4975, 1e-06
    %v4982 = vadd.f32 %v4976, 1e-06
    %v4983 = vadd.f32 %v4977, 1e-06
    %v4984 = vrsqrt.pop %v4978
    %v4985 = vrsqrt.pop %v4979
    %v4986 = vrsqrt.pop %v4980
    %v4987 = vrsqrt.pop %v4981
    %v4988 = vrsqrt.pop %v4982
    %v4989 = vrsqrt.pop %v4983
    %v4990 = vmul.f32 %v4942, %v4984
    %v4991 = vmul.f32 %v4943, %v4985
    %v4992 = vmul.f32 %v4944, %v4986
    %v4993 = vmul.f32 %v4945, %v4987
    %v4994 = vmul.f32 %v4946, %v4988
    %v4995 = vmul.f32 %v4947, %v4989
    %v4997 = vlaneseq
    %v4998 = vshrl.u32 %v4997, 7
    %v4999 = vsub.s32 0, %v4998
    %v5000 = vrot.slane %v184, %v4999
    %v5002 = vmul.f32 %v4990, %v5000
    %v5003 = vmul.f32 %v4991, %v5000
    %v5004 = vmul.f32 %v4992, %v5000
    %v5005 = vmul.f32 %v4993, %v5000
    %v5006 = vmul.f32 %v4994, %v5000
    %v5007 = vmul.f32 %v4995, %v5000
    %v5009 = vlaneseq
    %v5010 = vshrl.u32 %v5009, 7
    %v5011 = vsub.s32 0, %v5010
    %v5012 = vrot.slane %v185, %v5011
    %v5014 = vadd.f32 %v5002, %v5012
    %v5015 = vadd.f32 %v5003, %v5012
    %v5016 = vadd.f32 %v5004, %v5012
    %v5017 = vadd.f32 %v5005, %v5012
    %v5018 = vadd.f32 %v5006, %v5012
    %v5019 = vadd.f32 %v5007, %v5012
    %v5021 = vlaneseq
    %v5022 = vshrl.u32 %v5021, 7
    %v5023 = vsub.s32 0, %v5022
    %v5024 = vrot.slane %v190, %v5023
    %v5027 = vsel %vm359, %v5014, 0
    %v5030 = vsel %vm359, %v5015, 0
    %v5033 = vsel %vm359, %v5016, 0
    %v5036 = vsel %vm359, %v5017, 0
    %v5039 = vsel %vm359, %v5018, 0
    %v5042 = vsel %vm359, %v5019, 0
    %5044 = vmatprep.subr.mxu0 0.0
    %5045 = vmatpush1.msra.mxu0 %v186
    %5046 = vmatprep.subr.mxu0 0.0
    %5047 = vmatpush1.msra.mxu0 %v187
    %5048 = vmatprep.subr.mxu0 0.0
    %5049 = vmatpush1.msra.mxu0 %v188
    %5050 = vmatprep.subr.mxu0 0.0
    %5051 = vmatpush1.msra.mxu0 %v189
    %5052 = vmatprep.subr.mxu0 0.0
    %5053 = vmatpush1.msra.mxu0 0.0
    %5054 = vmatprep.subr.mxu0 0.0
    %5055 = vmatpush1.msra.mxu0 0.0
    %5056 = vmatprep.subr.mxu0 0.0
    %5057 = vmatpush1.msra.mxu0 0.0
    %5058 = vmatprep.subr.mxu0 0.0
    %5059 = vmatpush1.msra.mxu0 0.0
    %5060 = vmatprep.subr.mxu0 0.0
    %5061 = vmatpush1.msra.mxu0 0.0
    %5062 = vmatprep.subr.mxu0 0.0
    %5063 = vmatpush1.msra.mxu0 0.0
    %5064 = vmatprep.subr.mxu0 0.0
    %5065 = vmatpush1.msra.mxu0 0.0
    %5066 = vmatprep.subr.mxu0 0.0
    %5067 = vmatpush1.msra.mxu0 0.0
    %5068 = vmatprep.subr.mxu0 0.0
    %5069 = vmatpush1.msra.mxu0 0.0
    %5070 = vmatprep.subr.mxu0 0.0
    %5071 = vmatpush1.msra.mxu0 0.0
    %5072 = vmatprep.subr.mxu0 0.0
    %5073 = vmatpush1.msra.mxu0 0.0
    %5074 = vmatprep.subr.mxu0 0.0
    %5075 = vmatpush1.msra.mxu0 0.0
    %5076 = vmatprep.subr.mxu0 0.0
    %5077 = vmatpush1.msra.mxu0 0.0
    %5078 = vmatprep.subr.mxu0 0.0
    %5079 = vmatpush1.msra.mxu0 0.0
    %5080 = vmatprep.subr.mxu0 0.0
    %5081 = vmatpush1.msra.mxu0 0.0
    %5082 = vmatprep.subr.mxu0 0.0
    %5083 = vmatpush1.msra.mxu0 0.0
    %5084 = vmatprep.subr.mxu0 0.0
    %5085 = vmatpush1.msra.mxu0 0.0
    %5086 = vmatprep.subr.mxu0 0.0
    %5087 = vmatpush1.msra.mxu0 0.0
    %5088 = vmatprep.subr.mxu0 0.0
    %5089 = vmatpush1.msra.mxu0 0.0
    %5090 = vmatprep.subr.mxu0 0.0
    %5091 = vmatpush1.msra.mxu0 0.0
    %5092 = vmatprep.subr.mxu0 0.0
    %5093 = vmatpush1.msra.mxu0 0.0
    %5094 = vmatprep.subr.mxu0 0.0
    %5095 = vmatpush1.msra.mxu0 0.0
    %5096 = vmatprep.subr.mxu0 0.0
    %5097 = vmatpush1.msra.mxu0 0.0
    %5098 = vmatprep.subr.mxu0 0.0
    %5099 = vmatpush1.msra.mxu0 0.0
    %5100 = vmatprep.subr.mxu0 0.0
    %5101 = vmatpush1.msra.mxu0 0.0
    %5102 = vmatprep.subr.mxu0 0.0
    %5103 = vmatpush1.msra.mxu0 0.0
    %5104 = vmatprep.subr.mxu0 0.0
    %5105 = vmatpush1.msra.mxu0 0.0
    %5106 = vmatprep.subr.mxu0 0.0
    %5107 = vmatpush1.msra.mxu0 0.0
    %5108 = vmatprep.mubr.f32.mxu0 0.0
    %5109 = vmatmul.mubr.f32.gmra.mrb[0].mxu0 %v5027
    %v5110 = vpop.f32.mrb[0].mxu0
    %v5111 = vadd.f32 %v5024, %v5110
    %v5112 = vpop.f32.mrb[0].mxu0
    %5113 = vmatprep.mubr.f32.mxu0 0.0
    %5114 = vmatmul.mubr.f32.gmra.mrb[0].mxu0 %v5030
    %v5115 = vpop.f32.mrb[0].mxu0
    %v5116 = vadd.f32 %v5024, %v5115
    %v5117 = vpop.f32.mrb[0].mxu0
    %5118 = vmatprep.mubr.f32.mxu0 0.0
    %5119 = vmatmul.mubr.f32.gmra.mrb[0].mxu0 %v5033
    %v5120 = vpop.f32.mrb[0].mxu0
    %v5121 = vadd.f32 %v5024, %v5120
    %v5122 = vpop.f32.mrb[0].mxu0
    %5123 = vmatprep.mubr.f32.mxu0 0.0
    %5124 = vmatmul.mubr.f32.gmra.mrb[0].mxu0 %v5036
    %v5125 = vpop.f32.mrb[0].mxu0
    %v5126 = vadd.f32 %v5024, %v5125
    %v5127 = vpop.f32.mrb[0].mxu0
    %5128 = vmatprep.mubr.f32.mxu0 0.0
    %5129 = vmatmul.mubr.f32.gmra.mrb[0].mxu0 %v5039
    %v5130 = vpop.f32.mrb[0].mxu0
    %v5131 = vadd.f32 %v5024, %v5130
    %v5132 = vpop.f32.mrb[0].mxu0
    %5133 = vmatprep.mubr.f32.mxu0 0.0
    %5134 = vmatmul.mubr.f32.gmra.mrb[0].mxu0 %v5042
    %v5135 = vpop.f32.mrb[0].mxu0
    %v5136 = vadd.f32 %v5024, %v5135
    %v5137 = vpop.f32.mrb[0].mxu0
    %5138 = vdwg.mxu0
    %v5139 = vmul.f32 %v5111, 0.5
    %v5140 = vmul.f32 %v5116, 0.5
    %v5141 = vmul.f32 %v5121, 0.5
    %v5142 = vmul.f32 %v5126, 0.5
    %v5143 = vmul.f32 %v5131, 0.5
    %v5144 = vmul.f32 %v5136, 0.5
    %v5145 = vmul.f32 %v5111, 0.70710677
    %v5146 = vmul.f32 %v5116, 0.70710677
    %v5147 = vmul.f32 %v5121, 0.70710677
    %v5148 = vmul.f32 %v5126, 0.70710677
    %v5149 = vmul.f32 %v5131, 0.70710677
    %v5150 = vmul.f32 %v5136, 0.70710677
    %v5151 = verf.f32.pop %v5145
    %v5152 = verf.f32.pop %v5146
    %v5153 = verf.f32.pop %v5147
    %v5154 = verf.f32.pop %v5148
    %v5155 = verf.f32.pop %v5149
    %v5156 = verf.f32.pop %v5150
    %v5157 = vadd.f32 %v5151, 1.0
    %v5158 = vadd.f32 %v5152, 1.0
    %v5159 = vadd.f32 %v5153, 1.0
    %v5160 = vadd.f32 %v5154, 1.0
    %v5161 = vadd.f32 %v5155, 1.0
    %v5162 = vadd.f32 %v5156, 1.0
    %v5163 = vmul.f32 %v5139, %v5157
    %v5164 = vmul.f32 %v5140, %v5158
    %v5165 = vmul.f32 %v5141, %v5159
    %v5166 = vmul.f32 %v5142, %v5160
    %v5167 = vmul.f32 %v5143, %v5161
    %v5168 = vmul.f32 %v5144, %v5162
    %v5170 = vlaneseq
    %v5171 = vshrl.u32 %v5170, 7
    %v5172 = vsub.s32 0, %v5171
    %v5173 = vrot.slane %v207, %v5172
    %5175 = vmatprep.subr.mxu0 0.0
    %5176 = vmatpush1.msra.mxu0 %v191
    %5177 = vmatprep.subr.mxu0 0.0
    %5178 = vmatpush1.msra.mxu0 %v192
    %5179 = vmatprep.subr.mxu0 0.0
    %5180 = vmatpush1.msra.mxu0 %v193
    %5181 = vmatprep.subr.mxu0 0.0
    %5182 = vmatpush1.msra.mxu0 %v194
    %5183 = vmatprep.subr.mxu0 0.0
    %5184 = vmatpush1.msra.mxu0 %v195
    %5185 = vmatprep.subr.mxu0 0.0
    %5186 = vmatpush1.msra.mxu0 %v196
    %5187 = vmatprep.subr.mxu0 0.0
    %5188 = vmatpush1.msra.mxu0 %v197
    %5189 = vmatprep.subr.mxu0 0.0
    %5190 = vmatpush1.msra.mxu0 %v198
    %5191 = vmatprep.subr.mxu0 0.0
    %5192 = vmatpush1.msra.mxu0 %v199
    %5193 = vmatprep.subr.mxu0 0.0
    %5194 = vmatpush1.msra.mxu0 %v200
    %5195 = vmatprep.subr.mxu0 0.0
    %5196 = vmatpush1.msra.mxu0 %v201
    %5197 = vmatprep.subr.mxu0 0.0
    %5198 = vmatpush1.msra.mxu0 %v202
    %5199 = vmatprep.subr.mxu0 0.0
    %5200 = vmatpush1.msra.mxu0 %v203
    %5201 = vmatprep.subr.mxu0 0.0
    %5202 = vmatpush1.msra.mxu0 %v204
    %5203 = vmatprep.subr.mxu0 0.0
    %5204 = vmatpush1.msra.mxu0 %v205
    %5205 = vmatprep.subr.mxu0 0.0
    %5206 = vmatpush1.msra.mxu0 %v206
    %5207 = vmatprep.subr.mxu0 0.0
    %5208 = vmatpush1.msra.mxu0 0.0
    %5209 = vmatprep.subr.mxu0 0.0
    %5210 = vmatpush1.msra.mxu0 0.0
    %5211 = vmatprep.subr.mxu0 0.0
    %5212 = vmatpush1.msra.mxu0 0.0
    %5213 = vmatprep.subr.mxu0 0.0
    %5214 = vmatpush1.msra.mxu0 0.0
    %5215 = vmatprep.subr.mxu0 0.0
    %5216 = vmatpush1.msra.mxu0 0.0
    %5217 = vmatprep.subr.mxu0 0.0
    %5218 = vmatpush1.msra.mxu0 0.0
    %5219 = vmatprep.subr.mxu0 0.0
    %5220 = vmatpush1.msra.mxu0 0.0
    %5221 = vmatprep.subr.mxu0 0.0
    %5222 = vmatpush1.msra.mxu0 0.0
    %5223 = vmatprep.subr.mxu0 0.0
    %5224 = vmatpush1.msra.mxu0 0.0
    %5225 = vmatprep.subr.mxu0 0.0
    %5226 = vmatpush1.msra.mxu0 0.0
    %5227 = vmatprep.subr.mxu0 0.0
    %5228 = vmatpush1.msra.mxu0 0.0
    %5229 = vmatprep.subr.mxu0 0.0
    %5230 = vmatpush1.msra.mxu0 0.0
    %5231 = vmatprep.subr.mxu0 0.0
    %5232 = vmatpush1.msra.mxu0 0.0
    %5233 = vmatprep.subr.mxu0 0.0
    %5234 = vmatpush1.msra.mxu0 0.0
    %5235 = vmatprep.subr.mxu0 0.0
    %5236 = vmatpush1.msra.mxu0 0.0
    %5237 = vmatprep.subr.mxu0 0.0
    %5238 = vmatpush1.msra.mxu0 0.0
    %5239 = vmatprep.mubr.f32.mxu0 0.0
    %5240 = vmatmul.mubr.f32.gmra.mrb[0].mxu0 %v5163
    %v5241 = vpop.f32.mrb[0].mxu0
    %v5242 = vadd.f32 %v5173, %v5241
    %v5243 = vpop.f32.mrb[0].mxu0
    %5244 = vmatprep.mubr.f32.mxu0 0.0
    %5245 = vmatmul.mubr.f32.gmra.mrb[0].mxu0 %v5164
    %v5246 = vpop.f32.mrb[0].mxu0
    %v5247 = vadd.f32 %v5173, %v5246
    %v5248 = vpop.f32.mrb[0].mxu0
    %5249 = vmatprep.mubr.f32.mxu0 0.0
    %5250 = vmatmul.mubr.f32.gmra.mrb[0].mxu0 %v5165
    %v5251 = vpop.f32.mrb[0].mxu0
    %v5252 = vadd.f32 %v5173, %v5251
    %v5253 = vpop.f32.mrb[0].mxu0
    %5254 = vmatprep.mubr.f32.mxu0 0.0
    %5255 = vmatmul.mubr.f32.gmra.mrb[0].mxu0 %v5166
    %v5256 = vpop.f32.mrb[0].mxu0
    %v5257 = vadd.f32 %v5173, %v5256
    %v5258 = vpop.f32.mrb[0].mxu0
    %5259 = vmatprep.mubr.f32.mxu0 0.0
    %5260 = vmatmul.mubr.f32.gmra.mrb[0].mxu0 %v5167
    %v5261 = vpop.f32.mrb[0].mxu0
    %v5262 = vadd.f32 %v5173, %v5261
    %v5263 = vpop.f32.mrb[0].mxu0
    %5264 = vmatprep.mubr.f32.mxu0 0.0
    %5265 = vmatmul.mubr.f32.gmra.mrb[0].mxu0 %v5168
    %v5266 = vpop.f32.mrb[0].mxu0
    %v5267 = vadd.f32 %v5173, %v5266
    %v5268 = vpop.f32.mrb[0].mxu0
    %5269 = vdwg.mxu0
    %v5270 = vadd.f32 %v4912, %v5242
    %v5271 = vadd.f32 %v4913, %v5247
    %v5272 = vadd.f32 %v4914, %v5252
    %v5273 = vadd.f32 %v4915, %v5257
    %v5274 = vadd.f32 %v4916, %v5262
    %v5275 = vadd.f32 %v4917, %v5267
    %v5276 = vsel %vm359, %v5270, 0.0
    %5277 = vadd.xlane.f32.xlu0 %v5276
    %v5278 = vpop.xlane.xlu0 %5277
    %v5279 = vsel %vm359, %v5271, 0.0
    %5280 = vadd.xlane.f32.xlu0 %v5279
    %v5281 = vpop.xlane.xlu0 %5280
    %v5282 = vsel %vm359, %v5272, 0.0
    %5283 = vadd.xlane.f32.xlu0 %v5282
    %v5284 = vpop.xlane.xlu0 %5283
    %v5285 = vsel %vm359, %v5273, 0.0
    %5286 = vadd.xlane.f32.xlu0 %v5285
    %v5287 = vpop.xlane.xlu0 %5286
    %v5288 = vsel %vm359, %v5274, 0.0
    %5289 = vadd.xlane.f32.xlu0 %v5288
    %v5290 = vpop.xlane.xlu0 %5289
    %v5291 = vsel %vm359, %v5275, 0.0
    %5292 = vadd.xlane.f32.xlu0 %v5291
    %v5293 = vpop.xlane.xlu0 %5292
    %v5294 = vmul.f32 %v5278, %v378
    %v5295 = vmul.f32 %v5281, %v378
    %v5296 = vmul.f32 %v5284, %v378
    %v5297 = vmul.f32 %v5287, %v378
    %v5298 = vmul.f32 %v5290, %v378
    %v5299 = vmul.f32 %v5293, %v378
    %v5300 = vsub.f32 %v5270, %v5294
    %v5301 = vsub.f32 %v5271, %v5295
    %v5302 = vsub.f32 %v5272, %v5296
    %v5303 = vsub.f32 %v5273, %v5297
    %v5304 = vsub.f32 %v5274, %v5298
    %v5305 = vsub.f32 %v5275, %v5299
    %v5306 = vmul.f32 %v5300, %v5300
    %v5307 = vmul.f32 %v5301, %v5301
    %v5308 = vmul.f32 %v5302, %v5302
    %v5309 = vmul.f32 %v5303, %v5303
    %v5310 = vmul.f32 %v5304, %v5304
    %v5311 = vmul.f32 %v5305, %v5305
    %v5312 = vsel %vm359, %v5306, 0.0
    %5313 = vadd.xlane.f32.xlu0 %v5312
    %v5314 = vpop.xlane.xlu0 %5313
    %v5315 = vsel %vm359, %v5307, 0.0
    %5316 = vadd.xlane.f32.xlu0 %v5315
    %v5317 = vpop.xlane.xlu0 %5316
    %v5318 = vsel %vm359, %v5308, 0.0
    %5319 = vadd.xlane.f32.xlu0 %v5318
    %v5320 = vpop.xlane.xlu0 %5319
    %v5321 = vsel %vm359, %v5309, 0.0
    %5322 = vadd.xlane.f32.xlu0 %v5321
    %v5323 = vpop.xlane.xlu0 %5322
    %v5324 = vsel %vm359, %v5310, 0.0
    %5325 = vadd.xlane.f32.xlu0 %v5324
    %v5326 = vpop.xlane.xlu0 %5325
    %v5327 = vsel %vm359, %v5311, 0.0
    %5328 = vadd.xlane.f32.xlu0 %v5327
    %v5329 = vpop.xlane.xlu0 %5328
    %v5330 = vmul.f32 %v5314, %v378
    %v5331 = vmul.f32 %v5317, %v378
    %v5332 = vmul.f32 %v5320, %v378
    %v5333 = vmul.f32 %v5323, %v378
    %v5334 = vmul.f32 %v5326, %v378
    %v5335 = vmul.f32 %v5329, %v378
    %v5336 = vadd.f32 %v5330, 1e-05
    %v5337 = vadd.f32 %v5331, 1e-05
    %v5338 = vadd.f32 %v5332, 1e-05
    %v5339 = vadd.f32 %v5333, 1e-05
    %v5340 = vadd.f32 %v5334, 1e-05
    %v5341 = vadd.f32 %v5335, 1e-05
    %v5342 = vrsqrt.pop %v5336
    %v5343 = vrsqrt.pop %v5337
    %v5344 = vrsqrt.pop %v5338
    %v5345 = vrsqrt.pop %v5339
    %v5346 = vrsqrt.pop %v5340
    %v5347 = vrsqrt.pop %v5341
    %v5348 = vmul.f32 %v5300, %v5342
    %v5349 = vmul.f32 %v5301, %v5343
    %v5350 = vmul.f32 %v5302, %v5344
    %v5351 = vmul.f32 %v5303, %v5345
    %v5352 = vmul.f32 %v5304, %v5346
    %v5353 = vmul.f32 %v5305, %v5347
    %v5355 = vlaneseq
    %v5356 = vshrl.u32 %v5355, 7
    %v5357 = vsub.s32 0, %v5356
    %v5358 = vrot.slane %v208, %v5357
    %v5360 = vmul.f32 %v5348, %v5358
    %v5361 = vmul.f32 %v5349, %v5358
    %v5362 = vmul.f32 %v5350, %v5358
    %v5363 = vmul.f32 %v5351, %v5358
    %v5364 = vmul.f32 %v5352, %v5358
    %v5365 = vmul.f32 %v5353, %v5358
    %v5367 = vlaneseq
    %v5368 = vshrl.u32 %v5367, 7
    %v5369 = vsub.s32 0, %v5368
    %v5370 = vrot.slane %v209, %v5369
    %v5372 = vadd.f32 %v5360, %v5370
    %v5373 = vadd.f32 %v5361, %v5370
    %v5374 = vadd.f32 %v5362, %v5370
    %v5375 = vadd.f32 %v5363, %v5370
    %v5376 = vadd.f32 %v5364, %v5370
    %v5377 = vadd.f32 %v5365, %v5370
    %v5379 = vlaneseq
    %v5380 = vshrl.u32 %v5379, 7
    %v5381 = vsub.s32 0, %v5380
    %v5382 = vrot.slane %v214, %v5381
    %v5385 = vsel %vm359, %v5372, 0
    %v5388 = vsel %vm359, %v5373, 0
    %v5391 = vsel %vm359, %v5374, 0
    %v5394 = vsel %vm359, %v5375, 0
    %v5397 = vsel %vm359, %v5376, 0
    %v5400 = vsel %vm359, %v5377, 0
    %5402 = vmatprep.subr.mxu0 0.0
    %5403 = vmatpush1.msra.mxu0 %v210
    %5404 = vmatprep.subr.mxu0 0.0
    %5405 = vmatpush1.msra.mxu0 %v211
    %5406 = vmatprep.subr.mxu0 0.0
    %5407 = vmatpush1.msra.mxu0 %v212
    %5408 = vmatprep.subr.mxu0 0.0
    %5409 = vmatpush1.msra.mxu0 %v213
    %5410 = vmatprep.subr.mxu0 0.0
    %5411 = vmatpush1.msra.mxu0 0.0
    %5412 = vmatprep.subr.mxu0 0.0
    %5413 = vmatpush1.msra.mxu0 0.0
    %5414 = vmatprep.subr.mxu0 0.0
    %5415 = vmatpush1.msra.mxu0 0.0
    %5416 = vmatprep.subr.mxu0 0.0
    %5417 = vmatpush1.msra.mxu0 0.0
    %5418 = vmatprep.subr.mxu0 0.0
    %5419 = vmatpush1.msra.mxu0 0.0
    %5420 = vmatprep.subr.mxu0 0.0
    %5421 = vmatpush1.msra.mxu0 0.0
    %5422 = vmatprep.subr.mxu0 0.0
    %5423 = vmatpush1.msra.mxu0 0.0
    %5424 = vmatprep.subr.mxu0 0.0
    %5425 = vmatpush1.msra.mxu0 0.0
    %5426 = vmatprep.subr.mxu0 0.0
    %5427 = vmatpush1.msra.mxu0 0.0
    %5428 = vmatprep.subr.mxu0 0.0
    %5429 = vmatpush1.msra.mxu0 0.0
    %5430 = vmatprep.subr.mxu0 0.0
    %5431 = vmatpush1.msra.mxu0 0.0
    %5432 = vmatprep.subr.mxu0 0.0
    %5433 = vmatpush1.msra.mxu0 0.0
    %5434 = vmatprep.subr.mxu0 0.0
    %5435 = vmatpush1.msra.mxu0 0.0
    %5436 = vmatprep.subr.mxu0 0.0
    %5437 = vmatpush1.msra.mxu0 0.0
    %5438 = vmatprep.subr.mxu0 0.0
    %5439 = vmatpush1.msra.mxu0 0.0
    %5440 = vmatprep.subr.mxu0 0.0
    %5441 = vmatpush1.msra.mxu0 0.0
    %5442 = vmatprep.subr.mxu0 0.0
    %5443 = vmatpush1.msra.mxu0 0.0
    %5444 = vmatprep.subr.mxu0 0.0
    %5445 = vmatpush1.msra.mxu0 0.0
    %5446 = vmatprep.subr.mxu0 0.0
    %5447 = vmatpush1.msra.mxu0 0.0
    %5448 = vmatprep.subr.mxu0 0.0
    %5449 = vmatpush1.msra.mxu0 0.0
    %5450 = vmatprep.subr.mxu0 0.0
    %5451 = vmatpush1.msra.mxu0 0.0
    %5452 = vmatprep.subr.mxu0 0.0
    %5453 = vmatpush1.msra.mxu0 0.0
    %5454 = vmatprep.subr.mxu0 0.0
    %5455 = vmatpush1.msra.mxu0 0.0
    %5456 = vmatprep.subr.mxu0 0.0
    %5457 = vmatpush1.msra.mxu0 0.0
    %5458 = vmatprep.subr.mxu0 0.0
    %5459 = vmatpush1.msra.mxu0 0.0
    %5460 = vmatprep.subr.mxu0 0.0
    %5461 = vmatpush1.msra.mxu0 0.0
    %5462 = vmatprep.subr.mxu0 0.0
    %5463 = vmatpush1.msra.mxu0 0.0
    %5464 = vmatprep.subr.mxu0 0.0
    %5465 = vmatpush1.msra.mxu0 0.0
    %5466 = vmatprep.mubr.f32.mxu0 0.0
    %5467 = vmatmul.mubr.f32.gmra.mrb[0].mxu0 %v5385
    %v5468 = vpop.f32.mrb[0].mxu0
    %v5469 = vadd.f32 %v5382, %v5468
    %v5470 = vpop.f32.mrb[0].mxu0
    %5471 = vmatprep.mubr.f32.mxu0 0.0
    %5472 = vmatmul.mubr.f32.gmra.mrb[0].mxu0 %v5388
    %v5473 = vpop.f32.mrb[0].mxu0
    %v5474 = vpop.f32.mrb[0].mxu0
    %5475 = vmatprep.mubr.f32.mxu0 0.0
    %5476 = vmatmul.mubr.f32.gmra.mrb[0].mxu0 %v5391
    %v5477 = vpop.f32.mrb[0].mxu0
    %v5478 = vpop.f32.mrb[0].mxu0
    %5479 = vmatprep.mubr.f32.mxu0 0.0
    %5480 = vmatmul.mubr.f32.gmra.mrb[0].mxu0 %v5394
    %v5481 = vpop.f32.mrb[0].mxu0
    %v5482 = vadd.f32 %v5382, %v5481
    %v5483 = vpop.f32.mrb[0].mxu0
    %5484 = vmatprep.mubr.f32.mxu0 0.0
    %5485 = vmatmul.mubr.f32.gmra.mrb[0].mxu0 %v5397
    %v5486 = vpop.f32.mrb[0].mxu0
    %v5487 = vpop.f32.mrb[0].mxu0
    %5488 = vmatprep.mubr.f32.mxu0 0.0
    %5489 = vmatmul.mubr.f32.gmra.mrb[0].mxu0 %v5400
    %v5490 = vpop.f32.mrb[0].mxu0
    %v5491 = vpop.f32.mrb[0].mxu0
    %5492 = vdwg.mxu0
    %vm5493 = vcmask 73728
    %5494 = vst.msk [vmem:[#allocation2] sm:$0x1] %vm5493, %v5469
    %5495 = vst.msk [vmem:[#allocation2 + $0x1] sm:$0x1] %vm5493, %v5482
    // Predicated region
    $region126: #{vit_forward.1} parent=1 // pred_check
      _
    $region127: #{vit_forward.1} parent=1 // pred_check_branch
      %5497 = sbr.rel (0) target = $region129
    $region128: #{vit_forward.1} parent=1 // pred_region
      %s5499 = ssub.s32 32, 32
      %5500 = vsyncadd [#allocation3], %s5499
      %s5502 = sshll.u32 [#allocation2], 4
      %s5503 = int_to_ptr.vmem [resolvable:$true] %s5502
      %5505 = dma.vmem_to_hbm [thread:$0]  %s5503, 32, %s63, [#allocation3]
    $region129: #{vit_forward.1} parent=1 // pred_fallthru
      _
    // Predicated region
    $region130: #{vit_forward.1} parent=1 // pred_check
      _
    $region131: #{vit_forward.1} parent=1 // pred_check_branch
      %5507 = sbr.rel (0) target = $region133
    $region132: #{vit_forward.1} parent=1 // pred_region
      %5508 = dma.done [#allocation3], 32
    $region133: #{vit_forward.1} parent=1 // pred_fallthru
      _
    %5509 = vsyncpa [#allocation3], 1

</llo_original>
